<compile_context>
chip_gen: v6e
topology: v6e:2x2x1
jax: 0.10.0
libtpu: 0.0.40
codegen_flags: <defaults>
</compile_context>

<pallas_src>
import jax
import jax.numpy as jnp
from jax import lax
from jax.experimental import pallas as pl
from jax.experimental.pallas import tpu as pltpu

_NEG_INF = -1e30  # finite "-inf": exp(_NEG_INF - m) underflows to 0, never NaN


def _round_up(v, m):
    return ((v + m - 1) // m) * m


def _pick_chunk(tb, k_pad, n_pad):
    """Lane-chunk size for the in-kernel score gather (static, trace time)."""
    ch = min(n_pad, 128)
    while (ch * 2 <= min(n_pad, 512)
           and n_pad % (ch * 2) == 0
           and 8 * tb * k_pad * (ch * 2) <= (4 << 20)):   # cap rank-3 temps ~4 MiB
        ch *= 2
    return ch


def _vmem_capacity_bytes():
    """Per-TensorCore VMEM capacity; generation-aware with a safe fallback."""
    try:
        info = pltpu.get_tpu_info()
        for name in ("vmem_capacity_bytes", "vmem_size_bytes", "vmem_bytes"):
            v = getattr(info, name, None)
            if v:
                return int(v)
    except Exception:
        pass
    return 64 << 20  # conservative (v7x per-TC VMEM)


def _policy_kernel(x_ref, w_ref, b_ref, embT_ref, ak_ref, mask_ref, out_ref):
    # --- fc: Linear + ReLU (bf16 MXU matmul, f32 accumulate, VPU bias/relu) --
    ctx = jnp.dot(x_ref[...], w_ref[...], preferred_element_type=jnp.float32)
    ctx = jnp.maximum(ctx + b_ref[...], 0.0)                         # [TB, E] f32

    # --- score every item against the resident transposed table (one MXU
    #     matmul, lane-dense over N_pad) ------------------------------------
    scores_all = jnp.dot(ctx.astype(embT_ref.dtype), embT_ref[...],
                         preferred_element_type=jnp.float32)         # [TB, N_pad]

    # --- gather the K_pad candidate columns: chunked one-hot accumulation.
    #     Per-chunk temporaries are [TB, K_pad, CH] (bounded), never
    #     [TB, K_pad, N_pad]; chunk count is a small trace-time constant. ----
    ids = ak_ref[...]                                                 # [TB, K_pad] i32
    tb, k_pad = ids.shape
    n_pad = scores_all.shape[-1]
    ch = _pick_chunk(tb, k_pad, n_pad)

    ids3 = ids[:, :, None]                                            # [TB, K_pad, 1]
    iota_ch = lax.broadcasted_iota(jnp.int32, (tb, k_pad, ch), 2)     # hoisted
    scores = jnp.zeros((tb, k_pad), jnp.float32)
    for c in range(n_pad // ch):                                      # static unrolled
        start = c * ch
        sc = scores_all[:, start:start + ch]                          # lane-aligned slice
        sel = iota_ch == (ids3 - start)
        scores = scores + jnp.sum(jnp.where(sel, sc[:, None, :], 0.0), axis=-1)

    # --- masked_fill(mask == 0, -inf) with a finite fill (fully-masked rows
    #     give a uniform distribution rather than torch's NaN) ---------------
    scores = jnp.where(mask_ref[...] == 0, _NEG_INF, scores)          # [TB, K_pad]

    # --- softmax over the item axis (torch dim=1); EXACT normalization so
    #     each row sums to 1 to f32 precision --------------------------------
    m = jnp.max(scores, axis=-1, keepdims=True)
    e = jnp.exp(scores - m)
    out_ref[...] = e / jnp.sum(e, axis=-1, keepdims=True)


def prepare_item_table(emb_table, *, dtype=jnp.bfloat16):
    """Pad the item axis to a multiple of 128 lanes, transpose to [E, N_pad],
    and cast.  Do this ONCE per table and cache the result: doing it per
    forward call re-reads/writes the whole table in HBM every call."""
    N, E = emb_table.shape
    N_pad = _round_up(N, 128)
    return jnp.pad(emb_table, ((0, N_pad - N), (0, 0))).T.astype(dtype)   # [E, N_pad]


def softmax_second_stage_policy(x, A_k, emb_T, w, b, mask=None, *,
                                block_b=None, compute_dtype=jnp.bfloat16):
    """Pallas forward of SoftmaxSecondStagePolicy.

    x:      [B, Dctx]   float32 context
    A_k:    [B, K]      int     item ids into the embedding table
    emb_T:  [E, N_pad]  prepared item table from prepare_item_table() (cache it!)
    w:      [Dctx, E]   float32 fc weight (transposed vs torch Linear.weight)
    b:      [E]         float32 fc bias
    mask:   [B, K]      int/bool or None
    returns probs [B, K] float32
    """
    B, D = x.shape
    K = A_k.shape[1]
    E, N_pad = emb_T.shape
    assert w.shape == (D, E)
    assert N_pad % 128 == 0

    if mask is None:
        mask = jnp.ones((B, K), dtype=jnp.int32)
    mask = mask.astype(jnp.int32)
    A_k = A_k.astype(jnp.int32)

    K_pad = _round_up(K, 128)
    in_bytes = jnp.dtype(compute_dtype).itemsize

    # ---- batch tile selection ----------------------------------------------
    TB = 128 if block_b is None else block_b
    TB = max(8, _round_up(min(TB, B), 8))
    if B > 8:
        # Guarantee >= 2 grid steps: shards the "parallel" axis across v7x's
        # two TensorCores and gives the pipeline DMA/compute overlap.
        TB = min(TB, max(8, _round_up(-(-B // 2), 8)))

    cap = _vmem_capacity_bytes()
    budget = int(cap * 0.6)   # generation-aware: ~77 MiB on v5e/v6e, ~38 MiB on v7x

    def vmem_estimate(tb):
        ch = _pick_chunk(tb, K_pad, N_pad)
        per_step = in_bytes * tb * D + 4 * tb * K_pad * 3            # x, ids, mask, out
        resident = in_bytes * (D * E + E * N_pad) + 4 * E            # single-buffered params/table
        temps = (8 * tb * E                                           # ctx f32 + bf16
                 + 4 * tb * N_pad                                     # scores_all
                 + 8 * tb * K_pad                                     # acc + softmax temps
                 + 4 * tb * K_pad * ch * 2)                           # iota + per-chunk select
        return 2 * per_step + resident + temps                        # I/O tiles double-buffered

    while TB > 8 and vmem_estimate(TB) > budget:
        TB = max(8, _round_up(TB // 2, 8))

    B_pad = _round_up(B, TB)

    # Wrapper-side padding (mathematically inert: padded candidate columns
    # carry mask == 0, padded batch rows are sliced off below).
    x_p = jnp.pad(x, ((0, B_pad - B), (0, 0))).astype(compute_dtype)
    A_k_p = jnp.pad(A_k, ((0, B_pad - B), (0, K_pad - K)))
    mask_p = jnp.pad(mask, ((0, B_pad - B), (0, K_pad - K)))
    w_c = w.astype(compute_dtype)
    b2 = b.reshape(1, E).astype(jnp.float32)

    grid = (B_pad // TB,)

    est = vmem_estimate(TB)
    cp_kwargs = dict(dimension_semantics=("parallel",))
    if est > (12 << 20):
        cp_kwargs["vmem_limit_bytes"] = int(min(max(2 * est, 16 << 20), int(cap * 0.9)))

    def run(single_buffer_residents):
        res_kw = ({"pipeline_mode": pl.Buffered(1)}
                  if single_buffer_residents else {})
        return pl.pallas_call(
            _policy_kernel,
            out_shape=jax.ShapeDtypeStruct((B_pad, K_pad), jnp.float32),
            grid_spec=pl.GridSpec(
                grid=grid,
                in_specs=[
                    pl.BlockSpec((TB, D), lambda i: (i, 0)),              # x tile
                    pl.BlockSpec((D, E), lambda i: (0, 0), **res_kw),     # fc weight (resident)
                    pl.BlockSpec((1, E), lambda i: (0, 0), **res_kw),     # fc bias
                    pl.BlockSpec((E, N_pad), lambda i: (0, 0), **res_kw),  # emb table^T (resident)
                    pl.BlockSpec((TB, K_pad), lambda i: (i, 0)),          # candidate ids
                    pl.BlockSpec((TB, K_pad), lambda i: (i, 0)),          # mask
                ],
                out_specs=pl.BlockSpec((TB, K_pad), lambda i: (i, 0)),    # lane-dense output
            ),
            compiler_params=pltpu.CompilerParams(**cp_kwargs),
        )(x_p, w_c, b2, emb_T, A_k_p, mask_p)

    try:
        probs_full = run(True)    # single-buffer the grid-invariant params/table
    except Exception:
        probs_full = run(False)   # fall back to default double-buffering

    return probs_full[:B, :K]


def _reference(x, A_k, emb_table, w, b, mask):
    ctx = jnp.maximum(x @ w + b[None, :], 0.0)
    item_embs = emb_table[A_k]
    scores = jnp.einsum("bke,be->bk", item_embs, ctx)
    scores = jnp.where(mask == 0, -jnp.inf, scores)
    return jax.nn.softmax(scores, axis=1)


if __name__ == "__main__":
    # Small shapes consistent with the module's forward.
    B, Dctx, E, K, N_ITEMS = 8, 32, 32, 16, 64

    key = jax.random.PRNGKey(0)
    kx, kw, kb, kemb, kidx, kmask = jax.random.split(key, 6)

    x = jax.random.normal(kx, (B, Dctx), dtype=jnp.float32)
    # Deterministic "parameters" (synthetic, not a checkpoint load).
    w = jax.random.normal(kw, (Dctx, E), dtype=jnp.float32) * 0.1    # fc.weight^T
    b = jax.random.normal(kb, (E,), dtype=jnp.float32) * 0.1         # fc.bias
    emb_table = jax.random.normal(kemb, (N_ITEMS, E), dtype=jnp.float32) * 0.1

    A_k = jax.random.randint(kidx, (B, K), 0, N_ITEMS, dtype=jnp.int32)
    mask = jax.random.bernoulli(kmask, 0.8, (B, K)).astype(jnp.int32)
    mask = mask.at[:, 0].set(1)  # guarantee at least one valid item per row

    # Prepare (pad + transpose + bf16 cast) the item table ONCE; cache across calls.
    emb_T = prepare_item_table(emb_table)

    probs = softmax_second_stage_policy(x, A_k, emb_T, w, b, mask)
    probs = jax.block_until_ready(probs)

    ref = _reference(x, A_k, emb_table, w, b, mask)
    assert probs.shape == (B, K)
    assert bool(jnp.all(jnp.isfinite(probs)))
    # Exact normalization (true divide in-kernel): rows sum to 1 to f32 precision.
    assert jnp.allclose(jnp.sum(probs, axis=1), 1.0, atol=1e-4)
    # bf16 MXU path: compare to the f32 reference with bf16-appropriate tolerance.
    assert jnp.allclose(probs, ref, atol=5e-3, rtol=5e-2), "mismatch vs reference"

    print("KERNEL_OK")
</pallas_src>

<mosaic_0001>
module attributes {stable_mosaic.version = 11 : i64} {
  func.func @_policy_kernel(%arg0: i32, %arg1: memref<8x32xbf16, #tpu.memory_space<vmem>>, %arg2: memref<32x32xbf16, #tpu.memory_space<vmem>>, %arg3: memref<1x32xf32, #tpu.memory_space<vmem>>, %arg4: memref<32x128xbf16, #tpu.memory_space<vmem>>, %arg5: memref<8x128xi32, #tpu.memory_space<vmem>>, %arg6: memref<8x128xi32, #tpu.memory_space<vmem>>, %arg7: memref<8x128xf32, #tpu.memory_space<vmem>>) attributes {dimension_semantics = [#tpu.dimension_semantics<parallel>], iteration_bounds = array<i64: 1>, scalar_prefetch = 0 : i64, scratch_operands = 0 : i64, tpu.core_type = #tpu.core_type<tc>, window_params = [{transform_indices = @transform_0, window_bounds = array<i64: 8, 32>}, {pipeline_mode = #tpu.pipeline_mode<synchronous>, transform_indices = @transform_1, window_bounds = array<i64: 32, 32>}, {pipeline_mode = #tpu.pipeline_mode<synchronous>, transform_indices = @transform_2, window_bounds = array<i64: 1, 32>}, {pipeline_mode = #tpu.pipeline_mode<synchronous>, transform_indices = @transform_3, window_bounds = array<i64: 32, 128>}, {transform_indices = @transform_4, window_bounds = array<i64: 8, 128>}, {transform_indices = @transform_5, window_bounds = array<i64: 8, 128>}, {transform_indices = @transform_6, window_bounds = array<i64: 8, 128>}]} {
    %c0 = arith.constant 0 : index
    %c0_0 = arith.constant 0 : index
    %0 = vector.load %arg1[%c0, %c0_0] : memref<8x32xbf16, #tpu.memory_space<vmem>>, vector<8x32xbf16>
    %c0_1 = arith.constant 0 : index
    %c0_2 = arith.constant 0 : index
    %1 = vector.load %arg2[%c0_1, %c0_2] : memref<32x32xbf16, #tpu.memory_space<vmem>>, vector<32x32xbf16>
    %cst = arith.constant dense<0.000000e+00> : vector<8x32xf32>
    %2 = tpu.matmul %0, %1, %cst {dimension_numbers = #tpu.dot_dimension_numbers<[1], [0], [0], [1], [0, 0, 1, 1], [], []>} : vector<8x32xbf16>, vector<32x32xbf16>, vector<8x32xf32> -> vector<8x32xf32>
    %c0_3 = arith.constant 0 : index
    %c0_4 = arith.constant 0 : index
    %3 = vector.load %arg3[%c0_3, %c0_4] : memref<1x32xf32, #tpu.memory_space<vmem>>, vector<1x32xf32>
    %4 = vector.broadcast %3 : vector<1x32xf32> to vector<8x32xf32>
    %5 = arith.addf %2, %4 : vector<8x32xf32>
    %cst_5 = arith.constant 0.000000e+00 : f32
    %6 = vector.broadcast %cst_5 : f32 to vector<8x32xf32>
    %7 = arith.maximumf %5, %6 : vector<8x32xf32>
    %8 = arith.truncf %7 : vector<8x32xf32> to vector<8x32xbf16>
    %c0_6 = arith.constant 0 : index
    %c0_7 = arith.constant 0 : index
    %9 = vector.load %arg4[%c0_6, %c0_7] : memref<32x128xbf16, #tpu.memory_space<vmem>>, vector<32x128xbf16>
    %cst_8 = arith.constant dense<0.000000e+00> : vector<8x128xf32>
    %10 = tpu.matmul %8, %9, %cst_8 {dimension_numbers = #tpu.dot_dimension_numbers<[1], [0], [0], [1], [0, 0, 1, 1], [], []>} : vector<8x32xbf16>, vector<32x128xbf16>, vector<8x128xf32> -> vector<8x128xf32>
    %c0_9 = arith.constant 0 : index
    %c0_10 = arith.constant 0 : index
    %11 = vector.load %arg5[%c0_9, %c0_10] : memref<8x128xi32, #tpu.memory_space<vmem>>, vector<8x128xi32>
    %12 = vector.shape_cast %11 : vector<8x128xi32> to vector<8x128x1xi32>
    %13 = tpu.iota {dimensions = array<i32: 2>} : vector<8x128x128xi32>
    %cst_11 = arith.constant 0.000000e+00 : f32
    %14 = vector.broadcast %cst_11 : f32 to vector<8x128xf32>
    %c0_i32 = arith.constant 0 : i32
    %15 = vector.broadcast %c0_i32 : i32 to vector<8x128x1xi32>
    %16 = arith.subi %12, %15 : vector<8x128x1xi32>
    %17 = vector.broadcast %16 : vector<8x128x1xi32> to vector<8x128x128xi32>
    %18 = arith.cmpi eq, %13, %17 : vector<8x128x128xi32>
    %19 = vector.shape_cast %10 : vector<8x128xf32> to vector<8x1x128xf32>
    %cst_12 = arith.constant 0.000000e+00 : f32
    %20 = vector.shape_cast %19 : vector<8x1x128xf32> to vector<8x1x128xf32>
    %21 = vector.broadcast %20 : vector<8x1x128xf32> to vector<8x128x128xf32>
    %22 = vector.broadcast %cst_12 : f32 to vector<8x128x128xf32>
    %23 = arith.select %18, %21, %22 : vector<8x128x128xi1>, vector<8x128x128xf32>
    %cst_13 = arith.constant dense<0.000000e+00> : vector<8x128xf32>
    %24 = vector.multi_reduction <add>, %23, %cst_13 [2] : vector<8x128x128xf32> to vector<8x128xf32>
    %25 = arith.addf %14, %24 : vector<8x128xf32>
    %c0_14 = arith.constant 0 : index
    %c0_15 = arith.constant 0 : index
    %26 = vector.load %arg6[%c0_14, %c0_15] : memref<8x128xi32, #tpu.memory_space<vmem>>, vector<8x128xi32>
    %c0_i32_16 = arith.constant 0 : i32
    %27 = vector.broadcast %c0_i32_16 : i32 to vector<8x128xi32>
    %28 = arith.cmpi eq, %26, %27 : vector<8x128xi32>
    %cst_17 = arith.constant -1.000000e+30 : f32
    %29 = vector.broadcast %cst_17 : f32 to vector<8x128xf32>
    %30 = arith.select %28, %29, %25 : vector<8x128xi1>, vector<8x128xf32>
    %cst_18 = arith.constant dense<0xFF800000> : vector<8xf32>
    %31 = vector.multi_reduction <maximumf>, %30, %cst_18 [1] : vector<8x128xf32> to vector<8xf32>
    %32 = vector.shape_cast %31 : vector<8xf32> to vector<8x1xf32>
    %33 = vector.broadcast %32 : vector<8x1xf32> to vector<8x128xf32>
    %34 = arith.subf %30, %33 : vector<8x128xf32>
    %35 = math.exp %34 : vector<8x128xf32>
    %cst_19 = arith.constant dense<0.000000e+00> : vector<8xf32>
    %36 = vector.multi_reduction <add>, %35, %cst_19 [1] : vector<8x128xf32> to vector<8xf32>
    %37 = vector.shape_cast %36 : vector<8xf32> to vector<8x1xf32>
    %38 = vector.broadcast %37 : vector<8x1xf32> to vector<8x128xf32>
    %39 = arith.divf %35, %38 : vector<8x128xf32>
    %c0_20 = arith.constant 0 : index
    %c0_21 = arith.constant 0 : index
    %40 = vector.load %arg7[%c0_20, %c0_21] : memref<8x128xf32, #tpu.memory_space<vmem>>, vector<8x128xf32>
    tpu.vector_store %arg7[%c0_20, %c0_21], %39 {strides = array<i32>} : memref<8x128xf32, #tpu.memory_space<vmem>>, vector<8x128xf32>,
    return
  }
  func.func @transform_0(%arg0: i32) -> (i32, i32) {
    %c0_i32 = arith.constant 0 : i32
    %c0_i32_0 = arith.constant 0 : i32
    return %arg0, %c0_i32 : i32, i32
  }
  func.func @transform_1(%arg0: i32) -> (i32, i32) {
    %c0_i32 = arith.constant 0 : i32
    %c0_i32_0 = arith.constant 0 : i32
    %c0_i32_1 = arith.constant 0 : i32
    return %c0_i32, %c0_i32_0 : i32, i32
  }
  func.func @transform_2(%arg0: i32) -> (i32, i32) {
    %c0_i32 = arith.constant 0 : i32
    %c0_i32_0 = arith.constant 0 : i32
    %c0_i32_1 = arith.constant 0 : i32
    return %c0_i32, %c0_i32_0 : i32, i32
  }
  func.func @transform_3(%arg0: i32) -> (i32, i32) {
    %c0_i32 = arith.constant 0 : i32
    %c0_i32_0 = arith.constant 0 : i32
    %c0_i32_1 = arith.constant 0 : i32
    return %c0_i32, %c0_i32_0 : i32, i32
  }
  func.func @transform_4(%arg0: i32) -> (i32, i32) {
    %c0_i32 = arith.constant 0 : i32
    %c0_i32_0 = arith.constant 0 : i32
    return %arg0, %c0_i32 : i32, i32
  }
  func.func @transform_5(%arg0: i32) -> (i32, i32) {
    %c0_i32 = arith.constant 0 : i32
    %c0_i32_0 = arith.constant 0 : i32
    return %arg0, %c0_i32 : i32, i32
  }
  func.func @transform_6(%arg0: i32) -> (i32, i32) {
    %c0_i32 = arith.constant 0 : i32
    %c0_i32_0 = arith.constant 0 : i32
    return %arg0, %c0_i32 : i32, i32
  }
}

module attributes {stable_mosaic.version = 11 : i64} {
  func.func @_policy_kernel(%arg0: i32, %arg1: memref<8x32xbf16, #tpu.memory_space<vmem>>, %arg2: memref<32x32xbf16, #tpu.memory_space<vmem>>, %arg3: memref<1x32xf32, #tpu.memory_space<vmem>>, %arg4: memref<32x128xbf16, #tpu.memory_space<vmem>>, %arg5: memref<8x128xi32, #tpu.memory_space<vmem>>, %arg6: memref<8x128xi32, #tpu.memory_space<vmem>>, %arg7: memref<8x128xf32, #tpu.memory_space<vmem>>) attributes {dimension_semantics = [#tpu.dimension_semantics<parallel>], iteration_bounds = array<i64: 1>, scalar_prefetch = 0 : i64, scratch_operands = 0 : i64, tpu.core_type = #tpu.core_type<tc>, window_params = [{transform_indices = @transform_0, window_bounds = array<i64: 8, 32>}, {pipeline_mode = #tpu.pipeline_mode<synchronous>, transform_indices = @transform_1, window_bounds = array<i64: 32, 32>}, {pipeline_mode = #tpu.pipeline_mode<synchronous>, transform_indices = @transform_2, window_bounds = array<i64: 1, 32>}, {pipeline_mode = #tpu.pipeline_mode<synchronous>, transform_indices = @transform_3, window_bounds = array<i64: 32, 128>}, {transform_indices = @transform_4, window_bounds = array<i64: 8, 128>}, {transform_indices = @transform_5, window_bounds = array<i64: 8, 128>}, {transform_indices = @transform_6, window_bounds = array<i64: 8, 128>}]} {
    %c0 = arith.constant 0 : index
    %c0_0 = arith.constant 0 : index
    %0 = vector.load %arg1[%c0, %c0_0] : memref<8x32xbf16, #tpu.memory_space<vmem>>, vector<8x32xbf16>
    %c0_1 = arith.constant 0 : index
    %c0_2 = arith.constant 0 : index
    %1 = vector.load %arg2[%c0_1, %c0_2] : memref<32x32xbf16, #tpu.memory_space<vmem>>, vector<32x32xbf16>
    %cst = arith.constant dense<0.000000e+00> : vector<8x32xf32>
    %2 = tpu.matmul %0, %1, %cst {dimension_numbers = #tpu.dot_dimension_numbers<[1], [0], [0], [1], [0, 0, 1, 1], [], []>} : vector<8x32xbf16>, vector<32x32xbf16>, vector<8x32xf32> -> vector<8x32xf32>
    %c0_3 = arith.constant 0 : index
    %c0_4 = arith.constant 0 : index
    %3 = vector.load %arg3[%c0_3, %c0_4] : memref<1x32xf32, #tpu.memory_space<vmem>>, vector<1x32xf32>
    %4 = vector.broadcast %3 : vector<1x32xf32> to vector<8x32xf32>
    %5 = arith.addf %2, %4 : vector<8x32xf32>
    %cst_5 = arith.constant 0.000000e+00 : f32
    %6 = vector.broadcast %cst_5 : f32 to vector<8x32xf32>
    %7 = arith.maximumf %5, %6 : vector<8x32xf32>
    %8 = arith.truncf %7 : vector<8x32xf32> to vector<8x32xbf16>
    %c0_6 = arith.constant 0 : index
    %c0_7 = arith.constant 0 : index
    %9 = vector.load %arg4[%c0_6, %c0_7] : memref<32x128xbf16, #tpu.memory_space<vmem>>, vector<32x128xbf16>
    %cst_8 = arith.constant dense<0.000000e+00> : vector<8x128xf32>
    %10 = tpu.matmul %8, %9, %cst_8 {dimension_numbers = #tpu.dot_dimension_numbers<[1], [0], [0], [1], [0, 0, 1, 1], [], []>} : vector<8x32xbf16>, vector<32x128xbf16>, vector<8x128xf32> -> vector<8x128xf32>
    %c0_9 = arith.constant 0 : index
    %c0_10 = arith.constant 0 : index
    %11 = vector.load %arg5[%c0_9, %c0_10] : memref<8x128xi32, #tpu.memory_space<vmem>>, vector<8x128xi32>
    %12 = vector.shape_cast %11 : vector<8x128xi32> to vector<8x128x1xi32>
    %13 = tpu.iota {dimensions = array<i32: 2>} : vector<8x128x128xi32>
    %cst_11 = arith.constant 0.000000e+00 : f32
    %14 = vector.broadcast %cst_11 : f32 to vector<8x128xf32>
    %c0_i32 = arith.constant 0 : i32
    %15 = vector.broadcast %c0_i32 : i32 to vector<8x128x1xi32>
    %16 = arith.subi %12, %15 : vector<8x128x1xi32>
    %17 = vector.broadcast %16 : vector<8x128x1xi32> to vector<8x128x128xi32>
    %18 = arith.cmpi eq, %13, %17 : vector<8x128x128xi32>
    %19 = vector.shape_cast %10 : vector<8x128xf32> to vector<8x1x128xf32>
    %cst_12 = arith.constant 0.000000e+00 : f32
    %20 = vector.shape_cast %19 : vector<8x1x128xf32> to vector<8x1x128xf32>
    %21 = vector.broadcast %20 : vector<8x1x128xf32> to vector<8x128x128xf32>
    %22 = vector.broadcast %cst_12 : f32 to vector<8x128x128xf32>
    %23 = arith.select %18, %21, %22 : vector<8x128x128xi1>, vector<8x128x128xf32>
    %cst_13 = arith.constant dense<0.000000e+00> : vector<8x128xf32>
    %24 = vector.multi_reduction <add>, %23, %cst_13 [2] : vector<8x128x128xf32> to vector<8x128xf32>
    %25 = arith.addf %14, %24 : vector<8x128xf32>
    %c0_14 = arith.constant 0 : index
    %c0_15 = arith.constant 0 : index
    %26 = vector.load %arg6[%c0_14, %c0_15] : memref<8x128xi32, #tpu.memory_space<vmem>>, vector<8x128xi32>
    %c0_i32_16 = arith.constant 0 : i32
    %27 = vector.broadcast %c0_i32_16 : i32 to vector<8x128xi32>
    %28 = arith.cmpi eq, %26, %27 : vector<8x128xi32>
    %cst_17 = arith.constant -1.000000e+30 : f32
    %29 = vector.broadcast %cst_17 : f32 to vector<8x128xf32>
    %30 = arith.select %28, %29, %25 : vector<8x128xi1>, vector<8x128xf32>
    %cst_18 = arith.constant dense<0xFF800000> : vector<8xf32>
    %31 = vector.multi_reduction <maximumf>, %30, %cst_18 [1] : vector<8x128xf32> to vector<8xf32>
    %32 = vector.shape_cast %31 : vector<8xf32> to vector<8x1xf32>
    %33 = vector.broadcast %32 : vector<8x1xf32> to vector<8x128xf32>
    %34 = arith.subf %30, %33 : vector<8x128xf32>
    %35 = math.exp %34 : vector<8x128xf32>
    %cst_19 = arith.constant dense<0.000000e+00> : vector<8xf32>
    %36 = vector.multi_reduction <add>, %35, %cst_19 [1] : vector<8x128xf32> to vector<8xf32>
    %37 = vector.shape_cast %36 : vector<8xf32> to vector<8x1xf32>
    %38 = vector.broadcast %37 : vector<8x1xf32> to vector<8x128xf32>
    %39 = arith.divf %35, %38 : vector<8x128xf32>
    %c0_20 = arith.constant 0 : index
    %c0_21 = arith.constant 0 : index
    %40 = vector.load %arg7[%c0_20, %c0_21] : memref<8x128xf32, #tpu.memory_space<vmem>>, vector<8x128xf32>
    tpu.vector_store %arg7[%c0_20, %c0_21], %39 {strides = array<i32>} : memref<8x128xf32, #tpu.memory_space<vmem>>, vector<8x128xf32>,
    return
  }
  func.func @transform_0(%arg0: i32) -> (i32, i32) {
    %c0_i32 = arith.constant 0 : i32
    %c0_i32_0 = arith.constant 0 : i32
    return %arg0, %c0_i32 : i32, i32
  }
  func.func @transform_1(%arg0: i32) -> (i32, i32) {
    %c0_i32 = arith.constant 0 : i32
    %c0_i32_0 = arith.constant 0 : i32
    %c0_i32_1 = arith.constant 0 : i32
    return %c0_i32, %c0_i32_0 : i32, i32
  }
  func.func @transform_2(%arg0: i32) -> (i32, i32) {
    %c0_i32 = arith.constant 0 : i32
    %c0_i32_0 = arith.constant 0 : i32
    %c0_i32_1 = arith.constant 0 : i32
    return %c0_i32, %c0_i32_0 : i32, i32
  }
  func.func @transform_3(%arg0: i32) -> (i32, i32) {
    %c0_i32 = arith.constant 0 : i32
    %c0_i32_0 = arith.constant 0 : i32
    %c0_i32_1 = arith.constant 0 : i32
    return %c0_i32, %c0_i32_0 : i32, i32
  }
  func.func @transform_4(%arg0: i32) -> (i32, i32) {
    %c0_i32 = arith.constant 0 : i32
    %c0_i32_0 = arith.constant 0 : i32
    return %arg0, %c0_i32 : i32, i32
  }
  func.func @transform_5(%arg0: i32) -> (i32, i32) {
    %c0_i32 = arith.constant 0 : i32
    %c0_i32_0 = arith.constant 0 : i32
    return %arg0, %c0_i32 : i32, i32
  }
  func.func @transform_6(%arg0: i32) -> (i32, i32) {
    %c0_i32 = arith.constant 0 : i32
    %c0_i32_0 = arith.constant 0 : i32
    return %arg0, %c0_i32 : i32, i32
  }
}

</mosaic_0001>

<llo_original>
// kernel: tpu_custom_call.1
$region0: #{tpu_custom_call.1}
  #allocation0 [shape = 'u32[]', space=smem, size = 0x4, offset = 0x4, fixed_abs, tag = 'smem constant byte address 0x4 - core index']
  #allocation1 [shape = 'u32[144,128]{1,0:T(1,128)}', space=vmem, size = 0x12000, scoped, tag = 'internal scratch']
  %s0 = inlined_call_operand.hbm [shape: bf16[8,32], index: 0, kind: input, shape index: {}]
  %s1 = inlined_call_operand.hbm [shape: bf16[32,32], index: 1, kind: input, shape index: {}]
  %s2 = inlined_call_operand.vmem [shape: f32[1,32], index: 2, kind: input, shape index: {}]
  %s3 = inlined_call_operand.hbm [shape: bf16[32,128], index: 3, kind: input, shape index: {}]
  %s4 = inlined_call_operand.hbm [shape: s32[8,128], index: 4, kind: input, shape index: {}]
  %s5 = inlined_call_operand.vmem [shape: s32[8,128], index: 5, kind: input, shape index: {}]
  %s6 = inlined_call_operand.hbm [shape: f32[8,128], index: 6, kind: output, shape index: {}]
  %s7 = sld [smem:[#allocation0]]
  $region50: #{tpu_custom_call.1} parent=0
    _
  %s9 = ssub.s32 1, %s7
  %s10 = scalar_select 0, %s9, %s7
  $region1: #{tpu_custom_call.1} parent=0
    #allocation2 [shape = 'u8[2048]{0}', space=vmem, size = 0x800, scoped, tag = 'input window, operand 0, single buffered']
    #allocation3 [shape = 's32[1]{0}', space=sflag, size = 0x4, scoped, tag = 'scoped memory for tpu_custom_call.1']
    #allocation4 [shape = 's32[1]{0}', space=sflag, size = 0x4, scoped, tag = 'scoped memory for tpu_custom_call.1']
    #allocation5 [shape = 'u8[8192]{0}', space=vmem, size = 0x2000, scoped, tag = 'input window, operand 1, single buffered']
    #allocation6 [shape = 's32[1]{0}', space=sflag, size = 0x4, scoped, tag = 'scoped memory for tpu_custom_call.1']
    #allocation7 [shape = 'u8[8192]{0}', space=vmem, size = 0x2000, scoped, tag = 'input window, operand 3, single buffered']
    #allocation8 [shape = 'u8[4096]{0}', space=vmem, size = 0x1000, scoped, tag = 'input window, operand 4, single buffered']
    #allocation9 [shape = 's32[1]{0}', space=sflag, size = 0x4, scoped, tag = 'scoped memory for tpu_custom_call.1']
    #allocation10 [shape = 'u8[4096]{0}', space=vmem, size = 0x1000, scoped, tag = 'output window, operand 0, single buffered']
    %11 = vsyncpa [#allocation3], 0
    %12 = vsyncpa [#allocation6], 0
    %13 = vsyncpa [#allocation9], 0
    %14 = vsyncpa [#allocation4], 0
    // Predicated region
    $region2: #{tpu_custom_call.1} parent=1 // pred_check
      _
    $region3: #{tpu_custom_call.1} parent=1 // pred_check_branch
      %16 = sbr.rel (0) target = $region5
    $region4: #{tpu_custom_call.1} parent=1 // pred_region
      %s18 = ssub.s32 64, 64
      %19 = vsyncadd [#allocation3], %s18
      %s21 = sshll.u32 [#allocation2], 4
      %s22 = int_to_ptr.vmem [resolvable:$true] %s21
      %24 = dma.hbm_to_vmem [thread:$0]  %s0, 64, %s22, [#allocation3]
    $region5: #{tpu_custom_call.1} parent=1 // pred_fallthru
      _
    // Predicated region
    $region6: #{tpu_custom_call.1} parent=1 // pred_check
      _
    $region7: #{tpu_custom_call.1} parent=1 // pred_check_branch
      %26 = sbr.rel (0) target = $region9
    $region8: #{tpu_custom_call.1} parent=1 // pred_region
      %s28 = ssub.s32 256, 256
      %29 = vsyncadd [#allocation6], %s28
      %s30 = sshll.u32 [#allocation5], 4
      %s31 = int_to_ptr.vmem [resolvable:$true] %s30
      %36 = dma.hbm_to_vmem [thread:$0]  %s1, 256, %s31, [#allocation6], 64, 64, 4
    $region9: #{tpu_custom_call.1} parent=1 // pred_fallthru
      _
    // Predicated region
    $region10: #{tpu_custom_call.1} parent=1 // pred_check
      _
    $region11: #{tpu_custom_call.1} parent=1 // pred_check_branch
      %38 = sbr.rel (0) target = $region13
    $region12: #{tpu_custom_call.1} parent=1 // pred_region
      _
    $region13: #{tpu_custom_call.1} parent=1 // pred_fallthru
      _
    // Predicated region
    $region14: #{tpu_custom_call.1} parent=1 // pred_check
      _
    $region15: #{tpu_custom_call.1} parent=1 // pred_check_branch
      %40 = sbr.rel (0) target = $region17
    $region16: #{tpu_custom_call.1} parent=1 // pred_region
      %s42 = ssub.s32 256, 256
      %43 = vsyncadd [#allocation6], %s42
      %s44 = sshll.u32 [#allocation7], 4
      %s45 = int_to_ptr.vmem [resolvable:$true] %s44
      %50 = dma.hbm_to_vmem [thread:$0]  %s3, 256, %s45, [#allocation6], 64, 64, 4
    $region17: #{tpu_custom_call.1} parent=1 // pred_fallthru
      _
    // Predicated region
    $region18: #{tpu_custom_call.1} parent=1 // pred_check
      _
    $region19: #{tpu_custom_call.1} parent=1 // pred_check_branch
      %52 = sbr.rel (0) target = $region21
    $region20: #{tpu_custom_call.1} parent=1 // pred_region
      %s54 = ssub.s32 128, 128
      %55 = vsyncadd [#allocation9], %s54
      %s57 = sshll.u32 [#allocation8], 4
      %s58 = int_to_ptr.vmem [resolvable:$true] %s57
      %60 = dma.hbm_to_vmem [thread:$0]  %s4, 128, %s58, [#allocation9]
    $region21: #{tpu_custom_call.1} parent=1 // pred_fallthru
      _
    // Predicated region
    $region22: #{tpu_custom_call.1} parent=1 // pred_check
      _
    $region23: #{tpu_custom_call.1} parent=1 // pred_check_branch
      %62 = sbr.rel (0) target = $region25
    $region24: #{tpu_custom_call.1} parent=1 // pred_region
      _
    $region25: #{tpu_custom_call.1} parent=1 // pred_fallthru
      _
    // Predicated region
    $region26: #{tpu_custom_call.1} parent=1 // pred_check
      _
    $region27: #{tpu_custom_call.1} parent=1 // pred_check_branch
      %64 = sbr.rel (0) target = $region29
    $region28: #{tpu_custom_call.1} parent=1 // pred_region
      %65 = dma.done [#allocation3], 64
    $region29: #{tpu_custom_call.1} parent=1 // pred_fallthru
      _
    // Predicated region
    $region30: #{tpu_custom_call.1} parent=1 // pred_check
      _
    $region31: #{tpu_custom_call.1} parent=1 // pred_check_branch
      %67 = sbr.rel (0) target = $region33
    $region32: #{tpu_custom_call.1} parent=1 // pred_region
      %68 = dma.done [#allocation6], 256
    $region33: #{tpu_custom_call.1} parent=1 // pred_fallthru
      _
    // Predicated region
    $region34: #{tpu_custom_call.1} parent=1 // pred_check
      _
    $region35: #{tpu_custom_call.1} parent=1 // pred_check_branch
      %70 = sbr.rel (0) target = $region37
    $region36: #{tpu_custom_call.1} parent=1 // pred_region
      %71 = dma.done [#allocation6], 256
    $region37: #{tpu_custom_call.1} parent=1 // pred_fallthru
      _
    // Predicated region
    $region38: #{tpu_custom_call.1} parent=1 // pred_check
      _
    $region39: #{tpu_custom_call.1} parent=1 // pred_check_branch
      %73 = sbr.rel (0) target = $region41
    $region40: #{tpu_custom_call.1} parent=1 // pred_region
      %74 = dma.done [#allocation9], 128
    $region41: #{tpu_custom_call.1} parent=1 // pred_fallthru
      _
    %v76 = vld [vmem:[#allocation2] sm:$0xf]
    %v77 = vld [vmem:[#allocation5] sm:$0xf]
    %v78 = vld [vmem:[#allocation5 + $0x4] sm:$0xf]
    %v79 = vld [vmem:[#allocation5 + $0x8] sm:$0xf]
    %v80 = vld [vmem:[#allocation5 + $0xc] sm:$0xf]
    %v81 = vld [vmem:[%s2] sm:$0x1]
    %v83 = vlaneseq
    %v84 = vshrl.u32 %v83, 7
    %v85 = vsub.s32 0, %v84
    %v86 = vrot.slane %v81, %v85
    %v92 = vunpack.c.l.b16 %v77
    %v93 = vunpack.c.l.b16 %v78
    %v94 = vunpack.c.l.b16 %v79
    %v95 = vunpack.c.l.b16 %v80
    %v96 = vpack.c.b16 %v93, %v92
    %v97 = vpack.c.b16 %v95, %v94
    %vm100 = vcmask 261120
    %v102 = vsel %vm100, %v76, 0
    %104 = vmatprep.subr.bf16.mxu0 0
    %105 = vmatpush1.bf16.msra.mxu0 0
    %106 = vmatprep.subr.bf16.mxu0 0
    %107 = vmatpush1.bf16.msra.mxu0 0
    %108 = vmatprep.subr.bf16.mxu0 0
    %109 = vmatpush1.bf16.msra.mxu0 0
    %110 = vmatprep.subr.bf16.mxu0 0
    %111 = vmatpush1.bf16.msra.mxu0 0
    %112 = vmatprep.subr.bf16.mxu0 0
    %113 = vmatpush1.bf16.msra.mxu0 0
    %114 = vmatprep.subr.bf16.mxu0 0
    %115 = vmatpush1.bf16.msra.mxu0 0
    %116 = vmatprep.subr.bf16.mxu0 0
    %117 = vmatpush1.bf16.msra.mxu0 %v97
    %118 = vmatprep.subr.bf16.mxu0 0
    %119 = vmatpush1.bf16.msra.mxu0 %v96
    %120 = vmatprep.subr.bf16.mxu0 0
    %121 = vmatpush2.bf16.msra.mxu0 0
    %122 = vmatprep.subr.bf16.mxu0 0
    %123 = vmatpush2.bf16.msra.mxu0 0
    %124 = vmatprep.subr.bf16.mxu0 0
    %125 = vmatpush2.bf16.msra.mxu0 0
    %126 = vmatprep.subr.bf16.mxu0 0
    %127 = vmatpush2.bf16.msra.mxu0 0
    %128 = vmatprep.subr.bf16.mxu0 0
    %129 = vmatpush2.bf16.msra.mxu0 0
    %130 = vmatprep.subr.bf16.mxu0 0
    %131 = vmatpush2.bf16.msra.mxu0 0
    %132 = vmatprep.subr.bf16.mxu0 0
    %133 = vmatpush2.bf16.msra.mxu0 0
    %134 = vmatprep.subr.bf16.mxu0 0
    %135 = vmatpush2.bf16.msra.mxu0 0
    %136 = vmatprep.mubr.bf16.mxu0 0
    %137 = vmatmul.mubr.bf16.gmra.mxu0 %v102
    %v138 = vpop.f32.mrf.mxu0
    %v139 = vadd.f32 %v86, %v138
    %v140 = vpop.f32.mrf.mxu0
    %v141 = vpop.f32.mrf.mxu0
    %v142 = vpop.f32.mrf.mxu0
    %143 = vdwg.mxu0
    %v144 = vmax.f32 %v139, 0.0
    %v145 = vpack.c.bf16 %v144, %v144
    %v146 = vld [vmem:[#allocation7] sm:$0xf]
    %v147 = vld [vmem:[#allocation7 + $0x4] sm:$0xf]
    %v148 = vld [vmem:[#allocation7 + $0x8] sm:$0xf]
    %v149 = vld [vmem:[#allocation7 + $0xc] sm:$0xf]
    %v154 = vunpack.c.l.b16 %v146
    %v155 = vunpack.c.l.b16 %v147
    %v156 = vunpack.c.l.b16 %v148
    %v157 = vunpack.c.l.b16 %v149
    %v158 = vpack.c.b16 %v155, %v154
    %v159 = vpack.c.b16 %v157, %v156
    %v163 = vsel %vm100, %v145, 0
    %165 = vmatprep.subr.bf16.mxu0 0
    %166 = vmatpush1.bf16.msra.mxu0 0
    %167 = vmatprep.subr.bf16.mxu0 0
    %168 = vmatpush1.bf16.msra.mxu0 0
    %169 = vmatprep.subr.bf16.mxu0 0
    %170 = vmatpush1.bf16.msra.mxu0 0
    %171 = vmatprep.subr.bf16.mxu0 0
    %172 = vmatpush1.bf16.msra.mxu0 0
    %173 = vmatprep.subr.bf16.mxu0 0
    %174 = vmatpush1.bf16.msra.mxu0 0
    %175 = vmatprep.subr.bf16.mxu0 0
    %176 = vmatpush1.bf16.msra.mxu0 0
    %177 = vmatprep.subr.bf16.mxu0 0
    %178 = vmatpush1.bf16.msra.mxu0 %v159
    %179 = vmatprep.subr.bf16.mxu0 0
    %180 = vmatpush1.bf16.msra.mxu0 %v158
    %181 = vmatprep.subr.bf16.mxu0 0
    %182 = vmatpush2.bf16.msra.mxu0 0
    %183 = vmatprep.subr.bf16.mxu0 0
    %184 = vmatpush2.bf16.msra.mxu0 0
    %185 = vmatprep.subr.bf16.mxu0 0
    %186 = vmatpush2.bf16.msra.mxu0 0
    %187 = vmatprep.subr.bf16.mxu0 0
    %188 = vmatpush2.bf16.msra.mxu0 0
    %189 = vmatprep.subr.bf16.mxu0 0
    %190 = vmatpush2.bf16.msra.mxu0 0
    %191 = vmatprep.subr.bf16.mxu0 0
    %192 = vmatpush2.bf16.msra.mxu0 0
    %193 = vmatprep.subr.bf16.mxu0 0
    %194 = vmatpush2.bf16.msra.mxu0 0
    %195 = vmatprep.subr.bf16.mxu0 0
    %196 = vmatpush2.bf16.msra.mxu0 0
    %197 = vmatprep.mubr.bf16.mxu0 0
    %198 = vmatmul.mubr.bf16.gmra.mxu0 %v163
    %v199 = vpop.f32.mrf.mxu0
    %v200 = vadd.f32 0.0, %v199
    %v201 = vpop.f32.mrf.mxu0
    %v202 = vpop.f32.mrf.mxu0
    %v203 = vpop.f32.mrf.mxu0
    %204 = vdwg.mxu0
    %v205 = vld [vmem:[#allocation8] sm:$0xff]
    %v206 = vlaneseq
    %v207 = vshrl.u32 %v206, 7
    %v208 = vsub.s32 0, %v207
    %v209 = vrot.slane %v205, %v208
    %211 = vbcast.lane.b32.xlu0 %v209, 256
    %v212 = vpop.permute.xlu0 %211
    %s214 = sor.u32 256, 8
    %215 = vbcast.lane.b32.xlu0 %v209, %s214
    %v216 = vpop.permute.xlu0 %215
    %s218 = sor.u32 256, 16
    %219 = vbcast.lane.b32.xlu0 %v209, %s218
    %v220 = vpop.permute.xlu0 %219
    %s222 = sor.u32 256, 24
    %223 = vbcast.lane.b32.xlu0 %v209, %s222
    %v224 = vpop.permute.xlu0 %223
    %s226 = sor.u32 256, 32
    %227 = vbcast.lane.b32.xlu0 %v209, %s226
    %v228 = vpop.permute.xlu0 %227
    %s230 = sor.u32 256, 40
    %231 = vbcast.lane.b32.xlu0 %v209, %s230
    %v232 = vpop.permute.xlu0 %231
    %s234 = sor.u32 256, 48
    %235 = vbcast.lane.b32.xlu0 %v209, %s234
    %v236 = vpop.permute.xlu0 %235
    %s238 = sor.u32 256, 56
    %239 = vbcast.lane.b32.xlu0 %v209, %s238
    %v240 = vpop.permute.xlu0 %239
    %s242 = sor.u32 256, 64
    %243 = vbcast.lane.b32.xlu0 %v209, %s242
    %v244 = vpop.permute.xlu0 %243
    %s246 = sor.u32 256, 72
    %247 = vbcast.lane.b32.xlu0 %v209, %s246
    %v248 = vpop.permute.xlu0 %247
    %s250 = sor.u32 256, 80
    %251 = vbcast.lane.b32.xlu0 %v209, %s250
    %v252 = vpop.permute.xlu0 %251
    %s254 = sor.u32 256, 88
    %255 = vbcast.lane.b32.xlu0 %v209, %s254
    %v256 = vpop.permute.xlu0 %255
    %s258 = sor.u32 256, 96
    %259 = vbcast.lane.b32.xlu0 %v209, %s258
    %v260 = vpop.permute.xlu0 %259
    %s262 = sor.u32 256, 104
    %263 = vbcast.lane.b32.xlu0 %v209, %s262
    %v264 = vpop.permute.xlu0 %263
    %s266 = sor.u32 256, 112
    %267 = vbcast.lane.b32.xlu0 %v209, %s266
    %v268 = vpop.permute.xlu0 %267
    %s270 = sor.u32 256, 120
    %271 = vbcast.lane.b32.xlu0 %v209, %s270
    %v272 = vpop.permute.xlu0 %271
    %v273 = vlaneseq
    %v274 = vshrl.u32 %v273, 7
    %v275 = vsub.s32 1, %v274
    %v276 = vrot.slane %v205, %v275
    %278 = vbcast.lane.b32.xlu0 %v276, 256
    %v279 = vpop.permute.xlu0 %278
    %s281 = sor.u32 256, 8
    %282 = vbcast.lane.b32.xlu0 %v276, %s281
    %v283 = vpop.permute.xlu0 %282
    %s285 = sor.u32 256, 16
    %286 = vbcast.lane.b32.xlu0 %v276, %s285
    %v287 = vpop.permute.xlu0 %286
    %s289 = sor.u32 256, 24
    %290 = vbcast.lane.b32.xlu0 %v276, %s289
    %v291 = vpop.permute.xlu0 %290
    %s293 = sor.u32 256, 32
    %294 = vbcast.lane.b32.xlu0 %v276, %s293
    %v295 = vpop.permute.xlu0 %294
    %s297 = sor.u32 256, 40
    %298 = vbcast.lane.b32.xlu0 %v276, %s297
    %v299 = vpop.permute.xlu0 %298
    %s301 = sor.u32 256, 48
    %302 = vbcast.lane.b32.xlu0 %v276, %s301
    %v303 = vpop.permute.xlu0 %302
    %s305 = sor.u32 256, 56
    %306 = vbcast.lane.b32.xlu0 %v276, %s305
    %v307 = vpop.permute.xlu0 %306
    %s309 = sor.u32 256, 64
    %310 = vbcast.lane.b32.xlu0 %v276, %s309
    %v311 = vpop.permute.xlu0 %310
    %s313 = sor.u32 256, 72
    %314 = vbcast.lane.b32.xlu0 %v276, %s313
    %v315 = vpop.permute.xlu0 %314
    %s317 = sor.u32 256, 80
    %318 = vbcast.lane.b32.xlu0 %v276, %s317
    %v319 = vpop.permute.xlu0 %318
    %s321 = sor.u32 256, 88
    %322 = vbcast.lane.b32.xlu0 %v276, %s321
    %v323 = vpop.permute.xlu0 %322
    %s325 = sor.u32 256, 96
    %326 = vbcast.lane.b32.xlu0 %v276, %s325
    %v327 = vpop.permute.xlu0 %326
    %s329 = sor.u32 256, 104
    %330 = vbcast.lane.b32.xlu0 %v276, %s329
    %v331 = vpop.permute.xlu0 %330
    %s333 = sor.u32 256, 112
    %334 = vbcast.lane.b32.xlu0 %v276, %s333
    %v335 = vpop.permute.xlu0 %334
    %s337 = sor.u32 256, 120
    %338 = vbcast.lane.b32.xlu0 %v276, %s337
    %v339 = vpop.permute.xlu0 %338
    %v340 = vlaneseq
    %v341 = vshrl.u32 %v340, 7
    %v342 = vsub.s32 2, %v341
    %v343 = vrot.slane %v205, %v342
    %345 = vbcast.lane.b32.xlu0 %v343, 256
    %v346 = vpop.permute.xlu0 %345
    %s348 = sor.u32 256, 8
    %349 = vbcast.lane.b32.xlu0 %v343, %s348
    %v350 = vpop.permute.xlu0 %349
    %s352 = sor.u32 256, 16
    %353 = vbcast.lane.b32.xlu0 %v343, %s352
    %v354 = vpop.permute.xlu0 %353
    %s356 = sor.u32 256, 24
    %357 = vbcast.lane.b32.xlu0 %v343, %s356
    %v358 = vpop.permute.xlu0 %357
    %s360 = sor.u32 256, 32
    %361 = vbcast.lane.b32.xlu0 %v343, %s360
    %v362 = vpop.permute.xlu0 %361
    %s364 = sor.u32 256, 40
    %365 = vbcast.lane.b32.xlu0 %v343, %s364
    %v366 = vpop.permute.xlu0 %365
    %s368 = sor.u32 256, 48
    %369 = vbcast.lane.b32.xlu0 %v343, %s368
    %v370 = vpop.permute.xlu0 %369
    %s372 = sor.u32 256, 56
    %373 = vbcast.lane.b32.xlu0 %v343, %s372
    %v374 = vpop.permute.xlu0 %373
    %s376 = sor.u32 256, 64
    %377 = vbcast.lane.b32.xlu0 %v343, %s376
    %v378 = vpop.permute.xlu0 %377
    %s380 = sor.u32 256, 72
    %381 = vbcast.lane.b32.xlu0 %v343, %s380
    %v382 = vpop.permute.xlu0 %381
    %s384 = sor.u32 256, 80
    %385 = vbcast.lane.b32.xlu0 %v343, %s384
    %v386 = vpop.permute.xlu0 %385
    %s388 = sor.u32 256, 88
    %389 = vbcast.lane.b32.xlu0 %v343, %s388
    %v390 = vpop.permute.xlu0 %389
    %s392 = sor.u32 256, 96
    %393 = vbcast.lane.b32.xlu0 %v343, %s392
    %v394 = vpop.permute.xlu0 %393
    %s396 = sor.u32 256, 104
    %397 = vbcast.lane.b32.xlu0 %v343, %s396
    %v398 = vpop.permute.xlu0 %397
    %s400 = sor.u32 256, 112
    %401 = vbcast.lane.b32.xlu0 %v343, %s400
    %v402 = vpop.permute.xlu0 %401
    %s404 = sor.u32 256, 120
    %405 = vbcast.lane.b32.xlu0 %v343, %s404
    %v406 = vpop.permute.xlu0 %405
    %v407 = vlaneseq
    %v408 = vshrl.u32 %v407, 7
    %v409 = vsub.s32 3, %v408
    %v410 = vrot.slane %v205, %v409
    %412 = vbcast.lane.b32.xlu0 %v410, 256
    %v413 = vpop.permute.xlu0 %412
    %s415 = sor.u32 256, 8
    %416 = vbcast.lane.b32.xlu0 %v410, %s415
    %v417 = vpop.permute.xlu0 %416
    %s419 = sor.u32 256, 16
    %420 = vbcast.lane.b32.xlu0 %v410, %s419
    %v421 = vpop.permute.xlu0 %420
    %s423 = sor.u32 256, 24
    %424 = vbcast.lane.b32.xlu0 %v410, %s423
    %v425 = vpop.permute.xlu0 %424
    %s427 = sor.u32 256, 32
    %428 = vbcast.lane.b32.xlu0 %v410, %s427
    %v429 = vpop.permute.xlu0 %428
    %s431 = sor.u32 256, 40
    %432 = vbcast.lane.b32.xlu0 %v410, %s431
    %v433 = vpop.permute.xlu0 %432
    %s435 = sor.u32 256, 48
    %436 = vbcast.lane.b32.xlu0 %v410, %s435
    %v437 = vpop.permute.xlu0 %436
    %s439 = sor.u32 256, 56
    %440 = vbcast.lane.b32.xlu0 %v410, %s439
    %v441 = vpop.permute.xlu0 %440
    %s443 = sor.u32 256, 64
    %444 = vbcast.lane.b32.xlu0 %v410, %s443
    %v445 = vpop.permute.xlu0 %444
    %s447 = sor.u32 256, 72
    %448 = vbcast.lane.b32.xlu0 %v410, %s447
    %v449 = vpop.permute.xlu0 %448
    %s451 = sor.u32 256, 80
    %452 = vbcast.lane.b32.xlu0 %v410, %s451
    %v453 = vpop.permute.xlu0 %452
    %s455 = sor.u32 256, 88
    %456 = vbcast.lane.b32.xlu0 %v410, %s455
    %v457 = vpop.permute.xlu0 %456
    %s459 = sor.u32 256, 96
    %460 = vbcast.lane.b32.xlu0 %v410, %s459
    %v461 = vpop.permute.xlu0 %460
    %s463 = sor.u32 256, 104
    %464 = vbcast.lane.b32.xlu0 %v410, %s463
    %v465 = vpop.permute.xlu0 %464
    %s467 = sor.u32 256, 112
    %468 = vbcast.lane.b32.xlu0 %v410, %s467
    %v469 = vpop.permute.xlu0 %468
    %s471 = sor.u32 256, 120
    %472 = vbcast.lane.b32.xlu0 %v410, %s471
    %v473 = vpop.permute.xlu0 %472
    %v474 = vlaneseq
    %v475 = vshrl.u32 %v474, 7
    %v476 = vsub.s32 4, %v475
    %v477 = vrot.slane %v205, %v476
    %479 = vbcast.lane.b32.xlu0 %v477, 256
    %v480 = vpop.permute.xlu0 %479
    %s482 = sor.u32 256, 8
    %483 = vbcast.lane.b32.xlu0 %v477, %s482
    %v484 = vpop.permute.xlu0 %483
    %s486 = sor.u32 256, 16
    %487 = vbcast.lane.b32.xlu0 %v477, %s486
    %v488 = vpop.permute.xlu0 %487
    %s490 = sor.u32 256, 24
    %491 = vbcast.lane.b32.xlu0 %v477, %s490
    %v492 = vpop.permute.xlu0 %491
    %s494 = sor.u32 256, 32
    %495 = vbcast.lane.b32.xlu0 %v477, %s494
    %v496 = vpop.permute.xlu0 %495
    %s498 = sor.u32 256, 40
    %499 = vbcast.lane.b32.xlu0 %v477, %s498
    %v500 = vpop.permute.xlu0 %499
    %s502 = sor.u32 256, 48
    %503 = vbcast.lane.b32.xlu0 %v477, %s502
    %v504 = vpop.permute.xlu0 %503
    %s506 = sor.u32 256, 56
    %507 = vbcast.lane.b32.xlu0 %v477, %s506
    %v508 = vpop.permute.xlu0 %507
    %s510 = sor.u32 256, 64
    %511 = vbcast.lane.b32.xlu0 %v477, %s510
    %v512 = vpop.permute.xlu0 %511
    %s514 = sor.u32 256, 72
    %515 = vbcast.lane.b32.xlu0 %v477, %s514
    %v516 = vpop.permute.xlu0 %515
    %s518 = sor.u32 256, 80
    %519 = vbcast.lane.b32.xlu0 %v477, %s518
    %v520 = vpop.permute.xlu0 %519
    %s522 = sor.u32 256, 88
    %523 = vbcast.lane.b32.xlu0 %v477, %s522
    %v524 = vpop.permute.xlu0 %523
    %s526 = sor.u32 256, 96
    %527 = vbcast.lane.b32.xlu0 %v477, %s526
    %v528 = vpop.permute.xlu0 %527
    %s530 = sor.u32 256, 104
    %531 = vbcast.lane.b32.xlu0 %v477, %s530
    %v532 = vpop.permute.xlu0 %531
    %s534 = sor.u32 256, 112
    %535 = vbcast.lane.b32.xlu0 %v477, %s534
    %v536 = vpop.permute.xlu0 %535
    %s538 = sor.u32 256, 120
    %539 = vbcast.lane.b32.xlu0 %v477, %s538
    %v540 = vpop.permute.xlu0 %539
    %v541 = vlaneseq
    %v542 = vshrl.u32 %v541, 7
    %v543 = vsub.s32 5, %v542
    %v544 = vrot.slane %v205, %v543
    %546 = vbcast.lane.b32.xlu0 %v544, 256
    %v547 = vpop.permute.xlu0 %546
    %s549 = sor.u32 256, 8
    %550 = vbcast.lane.b32.xlu0 %v544, %s549
    %v551 = vpop.permute.xlu0 %550
    %s553 = sor.u32 256, 16
    %554 = vbcast.lane.b32.xlu0 %v544, %s553
    %v555 = vpop.permute.xlu0 %554
    %s557 = sor.u32 256, 24
    %558 = vbcast.lane.b32.xlu0 %v544, %s557
    %v559 = vpop.permute.xlu0 %558
    %s561 = sor.u32 256, 32
    %562 = vbcast.lane.b32.xlu0 %v544, %s561
    %v563 = vpop.permute.xlu0 %562
    %s565 = sor.u32 256, 40
    %566 = vbcast.lane.b32.xlu0 %v544, %s565
    %v567 = vpop.permute.xlu0 %566
    %s569 = sor.u32 256, 48
    %570 = vbcast.lane.b32.xlu0 %v544, %s569
    %v571 = vpop.permute.xlu0 %570
    %s573 = sor.u32 256, 56
    %574 = vbcast.lane.b32.xlu0 %v544, %s573
    %v575 = vpop.permute.xlu0 %574
    %s577 = sor.u32 256, 64
    %578 = vbcast.lane.b32.xlu0 %v544, %s577
    %v579 = vpop.permute.xlu0 %578
    %s581 = sor.u32 256, 72
    %582 = vbcast.lane.b32.xlu0 %v544, %s581
    %v583 = vpop.permute.xlu0 %582
    %s585 = sor.u32 256, 80
    %586 = vbcast.lane.b32.xlu0 %v544, %s585
    %v587 = vpop.permute.xlu0 %586
    %s589 = sor.u32 256, 88
    %590 = vbcast.lane.b32.xlu0 %v544, %s589
    %v591 = vpop.permute.xlu0 %590
    %s593 = sor.u32 256, 96
    %594 = vbcast.lane.b32.xlu0 %v544, %s593
    %v595 = vpop.permute.xlu0 %594
    %s597 = sor.u32 256, 104
    %598 = vbcast.lane.b32.xlu0 %v544, %s597
    %v599 = vpop.permute.xlu0 %598
    %s601 = sor.u32 256, 112
    %602 = vbcast.lane.b32.xlu0 %v544, %s601
    %v603 = vpop.permute.xlu0 %602
    %s605 = sor.u32 256, 120
    %606 = vbcast.lane.b32.xlu0 %v544, %s605
    %v607 = vpop.permute.xlu0 %606
    %v608 = vlaneseq
    %v609 = vshrl.u32 %v608, 7
    %v610 = vsub.s32 6, %v609
    %v611 = vrot.slane %v205, %v610
    %613 = vbcast.lane.b32.xlu0 %v611, 256
    %v614 = vpop.permute.xlu0 %613
    %s616 = sor.u32 256, 8
    %617 = vbcast.lane.b32.xlu0 %v611, %s616
    %v618 = vpop.permute.xlu0 %617
    %s620 = sor.u32 256, 16
    %621 = vbcast.lane.b32.xlu0 %v611, %s620
    %v622 = vpop.permute.xlu0 %621
    %s624 = sor.u32 256, 24
    %625 = vbcast.lane.b32.xlu0 %v611, %s624
    %v626 = vpop.permute.xlu0 %625
    %s628 = sor.u32 256, 32
    %629 = vbcast.lane.b32.xlu0 %v611, %s628
    %v630 = vpop.permute.xlu0 %629
    %s632 = sor.u32 256, 40
    %633 = vbcast.lane.b32.xlu0 %v611, %s632
    %v634 = vpop.permute.xlu0 %633
    %s636 = sor.u32 256, 48
    %637 = vbcast.lane.b32.xlu0 %v611, %s636
    %v638 = vpop.permute.xlu0 %637
    %s640 = sor.u32 256, 56
    %641 = vbcast.lane.b32.xlu0 %v611, %s640
    %v642 = vpop.permute.xlu0 %641
    %s644 = sor.u32 256, 64
    %645 = vbcast.lane.b32.xlu0 %v611, %s644
    %v646 = vpop.permute.xlu0 %645
    %s648 = sor.u32 256, 72
    %649 = vbcast.lane.b32.xlu0 %v611, %s648
    %v650 = vpop.permute.xlu0 %649
    %s652 = sor.u32 256, 80
    %653 = vbcast.lane.b32.xlu0 %v611, %s652
    %v654 = vpop.permute.xlu0 %653
    %s656 = sor.u32 256, 88
    %657 = vbcast.lane.b32.xlu0 %v611, %s656
    %v658 = vpop.permute.xlu0 %657
    %s660 = sor.u32 256, 96
    %661 = vbcast.lane.b32.xlu0 %v611, %s660
    %v662 = vpop.permute.xlu0 %661
    %s664 = sor.u32 256, 104
    %665 = vbcast.lane.b32.xlu0 %v611, %s664
    %v666 = vpop.permute.xlu0 %665
    %s668 = sor.u32 256, 112
    %669 = vbcast.lane.b32.xlu0 %v611, %s668
    %v670 = vpop.permute.xlu0 %669
    %s672 = sor.u32 256, 120
    %673 = vbcast.lane.b32.xlu0 %v611, %s672
    %v674 = vpop.permute.xlu0 %673
    %v675 = vlaneseq
    %v676 = vshrl.u32 %v675, 7
    %v677 = vsub.s32 7, %v676
    %v678 = vrot.slane %v205, %v677
    %680 = vbcast.lane.b32.xlu0 %v678, 256
    %v681 = vpop.permute.xlu0 %680
    %s683 = sor.u32 256, 8
    %684 = vbcast.lane.b32.xlu0 %v678, %s683
    %v685 = vpop.permute.xlu0 %684
    %s687 = sor.u32 256, 16
    %688 = vbcast.lane.b32.xlu0 %v678, %s687
    %v689 = vpop.permute.xlu0 %688
    %s691 = sor.u32 256, 24
    %692 = vbcast.lane.b32.xlu0 %v678, %s691
    %v693 = vpop.permute.xlu0 %692
    %s695 = sor.u32 256, 32
    %696 = vbcast.lane.b32.xlu0 %v678, %s695
    %v697 = vpop.permute.xlu0 %696
    %s699 = sor.u32 256, 40
    %700 = vbcast.lane.b32.xlu0 %v678, %s699
    %v701 = vpop.permute.xlu0 %700
    %s703 = sor.u32 256, 48
    %704 = vbcast.lane.b32.xlu0 %v678, %s703
    %v705 = vpop.permute.xlu0 %704
    %s707 = sor.u32 256, 56
    %708 = vbcast.lane.b32.xlu0 %v678, %s707
    %v709 = vpop.permute.xlu0 %708
    %s711 = sor.u32 256, 64
    %712 = vbcast.lane.b32.xlu0 %v678, %s711
    %v713 = vpop.permute.xlu0 %712
    %s715 = sor.u32 256, 72
    %716 = vbcast.lane.b32.xlu0 %v678, %s715
    %v717 = vpop.permute.xlu0 %716
    %s719 = sor.u32 256, 80
    %720 = vbcast.lane.b32.xlu0 %v678, %s719
    %v721 = vpop.permute.xlu0 %720
    %s723 = sor.u32 256, 88
    %724 = vbcast.lane.b32.xlu0 %v678, %s723
    %v725 = vpop.permute.xlu0 %724
    %s727 = sor.u32 256, 96
    %728 = vbcast.lane.b32.xlu0 %v678, %s727
    %v729 = vpop.permute.xlu0 %728
    %s731 = sor.u32 256, 104
    %732 = vbcast.lane.b32.xlu0 %v678, %s731
    %v733 = vpop.permute.xlu0 %732
    %s735 = sor.u32 256, 112
    %736 = vbcast.lane.b32.xlu0 %v678, %s735
    %v737 = vpop.permute.xlu0 %736
    %s739 = sor.u32 256, 120
    %740 = vbcast.lane.b32.xlu0 %v678, %s739
    %v741 = vpop.permute.xlu0 %740
    %v742 = vlaneseq
    %v743 = vand.u32 %v742, 127
    %vm744 = vcmp.eq.s32.totalorder %v743, %v212
    %vm745 = vcmp.eq.s32.totalorder %v743, %v216
    %vm746 = vcmp.eq.s32.totalorder %v743, %v220
    %vm747 = vcmp.eq.s32.totalorder %v743, %v224
    %vm748 = vcmp.eq.s32.totalorder %v743, %v228
    %vm749 = vcmp.eq.s32.totalorder %v743, %v232
    %vm750 = vcmp.eq.s32.totalorder %v743, %v236
    %vm751 = vcmp.eq.s32.totalorder %v743, %v240
    %vm752 = vcmp.eq.s32.totalorder %v743, %v244
    %vm753 = vcmp.eq.s32.totalorder %v743, %v248
    %vm754 = vcmp.eq.s32.totalorder %v743, %v252
    %vm755 = vcmp.eq.s32.totalorder %v743, %v256
    %vm756 = vcmp.eq.s32.totalorder %v743, %v260
    %vm757 = vcmp.eq.s32.totalorder %v743, %v264
    %vm758 = vcmp.eq.s32.totalorder %v743, %v268
    %vm759 = vcmp.eq.s32.totalorder %v743, %v272
    %vm760 = vcmp.eq.s32.totalorder %v743, %v279
    %vm761 = vcmp.eq.s32.totalorder %v743, %v283
    %vm762 = vcmp.eq.s32.totalorder %v743, %v287
    %vm763 = vcmp.eq.s32.totalorder %v743, %v291
    %vm764 = vcmp.eq.s32.totalorder %v743, %v295
    %vm765 = vcmp.eq.s32.totalorder %v743, %v299
    %vm766 = vcmp.eq.s32.totalorder %v743, %v303
    %vm767 = vcmp.eq.s32.totalorder %v743, %v307
    %vm768 = vcmp.eq.s32.totalorder %v743, %v311
    %vm769 = vcmp.eq.s32.totalorder %v743, %v315
    %vm770 = vcmp.eq.s32.totalorder %v743, %v319
    %vm771 = vcmp.eq.s32.totalorder %v743, %v323
    %vm772 = vcmp.eq.s32.totalorder %v743, %v327
    %vm773 = vcmp.eq.s32.totalorder %v743, %v331
    %vm774 = vcmp.eq.s32.totalorder %v743, %v335
    %vm775 = vcmp.eq.s32.totalorder %v743, %v339
    %vm776 = vcmp.eq.s32.totalorder %v743, %v346
    %vm777 = vcmp.eq.s32.totalorder %v743, %v350
    %vm778 = vcmp.eq.s32.totalorder %v743, %v354
    %vm779 = vcmp.eq.s32.totalorder %v743, %v358
    %vm780 = vcmp.eq.s32.totalorder %v743, %v362
    %vm781 = vcmp.eq.s32.totalorder %v743, %v366
    %vm782 = vcmp.eq.s32.totalorder %v743, %v370
    %vm783 = vcmp.eq.s32.totalorder %v743, %v374
    %vm784 = vcmp.eq.s32.totalorder %v743, %v378
    %vm785 = vcmp.eq.s32.totalorder %v743, %v382
    %vm786 = vcmp.eq.s32.totalorder %v743, %v386
    %vm787 = vcmp.eq.s32.totalorder %v743, %v390
    %vm788 = vcmp.eq.s32.totalorder %v743, %v394
    %vm789 = vcmp.eq.s32.totalorder %v743, %v398
    %vm790 = vcmp.eq.s32.totalorder %v743, %v402
    %vm791 = vcmp.eq.s32.totalorder %v743, %v406
    %vm792 = vcmp.eq.s32.totalorder %v743, %v413
    %vm793 = vcmp.eq.s32.totalorder %v743, %v417
    %vm794 = vcmp.eq.s32.totalorder %v743, %v421
    %vm795 = vcmp.eq.s32.totalorder %v743, %v425
    %vm796 = vcmp.eq.s32.totalorder %v743, %v429
    %vm797 = vcmp.eq.s32.totalorder %v743, %v433
    %vm798 = vcmp.eq.s32.totalorder %v743, %v437
    %vm799 = vcmp.eq.s32.totalorder %v743, %v441
    %vm800 = vcmp.eq.s32.totalorder %v743, %v445
    %vm801 = vcmp.eq.s32.totalorder %v743, %v449
    %vm802 = vcmp.eq.s32.totalorder %v743, %v453
    %vm803 = vcmp.eq.s32.totalorder %v743, %v457
    %vm804 = vcmp.eq.s32.totalorder %v743, %v461
    %vm805 = vcmp.eq.s32.totalorder %v743, %v465
    %vm806 = vcmp.eq.s32.totalorder %v743, %v469
    %vm807 = vcmp.eq.s32.totalorder %v743, %v473
    %vm808 = vcmp.eq.s32.totalorder %v743, %v480
    %vm809 = vcmp.eq.s32.totalorder %v743, %v484
    %vm810 = vcmp.eq.s32.totalorder %v743, %v488
    %vm811 = vcmp.eq.s32.totalorder %v743, %v492
    %vm812 = vcmp.eq.s32.totalorder %v743, %v496
    %vm813 = vcmp.eq.s32.totalorder %v743, %v500
    %vm814 = vcmp.eq.s32.totalorder %v743, %v504
    %vm815 = vcmp.eq.s32.totalorder %v743, %v508
    %vm816 = vcmp.eq.s32.totalorder %v743, %v512
    %vm817 = vcmp.eq.s32.totalorder %v743, %v516
    %vm818 = vcmp.eq.s32.totalorder %v743, %v520
    %vm819 = vcmp.eq.s32.totalorder %v743, %v524
    %vm820 = vcmp.eq.s32.totalorder %v743, %v528
    %vm821 = vcmp.eq.s32.totalorder %v743, %v532
    %vm822 = vcmp.eq.s32.totalorder %v743, %v536
    %vm823 = vcmp.eq.s32.totalorder %v743, %v540
    %vm824 = vcmp.eq.s32.totalorder %v743, %v547
    %vm825 = vcmp.eq.s32.totalorder %v743, %v551
    %vm826 = vcmp.eq.s32.totalorder %v743, %v555
    %vm827 = vcmp.eq.s32.totalorder %v743, %v559
    %vm828 = vcmp.eq.s32.totalorder %v743, %v563
    %vm829 = vcmp.eq.s32.totalorder %v743, %v567
    %vm830 = vcmp.eq.s32.totalorder %v743, %v571
    %vm831 = vcmp.eq.s32.totalorder %v743, %v575
    %vm832 = vcmp.eq.s32.totalorder %v743, %v579
    %vm833 = vcmp.eq.s32.totalorder %v743, %v583
    %vm834 = vcmp.eq.s32.totalorder %v743, %v587
    %vm835 = vcmp.eq.s32.totalorder %v743, %v591
    %vm836 = vcmp.eq.s32.totalorder %v743, %v595
    %vm837 = vcmp.eq.s32.totalorder %v743, %v599
    %vm838 = vcmp.eq.s32.totalorder %v743, %v603
    %vm839 = vcmp.eq.s32.totalorder %v743, %v607
    %vm840 = vcmp.eq.s32.totalorder %v743, %v614
    %vm841 = vcmp.eq.s32.totalorder %v743, %v618
    %vm842 = vcmp.eq.s32.totalorder %v743, %v622
    %vm843 = vcmp.eq.s32.totalorder %v743, %v626
    %vm844 = vcmp.eq.s32.totalorder %v743, %v630
    %vm845 = vcmp.eq.s32.totalorder %v743, %v634
    %vm846 = vcmp.eq.s32.totalorder %v743, %v638
    %vm847 = vcmp.eq.s32.totalorder %v743, %v642
    %vm848 = vcmp.eq.s32.totalorder %v743, %v646
    %vm849 = vcmp.eq.s32.totalorder %v743, %v650
    %vm850 = vcmp.eq.s32.totalorder %v743, %v654
    %vm851 = vcmp.eq.s32.totalorder %v743, %v658
    %vm852 = vcmp.eq.s32.totalorder %v743, %v662
    %vm853 = vcmp.eq.s32.totalorder %v743, %v666
    %vm854 = vcmp.eq.s32.totalorder %v743, %v670
    %vm855 = vcmp.eq.s32.totalorder %v743, %v674
    %vm856 = vcmp.eq.s32.totalorder %v743, %v681
    %vm857 = vcmp.eq.s32.totalorder %v743, %v685
    %vm858 = vcmp.eq.s32.totalorder %v743, %v689
    %vm859 = vcmp.eq.s32.totalorder %v743, %v693
    %vm860 = vcmp.eq.s32.totalorder %v743, %v697
    %vm861 = vcmp.eq.s32.totalorder %v743, %v701
    %vm862 = vcmp.eq.s32.totalorder %v743, %v705
    %vm863 = vcmp.eq.s32.totalorder %v743, %v709
    %vm864 = vcmp.eq.s32.totalorder %v743, %v713
    %vm865 = vcmp.eq.s32.totalorder %v743, %v717
    %vm866 = vcmp.eq.s32.totalorder %v743, %v721
    %vm867 = vcmp.eq.s32.totalorder %v743, %v725
    %vm868 = vcmp.eq.s32.totalorder %v743, %v729
    %vm869 = vcmp.eq.s32.totalorder %v743, %v733
    %vm870 = vcmp.eq.s32.totalorder %v743, %v737
    %vm871 = vcmp.eq.s32.totalorder %v743, %v741
    %v873 = vcombine.high %v200, %v200
    %v875 = vunpack.c.l.s4 1966171168
    %v876 = vunpack.c.0.s8 %v875
    %v877 = vlaneseq
    %v878 = vshrl.u32 %v877, 7
    %v879 = vsub.s32 %v876, %v878
    %v880 = vrot.slane %v200, %v879
    %v882 = vunpack.c.l.s4 1966171168
    %v883 = vunpack.c.0.s8 %v882
    %v884 = vlaneseq
    %v885 = vshrl.u32 %v884, 7
    %v886 = vsub.s32 %v883, %v885
    %v887 = vrot.slane %v873, %v886
    %v888 = vcombine.high %v880, %v880
    %v889 = vcombine.high %v887, %v887
    %v891 = vunpack.c.l.s4 1966171168
    %v892 = vunpack.c.0.s8 %v891
    %v893 = vlaneseq
    %v894 = vshrl.u32 %v893, 7
    %v895 = vsub.s32 %v892, %v894
    %v896 = vrot.slane %v880, %v895
    %v898 = vunpack.c.l.s4 1966171168
    %v899 = vunpack.c.0.s8 %v898
    %v900 = vlaneseq
    %v901 = vshrl.u32 %v900, 7
    %v902 = vsub.s32 %v899, %v901
    %v903 = vrot.slane %v887, %v902
    %v905 = vunpack.c.l.s4 1966171168
    %v906 = vunpack.c.0.s8 %v905
    %v907 = vlaneseq
    %v908 = vshrl.u32 %v907, 7
    %v909 = vsub.s32 %v906, %v908
    %v910 = vrot.slane %v888, %v909
    %v912 = vunpack.c.l.s4 1966171168
    %v913 = vunpack.c.0.s8 %v912
    %v914 = vlaneseq
    %v915 = vshrl.u32 %v914, 7
    %v916 = vsub.s32 %v913, %v915
    %v917 = vrot.slane %v889, %v916
    %v918 = vcombine.high %v896, %v896
    %v919 = vcombine.high %v903, %v903
    %v920 = vcombine.high %v910, %v910
    %v921 = vcombine.high %v917, %v917
    %v922 = vlaneseq
    %v923 = vshrl.u32 %v922, 7
    %v924 = vsub.s32 0, %v923
    %v925 = vrot.slane %v896, %v924
    %v926 = vlaneseq
    %v927 = vshrl.u32 %v926, 7
    %v928 = vsub.s32 0, %v927
    %v929 = vrot.slane %v910, %v928
    %v930 = vlaneseq
    %v931 = vshrl.u32 %v930, 7
    %v932 = vsub.s32 0, %v931
    %v933 = vrot.slane %v918, %v932
    %v934 = vlaneseq
    %v935 = vshrl.u32 %v934, 7
    %v936 = vsub.s32 0, %v935
    %v937 = vrot.slane %v920, %v936
    %v938 = vlaneseq
    %v939 = vshrl.u32 %v938, 7
    %v940 = vsub.s32 0, %v939
    %v941 = vrot.slane %v903, %v940
    %v942 = vlaneseq
    %v943 = vshrl.u32 %v942, 7
    %v944 = vsub.s32 0, %v943
    %v945 = vrot.slane %v917, %v944
    %v946 = vlaneseq
    %v947 = vshrl.u32 %v946, 7
    %v948 = vsub.s32 0, %v947
    %v949 = vrot.slane %v919, %v948
    %v950 = vlaneseq
    %v951 = vshrl.u32 %v950, 7
    %v952 = vsub.s32 0, %v951
    %v953 = vrot.slane %v921, %v952
    %v962 = vsel %vm744, %v925, 0.0
    %v963 = vsel %vm745, %v925, 0.0
    %v964 = vsel %vm746, %v925, 0.0
    %v965 = vsel %vm747, %v925, 0.0
    %v966 = vsel %vm748, %v925, 0.0
    %v967 = vsel %vm749, %v925, 0.0
    %v968 = vsel %vm750, %v925, 0.0
    %v969 = vsel %vm751, %v925, 0.0
    %v970 = vsel %vm752, %v925, 0.0
    %v971 = vsel %vm753, %v925, 0.0
    %v972 = vsel %vm754, %v925, 0.0
    %v973 = vsel %vm755, %v925, 0.0
    %v974 = vsel %vm756, %v925, 0.0
    %v975 = vsel %vm757, %v925, 0.0
    %v976 = vsel %vm758, %v925, 0.0
    %v977 = vsel %vm759, %v925, 0.0
    %v978 = vsel %vm760, %v929, 0.0
    %v979 = vsel %vm761, %v929, 0.0
    %v980 = vsel %vm762, %v929, 0.0
    %v981 = vsel %vm763, %v929, 0.0
    %v982 = vsel %vm764, %v929, 0.0
    %v983 = vsel %vm765, %v929, 0.0
    %v984 = vsel %vm766, %v929, 0.0
    %v985 = vsel %vm767, %v929, 0.0
    %v986 = vsel %vm768, %v929, 0.0
    %v987 = vsel %vm769, %v929, 0.0
    %v988 = vsel %vm770, %v929, 0.0
    %v989 = vsel %vm771, %v929, 0.0
    %v990 = vsel %vm772, %v929, 0.0
    %v991 = vsel %vm773, %v929, 0.0
    %v992 = vsel %vm774, %v929, 0.0
    %v993 = vsel %vm775, %v929, 0.0
    %v994 = vsel %vm776, %v933, 0.0
    %v995 = vsel %vm777, %v933, 0.0
    %v996 = vsel %vm778, %v933, 0.0
    %v997 = vsel %vm779, %v933, 0.0
    %v998 = vsel %vm780, %v933, 0.0
    %v999 = vsel %vm781, %v933, 0.0
    %v1000 = vsel %vm782, %v933, 0.0
    %v1001 = vsel %vm783, %v933, 0.0
    %v1002 = vsel %vm784, %v933, 0.0
    %v1003 = vsel %vm785, %v933, 0.0
    %v1004 = vsel %vm786, %v933, 0.0
    %v1005 = vsel %vm787, %v933, 0.0
    %v1006 = vsel %vm788, %v933, 0.0
    %v1007 = vsel %vm789, %v933, 0.0
    %v1008 = vsel %vm790, %v933, 0.0
    %v1009 = vsel %vm791, %v933, 0.0
    %v1010 = vsel %vm792, %v937, 0.0
    %v1011 = vsel %vm793, %v937, 0.0
    %v1012 = vsel %vm794, %v937, 0.0
    %v1013 = vsel %vm795, %v937, 0.0
    %v1014 = vsel %vm796, %v937, 0.0
    %v1015 = vsel %vm797, %v937, 0.0
    %v1016 = vsel %vm798, %v937, 0.0
    %v1017 = vsel %vm799, %v937, 0.0
    %v1018 = vsel %vm800, %v937, 0.0
    %v1019 = vsel %vm801, %v937, 0.0
    %v1020 = vsel %vm802, %v937, 0.0
    %v1021 = vsel %vm803, %v937, 0.0
    %v1022 = vsel %vm804, %v937, 0.0
    %v1023 = vsel %vm805, %v937, 0.0
    %v1024 = vsel %vm806, %v937, 0.0
    %v1025 = vsel %vm807, %v937, 0.0
    %v1026 = vsel %vm808, %v941, 0.0
    %v1027 = vsel %vm809, %v941, 0.0
    %v1028 = vsel %vm810, %v941, 0.0
    %v1029 = vsel %vm811, %v941, 0.0
    %v1030 = vsel %vm812, %v941, 0.0
    %v1031 = vsel %vm813, %v941, 0.0
    %v1032 = vsel %vm814, %v941, 0.0
    %v1033 = vsel %vm815, %v941, 0.0
    %v1034 = vsel %vm816, %v941, 0.0
    %v1035 = vsel %vm817, %v941, 0.0
    %v1036 = vsel %vm818, %v941, 0.0
    %v1037 = vsel %vm819, %v941, 0.0
    %v1038 = vsel %vm820, %v941, 0.0
    %v1039 = vsel %vm821, %v941, 0.0
    %v1040 = vsel %vm822, %v941, 0.0
    %v1041 = vsel %vm823, %v941, 0.0
    %v1042 = vsel %vm824, %v945, 0.0
    %v1043 = vsel %vm825, %v945, 0.0
    %v1044 = vsel %vm826, %v945, 0.0
    %v1045 = vsel %vm827, %v945, 0.0
    %v1046 = vsel %vm828, %v945, 0.0
    %v1047 = vsel %vm829, %v945, 0.0
    %v1048 = vsel %vm830, %v945, 0.0
    %v1049 = vsel %vm831, %v945, 0.0
    %v1050 = vsel %vm832, %v945, 0.0
    %v1051 = vsel %vm833, %v945, 0.0
    %v1052 = vsel %vm834, %v945, 0.0
    %v1053 = vsel %vm835, %v945, 0.0
    %v1054 = vsel %vm836, %v945, 0.0
    %v1055 = vsel %vm837, %v945, 0.0
    %v1056 = vsel %vm838, %v945, 0.0
    %v1057 = vsel %vm839, %v945, 0.0
    %v1058 = vsel %vm840, %v949, 0.0
    %v1059 = vsel %vm841, %v949, 0.0
    %v1060 = vsel %vm842, %v949, 0.0
    %v1061 = vsel %vm843, %v949, 0.0
    %v1062 = vsel %vm844, %v949, 0.0
    %v1063 = vsel %vm845, %v949, 0.0
    %v1064 = vsel %vm846, %v949, 0.0
    %v1065 = vsel %vm847, %v949, 0.0
    %v1066 = vsel %vm848, %v949, 0.0
    %v1067 = vsel %vm849, %v949, 0.0
    %v1068 = vsel %vm850, %v949, 0.0
    %v1069 = vsel %vm851, %v949, 0.0
    %v1070 = vsel %vm852, %v949, 0.0
    %v1071 = vsel %vm853, %v949, 0.0
    %v1072 = vsel %vm854, %v949, 0.0
    %v1073 = vsel %vm855, %v949, 0.0
    %v1074 = vsel %vm856, %v953, 0.0
    %v1075 = vsel %vm857, %v953, 0.0
    %v1076 = vsel %vm858, %v953, 0.0
    %v1077 = vsel %vm859, %v953, 0.0
    %v1078 = vsel %vm860, %v953, 0.0
    %v1079 = vsel %vm861, %v953, 0.0
    %v1080 = vsel %vm862, %v953, 0.0
    %v1081 = vsel %vm863, %v953, 0.0
    %v1082 = vsel %vm864, %v953, 0.0
    %v1083 = vsel %vm865, %v953, 0.0
    %v1084 = vsel %vm866, %v953, 0.0
    %v1085 = vsel %vm867, %v953, 0.0
    %v1086 = vsel %vm868, %v953, 0.0
    %v1087 = vsel %vm869, %v953, 0.0
    %v1088 = vsel %vm870, %v953, 0.0
    %v1089 = vsel %vm871, %v953, 0.0
    %1090 = vadd.xlane.f32.xlu0 %v962
    %v1091 = vpop.xlane.xlu0 %1090
    %1092 = vadd.xlane.f32.xlu0 %v963
    %v1093 = vpop.xlane.xlu0 %1092
    %1094 = vadd.xlane.f32.xlu0 %v964
    %v1095 = vpop.xlane.xlu0 %1094
    %1096 = vadd.xlane.f32.xlu0 %v965
    %v1097 = vpop.xlane.xlu0 %1096
    %1098 = vadd.xlane.f32.xlu0 %v966
    %v1099 = vpop.xlane.xlu0 %1098
    %1100 = vadd.xlane.f32.xlu0 %v967
    %v1101 = vpop.xlane.xlu0 %1100
    %1102 = vadd.xlane.f32.xlu0 %v968
    %v1103 = vpop.xlane.xlu0 %1102
    %1104 = vadd.xlane.f32.xlu0 %v969
    %v1105 = vpop.xlane.xlu0 %1104
    %1106 = vadd.xlane.f32.xlu0 %v970
    %v1107 = vpop.xlane.xlu0 %1106
    %1108 = vadd.xlane.f32.xlu0 %v971
    %v1109 = vpop.xlane.xlu0 %1108
    %1110 = vadd.xlane.f32.xlu0 %v972
    %v1111 = vpop.xlane.xlu0 %1110
    %1112 = vadd.xlane.f32.xlu0 %v973
    %v1113 = vpop.xlane.xlu0 %1112
    %1114 = vadd.xlane.f32.xlu0 %v974
    %v1115 = vpop.xlane.xlu0 %1114
    %1116 = vadd.xlane.f32.xlu0 %v975
    %v1117 = vpop.xlane.xlu0 %1116
    %1118 = vadd.xlane.f32.xlu0 %v976
    %v1119 = vpop.xlane.xlu0 %1118
    %1120 = vadd.xlane.f32.xlu0 %v977
    %v1121 = vpop.xlane.xlu0 %1120
    %1122 = vadd.xlane.f32.xlu0 %v978
    %v1123 = vpop.xlane.xlu0 %1122
    %1124 = vadd.xlane.f32.xlu0 %v979
    %v1125 = vpop.xlane.xlu0 %1124
    %1126 = vadd.xlane.f32.xlu0 %v980
    %v1127 = vpop.xlane.xlu0 %1126
    %1128 = vadd.xlane.f32.xlu0 %v981
    %v1129 = vpop.xlane.xlu0 %1128
    %1130 = vadd.xlane.f32.xlu0 %v982
    %v1131 = vpop.xlane.xlu0 %1130
    %1132 = vadd.xlane.f32.xlu0 %v983
    %v1133 = vpop.xlane.xlu0 %1132
    %1134 = vadd.xlane.f32.xlu0 %v984
    %v1135 = vpop.xlane.xlu0 %1134
    %1136 = vadd.xlane.f32.xlu0 %v985
    %v1137 = vpop.xlane.xlu0 %1136
    %1138 = vadd.xlane.f32.xlu0 %v986
    %v1139 = vpop.xlane.xlu0 %1138
    %1140 = vadd.xlane.f32.xlu0 %v987
    %v1141 = vpop.xlane.xlu0 %1140
    %1142 = vadd.xlane.f32.xlu0 %v988
    %v1143 = vpop.xlane.xlu0 %1142
    %1144 = vadd.xlane.f32.xlu0 %v989
    %v1145 = vpop.xlane.xlu0 %1144
    %1146 = vadd.xlane.f32.xlu0 %v990
    %v1147 = vpop.xlane.xlu0 %1146
    %1148 = vadd.xlane.f32.xlu0 %v991
    %v1149 = vpop.xlane.xlu0 %1148
    %1150 = vadd.xlane.f32.xlu0 %v992
    %v1151 = vpop.xlane.xlu0 %1150
    %1152 = vadd.xlane.f32.xlu0 %v993
    %v1153 = vpop.xlane.xlu0 %1152
    %1154 = vadd.xlane.f32.xlu0 %v994
    %v1155 = vpop.xlane.xlu0 %1154
    %1156 = vadd.xlane.f32.xlu0 %v995
    %v1157 = vpop.xlane.xlu0 %1156
    %1158 = vadd.xlane.f32.xlu0 %v996
    %v1159 = vpop.xlane.xlu0 %1158
    %1160 = vadd.xlane.f32.xlu0 %v997
    %v1161 = vpop.xlane.xlu0 %1160
    %1162 = vadd.xlane.f32.xlu0 %v998
    %v1163 = vpop.xlane.xlu0 %1162
    %1164 = vadd.xlane.f32.xlu0 %v999
    %v1165 = vpop.xlane.xlu0 %1164
    %1166 = vadd.xlane.f32.xlu0 %v1000
    %v1167 = vpop.xlane.xlu0 %1166
    %1168 = vadd.xlane.f32.xlu0 %v1001
    %v1169 = vpop.xlane.xlu0 %1168
    %1170 = vadd.xlane.f32.xlu0 %v1002
    %v1171 = vpop.xlane.xlu0 %1170
    %1172 = vadd.xlane.f32.xlu0 %v1003
    %v1173 = vpop.xlane.xlu0 %1172
    %1174 = vadd.xlane.f32.xlu0 %v1004
    %v1175 = vpop.xlane.xlu0 %1174
    %1176 = vadd.xlane.f32.xlu0 %v1005
    %v1177 = vpop.xlane.xlu0 %1176
    %1178 = vadd.xlane.f32.xlu0 %v1006
    %v1179 = vpop.xlane.xlu0 %1178
    %1180 = vadd.xlane.f32.xlu0 %v1007
    %v1181 = vpop.xlane.xlu0 %1180
    %1182 = vadd.xlane.f32.xlu0 %v1008
    %v1183 = vpop.xlane.xlu0 %1182
    %1184 = vadd.xlane.f32.xlu0 %v1009
    %v1185 = vpop.xlane.xlu0 %1184
    %1186 = vadd.xlane.f32.xlu0 %v1010
    %v1187 = vpop.xlane.xlu0 %1186
    %1188 = vadd.xlane.f32.xlu0 %v1011
    %v1189 = vpop.xlane.xlu0 %1188
    %1190 = vadd.xlane.f32.xlu0 %v1012
    %v1191 = vpop.xlane.xlu0 %1190
    %1192 = vadd.xlane.f32.xlu0 %v1013
    %v1193 = vpop.xlane.xlu0 %1192
    %1194 = vadd.xlane.f32.xlu0 %v1014
    %v1195 = vpop.xlane.xlu0 %1194
    %1196 = vadd.xlane.f32.xlu0 %v1015
    %v1197 = vpop.xlane.xlu0 %1196
    %1198 = vadd.xlane.f32.xlu0 %v1016
    %v1199 = vpop.xlane.xlu0 %1198
    %1200 = vadd.xlane.f32.xlu0 %v1017
    %v1201 = vpop.xlane.xlu0 %1200
    %1202 = vadd.xlane.f32.xlu0 %v1018
    %v1203 = vpop.xlane.xlu0 %1202
    %1204 = vadd.xlane.f32.xlu0 %v1019
    %v1205 = vpop.xlane.xlu0 %1204
    %1206 = vadd.xlane.f32.xlu0 %v1020
    %v1207 = vpop.xlane.xlu0 %1206
    %1208 = vadd.xlane.f32.xlu0 %v1021
    %v1209 = vpop.xlane.xlu0 %1208
    %1210 = vadd.xlane.f32.xlu0 %v1022
    %v1211 = vpop.xlane.xlu0 %1210
    %1212 = vadd.xlane.f32.xlu0 %v1023
    %v1213 = vpop.xlane.xlu0 %1212
    %1214 = vadd.xlane.f32.xlu0 %v1024
    %v1215 = vpop.xlane.xlu0 %1214
    %1216 = vadd.xlane.f32.xlu0 %v1025
    %v1217 = vpop.xlane.xlu0 %1216
    %1218 = vadd.xlane.f32.xlu0 %v1026
    %v1219 = vpop.xlane.xlu0 %1218
    %1220 = vadd.xlane.f32.xlu0 %v1027
    %v1221 = vpop.xlane.xlu0 %1220
    %1222 = vadd.xlane.f32.xlu0 %v1028
    %v1223 = vpop.xlane.xlu0 %1222
    %1224 = vadd.xlane.f32.xlu0 %v1029
    %v1225 = vpop.xlane.xlu0 %1224
    %1226 = vadd.xlane.f32.xlu0 %v1030
    %v1227 = vpop.xlane.xlu0 %1226
    %1228 = vadd.xlane.f32.xlu0 %v1031
    %v1229 = vpop.xlane.xlu0 %1228
    %1230 = vadd.xlane.f32.xlu0 %v1032
    %v1231 = vpop.xlane.xlu0 %1230
    %1232 = vadd.xlane.f32.xlu0 %v1033
    %v1233 = vpop.xlane.xlu0 %1232
    %1234 = vadd.xlane.f32.xlu0 %v1034
    %v1235 = vpop.xlane.xlu0 %1234
    %1236 = vadd.xlane.f32.xlu0 %v1035
    %v1237 = vpop.xlane.xlu0 %1236
    %1238 = vadd.xlane.f32.xlu0 %v1036
    %v1239 = vpop.xlane.xlu0 %1238
    %1240 = vadd.xlane.f32.xlu0 %v1037
    %v1241 = vpop.xlane.xlu0 %1240
    %1242 = vadd.xlane.f32.xlu0 %v1038
    %v1243 = vpop.xlane.xlu0 %1242
    %1244 = vadd.xlane.f32.xlu0 %v1039
    %v1245 = vpop.xlane.xlu0 %1244
    %1246 = vadd.xlane.f32.xlu0 %v1040
    %v1247 = vpop.xlane.xlu0 %1246
    %1248 = vadd.xlane.f32.xlu0 %v1041
    %v1249 = vpop.xlane.xlu0 %1248
    %1250 = vadd.xlane.f32.xlu0 %v1042
    %v1251 = vpop.xlane.xlu0 %1250
    %1252 = vadd.xlane.f32.xlu0 %v1043
    %v1253 = vpop.xlane.xlu0 %1252
    %1254 = vadd.xlane.f32.xlu0 %v1044
    %v1255 = vpop.xlane.xlu0 %1254
    %1256 = vadd.xlane.f32.xlu0 %v1045
    %v1257 = vpop.xlane.xlu0 %1256
    %1258 = vadd.xlane.f32.xlu0 %v1046
    %v1259 = vpop.xlane.xlu0 %1258
    %1260 = vadd.xlane.f32.xlu0 %v1047
    %v1261 = vpop.xlane.xlu0 %1260
    %1262 = vadd.xlane.f32.xlu0 %v1048
    %v1263 = vpop.xlane.xlu0 %1262
    %1264 = vadd.xlane.f32.xlu0 %v1049
    %v1265 = vpop.xlane.xlu0 %1264
    %1266 = vadd.xlane.f32.xlu0 %v1050
    %v1267 = vpop.xlane.xlu0 %1266
    %1268 = vadd.xlane.f32.xlu0 %v1051
    %v1269 = vpop.xlane.xlu0 %1268
    %1270 = vadd.xlane.f32.xlu0 %v1052
    %v1271 = vpop.xlane.xlu0 %1270
    %1272 = vadd.xlane.f32.xlu0 %v1053
    %v1273 = vpop.xlane.xlu0 %1272
    %1274 = vadd.xlane.f32.xlu0 %v1054
    %v1275 = vpop.xlane.xlu0 %1274
    %1276 = vadd.xlane.f32.xlu0 %v1055
    %v1277 = vpop.xlane.xlu0 %1276
    %1278 = vadd.xlane.f32.xlu0 %v1056
    %v1279 = vpop.xlane.xlu0 %1278
    %1280 = vadd.xlane.f32.xlu0 %v1057
    %v1281 = vpop.xlane.xlu0 %1280
    %1282 = vadd.xlane.f32.xlu0 %v1058
    %v1283 = vpop.xlane.xlu0 %1282
    %1284 = vadd.xlane.f32.xlu0 %v1059
    %v1285 = vpop.xlane.xlu0 %1284
    %1286 = vadd.xlane.f32.xlu0 %v1060
    %v1287 = vpop.xlane.xlu0 %1286
    %1288 = vadd.xlane.f32.xlu0 %v1061
    %v1289 = vpop.xlane.xlu0 %1288
    %1290 = vadd.xlane.f32.xlu0 %v1062
    %v1291 = vpop.xlane.xlu0 %1290
    %1292 = vadd.xlane.f32.xlu0 %v1063
    %v1293 = vpop.xlane.xlu0 %1292
    %1294 = vadd.xlane.f32.xlu0 %v1064
    %v1295 = vpop.xlane.xlu0 %1294
    %1296 = vadd.xlane.f32.xlu0 %v1065
    %v1297 = vpop.xlane.xlu0 %1296
    %1298 = vadd.xlane.f32.xlu0 %v1066
    %v1299 = vpop.xlane.xlu0 %1298
    %1300 = vadd.xlane.f32.xlu0 %v1067
    %v1301 = vpop.xlane.xlu0 %1300
    %1302 = vadd.xlane.f32.xlu0 %v1068
    %v1303 = vpop.xlane.xlu0 %1302
    %1304 = vadd.xlane.f32.xlu0 %v1069
    %v1305 = vpop.xlane.xlu0 %1304
    %1306 = vadd.xlane.f32.xlu0 %v1070
    %v1307 = vpop.xlane.xlu0 %1306
    %1308 = vadd.xlane.f32.xlu0 %v1071
    %v1309 = vpop.xlane.xlu0 %1308
    %1310 = vadd.xlane.f32.xlu0 %v1072
    %v1311 = vpop.xlane.xlu0 %1310
    %1312 = vadd.xlane.f32.xlu0 %v1073
    %v1313 = vpop.xlane.xlu0 %1312
    %1314 = vadd.xlane.f32.xlu0 %v1074
    %v1315 = vpop.xlane.xlu0 %1314
    %1316 = vadd.xlane.f32.xlu0 %v1075
    %v1317 = vpop.xlane.xlu0 %1316
    %1318 = vadd.xlane.f32.xlu0 %v1076
    %v1319 = vpop.xlane.xlu0 %1318
    %1320 = vadd.xlane.f32.xlu0 %v1077
    %v1321 = vpop.xlane.xlu0 %1320
    %1322 = vadd.xlane.f32.xlu0 %v1078
    %v1323 = vpop.xlane.xlu0 %1322
    %1324 = vadd.xlane.f32.xlu0 %v1079
    %v1325 = vpop.xlane.xlu0 %1324
    %1326 = vadd.xlane.f32.xlu0 %v1080
    %v1327 = vpop.xlane.xlu0 %1326
    %1328 = vadd.xlane.f32.xlu0 %v1081
    %v1329 = vpop.xlane.xlu0 %1328
    %1330 = vadd.xlane.f32.xlu0 %v1082
    %v1331 = vpop.xlane.xlu0 %1330
    %1332 = vadd.xlane.f32.xlu0 %v1083
    %v1333 = vpop.xlane.xlu0 %1332
    %1334 = vadd.xlane.f32.xlu0 %v1084
    %v1335 = vpop.xlane.xlu0 %1334
    %1336 = vadd.xlane.f32.xlu0 %v1085
    %v1337 = vpop.xlane.xlu0 %1336
    %1338 = vadd.xlane.f32.xlu0 %v1086
    %v1339 = vpop.xlane.xlu0 %1338
    %1340 = vadd.xlane.f32.xlu0 %v1087
    %v1341 = vpop.xlane.xlu0 %1340
    %1342 = vadd.xlane.f32.xlu0 %v1088
    %v1343 = vpop.xlane.xlu0 %1342
    %1344 = vadd.xlane.f32.xlu0 %v1089
    %v1345 = vpop.xlane.xlu0 %1344
    %v1346 = vadd.f32 %v1091, 0.0
    %v1347 = vadd.f32 %v1093, 0.0
    %v1348 = vadd.f32 %v1095, 0.0
    %v1349 = vadd.f32 %v1097, 0.0
    %v1350 = vadd.f32 %v1099, 0.0
    %v1351 = vadd.f32 %v1101, 0.0
    %v1352 = vadd.f32 %v1103, 0.0
    %v1353 = vadd.f32 %v1105, 0.0
    %v1354 = vadd.f32 %v1107, 0.0
    %v1355 = vadd.f32 %v1109, 0.0
    %v1356 = vadd.f32 %v1111, 0.0
    %v1357 = vadd.f32 %v1113, 0.0
    %v1358 = vadd.f32 %v1115, 0.0
    %v1359 = vadd.f32 %v1117, 0.0
    %v1360 = vadd.f32 %v1119, 0.0
    %v1361 = vadd.f32 %v1121, 0.0
    %v1362 = vadd.f32 %v1123, 0.0
    %v1363 = vadd.f32 %v1125, 0.0
    %v1364 = vadd.f32 %v1127, 0.0
    %v1365 = vadd.f32 %v1129, 0.0
    %v1366 = vadd.f32 %v1131, 0.0
    %v1367 = vadd.f32 %v1133, 0.0
    %v1368 = vadd.f32 %v1135, 0.0
    %v1369 = vadd.f32 %v1137, 0.0
    %v1370 = vadd.f32 %v1139, 0.0
    %v1371 = vadd.f32 %v1141, 0.0
    %v1372 = vadd.f32 %v1143, 0.0
    %v1373 = vadd.f32 %v1145, 0.0
    %v1374 = vadd.f32 %v1147, 0.0
    %v1375 = vadd.f32 %v1149, 0.0
    %v1376 = vadd.f32 %v1151, 0.0
    %v1377 = vadd.f32 %v1153, 0.0
    %v1378 = vadd.f32 %v1155, 0.0
    %v1379 = vadd.f32 %v1157, 0.0
    %v1380 = vadd.f32 %v1159, 0.0
    %v1381 = vadd.f32 %v1161, 0.0
    %v1382 = vadd.f32 %v1163, 0.0
    %v1383 = vadd.f32 %v1165, 0.0
    %v1384 = vadd.f32 %v1167, 0.0
    %v1385 = vadd.f32 %v1169, 0.0
    %v1386 = vadd.f32 %v1171, 0.0
    %v1387 = vadd.f32 %v1173, 0.0
    %v1388 = vadd.f32 %v1175, 0.0
    %v1389 = vadd.f32 %v1177, 0.0
    %v1390 = vadd.f32 %v1179, 0.0
    %v1391 = vadd.f32 %v1181, 0.0
    %v1392 = vadd.f32 %v1183, 0.0
    %v1393 = vadd.f32 %v1185, 0.0
    %v1394 = vadd.f32 %v1187, 0.0
    %v1395 = vadd.f32 %v1189, 0.0
    %v1396 = vadd.f32 %v1191, 0.0
    %v1397 = vadd.f32 %v1193, 0.0
    %v1398 = vadd.f32 %v1195, 0.0
    %v1399 = vadd.f32 %v1197, 0.0
    %v1400 = vadd.f32 %v1199, 0.0
    %v1401 = vadd.f32 %v1201, 0.0
    %v1402 = vadd.f32 %v1203, 0.0
    %v1403 = vadd.f32 %v1205, 0.0
    %v1404 = vadd.f32 %v1207, 0.0
    %v1405 = vadd.f32 %v1209, 0.0
    %v1406 = vadd.f32 %v1211, 0.0
    %v1407 = vadd.f32 %v1213, 0.0
    %v1408 = vadd.f32 %v1215, 0.0
    %v1409 = vadd.f32 %v1217, 0.0
    %v1410 = vadd.f32 %v1219, 0.0
    %v1411 = vadd.f32 %v1221, 0.0
    %v1412 = vadd.f32 %v1223, 0.0
    %v1413 = vadd.f32 %v1225, 0.0
    %v1414 = vadd.f32 %v1227, 0.0
    %v1415 = vadd.f32 %v1229, 0.0
    %v1416 = vadd.f32 %v1231, 0.0
    %v1417 = vadd.f32 %v1233, 0.0
    %v1418 = vadd.f32 %v1235, 0.0
    %v1419 = vadd.f32 %v1237, 0.0
    %v1420 = vadd.f32 %v1239, 0.0
    %v1421 = vadd.f32 %v1241, 0.0
    %v1422 = vadd.f32 %v1243, 0.0
    %v1423 = vadd.f32 %v1245, 0.0
    %v1424 = vadd.f32 %v1247, 0.0
    %v1425 = vadd.f32 %v1249, 0.0
    %v1426 = vadd.f32 %v1251, 0.0
    %v1427 = vadd.f32 %v1253, 0.0
    %v1428 = vadd.f32 %v1255, 0.0
    %v1429 = vadd.f32 %v1257, 0.0
    %v1430 = vadd.f32 %v1259, 0.0
    %v1431 = vadd.f32 %v1261, 0.0
    %v1432 = vadd.f32 %v1263, 0.0
    %v1433 = vadd.f32 %v1265, 0.0
    %v1434 = vadd.f32 %v1267, 0.0
    %v1435 = vadd.f32 %v1269, 0.0
    %v1436 = vadd.f32 %v1271, 0.0
    %v1437 = vadd.f32 %v1273, 0.0
    %v1438 = vadd.f32 %v1275, 0.0
    %v1439 = vadd.f32 %v1277, 0.0
    %v1440 = vadd.f32 %v1279, 0.0
    %v1441 = vadd.f32 %v1281, 0.0
    %v1442 = vadd.f32 %v1283, 0.0
    %v1443 = vadd.f32 %v1285, 0.0
    %v1444 = vadd.f32 %v1287, 0.0
    %v1445 = vadd.f32 %v1289, 0.0
    %v1446 = vadd.f32 %v1291, 0.0
    %v1447 = vadd.f32 %v1293, 0.0
    %v1448 = vadd.f32 %v1295, 0.0
    %v1449 = vadd.f32 %v1297, 0.0
    %v1450 = vadd.f32 %v1299, 0.0
    %v1451 = vadd.f32 %v1301, 0.0
    %v1452 = vadd.f32 %v1303, 0.0
    %v1453 = vadd.f32 %v1305, 0.0
    %v1454 = vadd.f32 %v1307, 0.0
    %v1455 = vadd.f32 %v1309, 0.0
    %v1456 = vadd.f32 %v1311, 0.0
    %v1457 = vadd.f32 %v1313, 0.0
    %v1458 = vadd.f32 %v1315, 0.0
    %v1459 = vadd.f32 %v1317, 0.0
    %v1460 = vadd.f32 %v1319, 0.0
    %v1461 = vadd.f32 %v1321, 0.0
    %v1462 = vadd.f32 %v1323, 0.0
    %v1463 = vadd.f32 %v1325, 0.0
    %v1464 = vadd.f32 %v1327, 0.0
    %v1465 = vadd.f32 %v1329, 0.0
    %v1466 = vadd.f32 %v1331, 0.0
    %v1467 = vadd.f32 %v1333, 0.0
    %v1468 = vadd.f32 %v1335, 0.0
    %v1469 = vadd.f32 %v1337, 0.0
    %v1470 = vadd.f32 %v1339, 0.0
    %v1471 = vadd.f32 %v1341, 0.0
    %v1472 = vadd.f32 %v1343, 0.0
    %v1473 = vadd.f32 %v1345, 0.0
    %v1474 = vld [vmem:[%s5] sm:$0xff]
    %vm1475 = vcmp.eq.s32.totalorder %v1474, 0
    %v1604 = vlaneseq
    %v1605 = vshrl.u32 %v1604, 7
    %v1606 = vsub.s32 %v743, %v1605
    %v1607 = vrot.slane %v1346, %v1606
    %v1608 = vadd.s32 %v743, 4294967288
    %v1609 = vlaneseq
    %v1610 = vshrl.u32 %v1609, 7
    %v1611 = vsub.s32 %v1608, %v1610
    %v1612 = vrot.slane %v1347, %v1611
    %vm1613 = vcmask 130112
    %v1614 = vsel %vm1613, %v1612, %v1607
    %v1615 = vadd.s32 %v743, 4294967280
    %v1616 = vlaneseq
    %v1617 = vshrl.u32 %v1616, 7
    %v1618 = vsub.s32 %v1615, %v1617
    %v1619 = vrot.slane %v1348, %v1618
    %vm1620 = vcmask 195712
    %v1621 = vsel %vm1620, %v1619, %v1614
    %v1622 = vadd.s32 %v743, 4294967272
    %v1623 = vlaneseq
    %v1624 = vshrl.u32 %v1623, 7
    %v1625 = vsub.s32 %v1622, %v1624
    %v1626 = vrot.slane %v1349, %v1625
    %vm1627 = vcmask 261312
    %v1628 = vsel %vm1627, %v1626, %v1621
    %v1629 = vadd.s32 %v743, 4294967264
    %v1630 = vlaneseq
    %v1631 = vshrl.u32 %v1630, 7
    %v1632 = vsub.s32 %v1629, %v1631
    %v1633 = vrot.slane %v1350, %v1632
    %vm1634 = vcmask 326912
    %v1635 = vsel %vm1634, %v1633, %v1628
    %v1636 = vadd.s32 %v743, 4294967256
    %v1637 = vlaneseq
    %v1638 = vshrl.u32 %v1637, 7
    %v1639 = vsub.s32 %v1636, %v1638
    %v1640 = vrot.slane %v1351, %v1639
    %vm1641 = vcmask 392512
    %v1642 = vsel %vm1641, %v1640, %v1635
    %v1643 = vadd.s32 %v743, 4294967248
    %v1644 = vlaneseq
    %v1645 = vshrl.u32 %v1644, 7
    %v1646 = vsub.s32 %v1643, %v1645
    %v1647 = vrot.slane %v1352, %v1646
    %vm1648 = vcmask 458112
    %v1649 = vsel %vm1648, %v1647, %v1642
    %v1650 = vadd.s32 %v743, 4294967240
    %v1651 = vlaneseq
    %v1652 = vshrl.u32 %v1651, 7
    %v1653 = vsub.s32 %v1650, %v1652
    %v1654 = vrot.slane %v1353, %v1653
    %vm1655 = vcmask 523712
    %v1656 = vsel %vm1655, %v1654, %v1649
    %v1657 = vadd.s32 %v743, 4294967232
    %v1658 = vlaneseq
    %v1659 = vshrl.u32 %v1658, 7
    %v1660 = vsub.s32 %v1657, %v1659
    %v1661 = vrot.slane %v1354, %v1660
    %vm1662 = vcmask 589312
    %v1663 = vsel %vm1662, %v1661, %v1656
    %v1664 = vadd.s32 %v743, 4294967224
    %v1665 = vlaneseq
    %v1666 = vshrl.u32 %v1665, 7
    %v1667 = vsub.s32 %v1664, %v1666
    %v1668 = vrot.slane %v1355, %v1667
    %vm1669 = vcmask 654912
    %v1670 = vsel %vm1669, %v1668, %v1663
    %v1671 = vadd.s32 %v743, 4294967216
    %v1672 = vlaneseq
    %v1673 = vshrl.u32 %v1672, 7
    %v1674 = vsub.s32 %v1671, %v1673
    %v1675 = vrot.slane %v1356, %v1674
    %vm1676 = vcmask 720512
    %v1677 = vsel %vm1676, %v1675, %v1670
    %v1678 = vadd.s32 %v743, 4294967208
    %v1679 = vlaneseq
    %v1680 = vshrl.u32 %v1679, 7
    %v1681 = vsub.s32 %v1678, %v1680
    %v1682 = vrot.slane %v1357, %v1681
    %vm1683 = vcmask 786112
    %v1684 = vsel %vm1683, %v1682, %v1677
    %v1685 = vadd.s32 %v743, 4294967200
    %v1686 = vlaneseq
    %v1687 = vshrl.u32 %v1686, 7
    %v1688 = vsub.s32 %v1685, %v1687
    %v1689 = vrot.slane %v1358, %v1688
    %vm1690 = vcmask 851712
    %v1691 = vsel %vm1690, %v1689, %v1684
    %v1692 = vadd.s32 %v743, 4294967192
    %v1693 = vlaneseq
    %v1694 = vshrl.u32 %v1693, 7
    %v1695 = vsub.s32 %v1692, %v1694
    %v1696 = vrot.slane %v1359, %v1695
    %vm1697 = vcmask 917312
    %v1698 = vsel %vm1697, %v1696, %v1691
    %v1699 = vadd.s32 %v743, 4294967184
    %v1700 = vlaneseq
    %v1701 = vshrl.u32 %v1700, 7
    %v1702 = vsub.s32 %v1699, %v1701
    %v1703 = vrot.slane %v1360, %v1702
    %vm1704 = vcmask 982912
    %v1705 = vsel %vm1704, %v1703, %v1698
    %v1706 = vadd.s32 %v743, 4294967176
    %v1707 = vlaneseq
    %v1708 = vshrl.u32 %v1707, 7
    %v1709 = vsub.s32 %v1706, %v1708
    %v1710 = vrot.slane %v1361, %v1709
    %vm1711 = vcmask 1048512
    %v1712 = vsel %vm1711, %v1710, %v1705
    %v1713 = vlaneseq
    %v1714 = vshrl.u32 %v1713, 7
    %v1715 = vsub.s32 %v743, %v1714
    %v1716 = vrot.slane %v1362, %v1715
    %v1717 = vlaneseq
    %v1718 = vshrl.u32 %v1717, 7
    %v1719 = vsub.s32 %v1608, %v1718
    %v1720 = vrot.slane %v1363, %v1719
    %v1721 = vsel %vm1613, %v1720, %v1716
    %v1722 = vlaneseq
    %v1723 = vshrl.u32 %v1722, 7
    %v1724 = vsub.s32 %v1615, %v1723
    %v1725 = vrot.slane %v1364, %v1724
    %v1726 = vsel %vm1620, %v1725, %v1721
    %v1727 = vlaneseq
    %v1728 = vshrl.u32 %v1727, 7
    %v1729 = vsub.s32 %v1622, %v1728
    %v1730 = vrot.slane %v1365, %v1729
    %v1731 = vsel %vm1627, %v1730, %v1726
    %v1732 = vlaneseq
    %v1733 = vshrl.u32 %v1732, 7
    %v1734 = vsub.s32 %v1629, %v1733
    %v1735 = vrot.slane %v1366, %v1734
    %v1736 = vsel %vm1634, %v1735, %v1731
    %v1737 = vlaneseq
    %v1738 = vshrl.u32 %v1737, 7
    %v1739 = vsub.s32 %v1636, %v1738
    %v1740 = vrot.slane %v1367, %v1739
    %v1741 = vsel %vm1641, %v1740, %v1736
    %v1742 = vlaneseq
    %v1743 = vshrl.u32 %v1742, 7
    %v1744 = vsub.s32 %v1643, %v1743
    %v1745 = vrot.slane %v1368, %v1744
    %v1746 = vsel %vm1648, %v1745, %v1741
    %v1747 = vlaneseq
    %v1748 = vshrl.u32 %v1747, 7
    %v1749 = vsub.s32 %v1650, %v1748
    %v1750 = vrot.slane %v1369, %v1749
    %v1751 = vsel %vm1655, %v1750, %v1746
    %v1752 = vlaneseq
    %v1753 = vshrl.u32 %v1752, 7
    %v1754 = vsub.s32 %v1657, %v1753
    %v1755 = vrot.slane %v1370, %v1754
    %v1756 = vsel %vm1662, %v1755, %v1751
    %v1757 = vlaneseq
    %v1758 = vshrl.u32 %v1757, 7
    %v1759 = vsub.s32 %v1664, %v1758
    %v1760 = vrot.slane %v1371, %v1759
    %v1761 = vsel %vm1669, %v1760, %v1756
    %v1762 = vlaneseq
    %v1763 = vshrl.u32 %v1762, 7
    %v1764 = vsub.s32 %v1671, %v1763
    %v1765 = vrot.slane %v1372, %v1764
    %v1766 = vsel %vm1676, %v1765, %v1761
    %v1767 = vlaneseq
    %v1768 = vshrl.u32 %v1767, 7
    %v1769 = vsub.s32 %v1678, %v1768
    %v1770 = vrot.slane %v1373, %v1769
    %v1771 = vsel %vm1683, %v1770, %v1766
    %v1772 = vlaneseq
    %v1773 = vshrl.u32 %v1772, 7
    %v1774 = vsub.s32 %v1685, %v1773
    %v1775 = vrot.slane %v1374, %v1774
    %v1776 = vsel %vm1690, %v1775, %v1771
    %v1777 = vlaneseq
    %v1778 = vshrl.u32 %v1777, 7
    %v1779 = vsub.s32 %v1692, %v1778
    %v1780 = vrot.slane %v1375, %v1779
    %v1781 = vsel %vm1697, %v1780, %v1776
    %v1782 = vlaneseq
    %v1783 = vshrl.u32 %v1782, 7
    %v1784 = vsub.s32 %v1699, %v1783
    %v1785 = vrot.slane %v1376, %v1784
    %v1786 = vsel %vm1704, %v1785, %v1781
    %v1787 = vlaneseq
    %v1788 = vshrl.u32 %v1787, 7
    %v1789 = vsub.s32 %v1706, %v1788
    %v1790 = vrot.slane %v1377, %v1789
    %v1791 = vsel %vm1711, %v1790, %v1786
    %v1792 = vlaneseq
    %v1793 = vshrl.u32 %v1792, 7
    %v1794 = vsub.s32 %v743, %v1793
    %v1795 = vrot.slane %v1378, %v1794
    %v1796 = vlaneseq
    %v1797 = vshrl.u32 %v1796, 7
    %v1798 = vsub.s32 %v1608, %v1797
    %v1799 = vrot.slane %v1379, %v1798
    %v1800 = vsel %vm1613, %v1799, %v1795
    %v1801 = vlaneseq
    %v1802 = vshrl.u32 %v1801, 7
    %v1803 = vsub.s32 %v1615, %v1802
    %v1804 = vrot.slane %v1380, %v1803
    %v1805 = vsel %vm1620, %v1804, %v1800
    %v1806 = vlaneseq
    %v1807 = vshrl.u32 %v1806, 7
    %v1808 = vsub.s32 %v1622, %v1807
    %v1809 = vrot.slane %v1381, %v1808
    %v1810 = vsel %vm1627, %v1809, %v1805
    %v1811 = vlaneseq
    %v1812 = vshrl.u32 %v1811, 7
    %v1813 = vsub.s32 %v1629, %v1812
    %v1814 = vrot.slane %v1382, %v1813
    %v1815 = vsel %vm1634, %v1814, %v1810
    %v1816 = vlaneseq
    %v1817 = vshrl.u32 %v1816, 7
    %v1818 = vsub.s32 %v1636, %v1817
    %v1819 = vrot.slane %v1383, %v1818
    %v1820 = vsel %vm1641, %v1819, %v1815
    %v1821 = vlaneseq
    %v1822 = vshrl.u32 %v1821, 7
    %v1823 = vsub.s32 %v1643, %v1822
    %v1824 = vrot.slane %v1384, %v1823
    %v1825 = vsel %vm1648, %v1824, %v1820
    %v1826 = vlaneseq
    %v1827 = vshrl.u32 %v1826, 7
    %v1828 = vsub.s32 %v1650, %v1827
    %v1829 = vrot.slane %v1385, %v1828
    %v1830 = vsel %vm1655, %v1829, %v1825
    %v1831 = vlaneseq
    %v1832 = vshrl.u32 %v1831, 7
    %v1833 = vsub.s32 %v1657, %v1832
    %v1834 = vrot.slane %v1386, %v1833
    %v1835 = vsel %vm1662, %v1834, %v1830
    %v1836 = vlaneseq
    %v1837 = vshrl.u32 %v1836, 7
    %v1838 = vsub.s32 %v1664, %v1837
    %v1839 = vrot.slane %v1387, %v1838
    %v1840 = vsel %vm1669, %v1839, %v1835
    %v1841 = vlaneseq
    %v1842 = vshrl.u32 %v1841, 7
    %v1843 = vsub.s32 %v1671, %v1842
    %v1844 = vrot.slane %v1388, %v1843
    %v1845 = vsel %vm1676, %v1844, %v1840
    %v1846 = vlaneseq
    %v1847 = vshrl.u32 %v1846, 7
    %v1848 = vsub.s32 %v1678, %v1847
    %v1849 = vrot.slane %v1389, %v1848
    %v1850 = vsel %vm1683, %v1849, %v1845
    %v1851 = vlaneseq
    %v1852 = vshrl.u32 %v1851, 7
    %v1853 = vsub.s32 %v1685, %v1852
    %v1854 = vrot.slane %v1390, %v1853
    %v1855 = vsel %vm1690, %v1854, %v1850
    %v1856 = vlaneseq
    %v1857 = vshrl.u32 %v1856, 7
    %v1858 = vsub.s32 %v1692, %v1857
    %v1859 = vrot.slane %v1391, %v1858
    %v1860 = vsel %vm1697, %v1859, %v1855
    %v1861 = vlaneseq
    %v1862 = vshrl.u32 %v1861, 7
    %v1863 = vsub.s32 %v1699, %v1862
    %v1864 = vrot.slane %v1392, %v1863
    %v1865 = vsel %vm1704, %v1864, %v1860
    %v1866 = vlaneseq
    %v1867 = vshrl.u32 %v1866, 7
    %v1868 = vsub.s32 %v1706, %v1867
    %v1869 = vrot.slane %v1393, %v1868
    %v1870 = vsel %vm1711, %v1869, %v1865
    %v1871 = vlaneseq
    %v1872 = vshrl.u32 %v1871, 7
    %v1873 = vsub.s32 %v743, %v1872
    %v1874 = vrot.slane %v1394, %v1873
    %v1875 = vlaneseq
    %v1876 = vshrl.u32 %v1875, 7
    %v1877 = vsub.s32 %v1608, %v1876
    %v1878 = vrot.slane %v1395, %v1877
    %v1879 = vsel %vm1613, %v1878, %v1874
    %v1880 = vlaneseq
    %v1881 = vshrl.u32 %v1880, 7
    %v1882 = vsub.s32 %v1615, %v1881
    %v1883 = vrot.slane %v1396, %v1882
    %v1884 = vsel %vm1620, %v1883, %v1879
    %v1885 = vlaneseq
    %v1886 = vshrl.u32 %v1885, 7
    %v1887 = vsub.s32 %v1622, %v1886
    %v1888 = vrot.slane %v1397, %v1887
    %v1889 = vsel %vm1627, %v1888, %v1884
    %v1890 = vlaneseq
    %v1891 = vshrl.u32 %v1890, 7
    %v1892 = vsub.s32 %v1629, %v1891
    %v1893 = vrot.slane %v1398, %v1892
    %v1894 = vsel %vm1634, %v1893, %v1889
    %v1895 = vlaneseq
    %v1896 = vshrl.u32 %v1895, 7
    %v1897 = vsub.s32 %v1636, %v1896
    %v1898 = vrot.slane %v1399, %v1897
    %v1899 = vsel %vm1641, %v1898, %v1894
    %v1900 = vlaneseq
    %v1901 = vshrl.u32 %v1900, 7
    %v1902 = vsub.s32 %v1643, %v1901
    %v1903 = vrot.slane %v1400, %v1902
    %v1904 = vsel %vm1648, %v1903, %v1899
    %v1905 = vlaneseq
    %v1906 = vshrl.u32 %v1905, 7
    %v1907 = vsub.s32 %v1650, %v1906
    %v1908 = vrot.slane %v1401, %v1907
    %v1909 = vsel %vm1655, %v1908, %v1904
    %v1910 = vlaneseq
    %v1911 = vshrl.u32 %v1910, 7
    %v1912 = vsub.s32 %v1657, %v1911
    %v1913 = vrot.slane %v1402, %v1912
    %v1914 = vsel %vm1662, %v1913, %v1909
    %v1915 = vlaneseq
    %v1916 = vshrl.u32 %v1915, 7
    %v1917 = vsub.s32 %v1664, %v1916
    %v1918 = vrot.slane %v1403, %v1917
    %v1919 = vsel %vm1669, %v1918, %v1914
    %v1920 = vlaneseq
    %v1921 = vshrl.u32 %v1920, 7
    %v1922 = vsub.s32 %v1671, %v1921
    %v1923 = vrot.slane %v1404, %v1922
    %v1924 = vsel %vm1676, %v1923, %v1919
    %v1925 = vlaneseq
    %v1926 = vshrl.u32 %v1925, 7
    %v1927 = vsub.s32 %v1678, %v1926
    %v1928 = vrot.slane %v1405, %v1927
    %v1929 = vsel %vm1683, %v1928, %v1924
    %v1930 = vlaneseq
    %v1931 = vshrl.u32 %v1930, 7
    %v1932 = vsub.s32 %v1685, %v1931
    %v1933 = vrot.slane %v1406, %v1932
    %v1934 = vsel %vm1690, %v1933, %v1929
    %v1935 = vlaneseq
    %v1936 = vshrl.u32 %v1935, 7
    %v1937 = vsub.s32 %v1692, %v1936
    %v1938 = vrot.slane %v1407, %v1937
    %v1939 = vsel %vm1697, %v1938, %v1934
    %v1940 = vlaneseq
    %v1941 = vshrl.u32 %v1940, 7
    %v1942 = vsub.s32 %v1699, %v1941
    %v1943 = vrot.slane %v1408, %v1942
    %v1944 = vsel %vm1704, %v1943, %v1939
    %v1945 = vlaneseq
    %v1946 = vshrl.u32 %v1945, 7
    %v1947 = vsub.s32 %v1706, %v1946
    %v1948 = vrot.slane %v1409, %v1947
    %v1949 = vsel %vm1711, %v1948, %v1944
    %v1950 = vlaneseq
    %v1951 = vshrl.u32 %v1950, 7
    %v1952 = vsub.s32 %v743, %v1951
    %v1953 = vrot.slane %v1410, %v1952
    %v1954 = vlaneseq
    %v1955 = vshrl.u32 %v1954, 7
    %v1956 = vsub.s32 %v1608, %v1955
    %v1957 = vrot.slane %v1411, %v1956
    %v1958 = vsel %vm1613, %v1957, %v1953
    %v1959 = vlaneseq
    %v1960 = vshrl.u32 %v1959, 7
    %v1961 = vsub.s32 %v1615, %v1960
    %v1962 = vrot.slane %v1412, %v1961
    %v1963 = vsel %vm1620, %v1962, %v1958
    %v1964 = vlaneseq
    %v1965 = vshrl.u32 %v1964, 7
    %v1966 = vsub.s32 %v1622, %v1965
    %v1967 = vrot.slane %v1413, %v1966
    %v1968 = vsel %vm1627, %v1967, %v1963
    %v1969 = vlaneseq
    %v1970 = vshrl.u32 %v1969, 7
    %v1971 = vsub.s32 %v1629, %v1970
    %v1972 = vrot.slane %v1414, %v1971
    %v1973 = vsel %vm1634, %v1972, %v1968
    %v1974 = vlaneseq
    %v1975 = vshrl.u32 %v1974, 7
    %v1976 = vsub.s32 %v1636, %v1975
    %v1977 = vrot.slane %v1415, %v1976
    %v1978 = vsel %vm1641, %v1977, %v1973
    %v1979 = vlaneseq
    %v1980 = vshrl.u32 %v1979, 7
    %v1981 = vsub.s32 %v1643, %v1980
    %v1982 = vrot.slane %v1416, %v1981
    %v1983 = vsel %vm1648, %v1982, %v1978
    %v1984 = vlaneseq
    %v1985 = vshrl.u32 %v1984, 7
    %v1986 = vsub.s32 %v1650, %v1985
    %v1987 = vrot.slane %v1417, %v1986
    %v1988 = vsel %vm1655, %v1987, %v1983
    %v1989 = vlaneseq
    %v1990 = vshrl.u32 %v1989, 7
    %v1991 = vsub.s32 %v1657, %v1990
    %v1992 = vrot.slane %v1418, %v1991
    %v1993 = vsel %vm1662, %v1992, %v1988
    %v1994 = vlaneseq
    %v1995 = vshrl.u32 %v1994, 7
    %v1996 = vsub.s32 %v1664, %v1995
    %v1997 = vrot.slane %v1419, %v1996
    %v1998 = vsel %vm1669, %v1997, %v1993
    %v1999 = vlaneseq
    %v2000 = vshrl.u32 %v1999, 7
    %v2001 = vsub.s32 %v1671, %v2000
    %v2002 = vrot.slane %v1420, %v2001
    %v2003 = vsel %vm1676, %v2002, %v1998
    %v2004 = vlaneseq
    %v2005 = vshrl.u32 %v2004, 7
    %v2006 = vsub.s32 %v1678, %v2005
    %v2007 = vrot.slane %v1421, %v2006
    %v2008 = vsel %vm1683, %v2007, %v2003
    %v2009 = vlaneseq
    %v2010 = vshrl.u32 %v2009, 7
    %v2011 = vsub.s32 %v1685, %v2010
    %v2012 = vrot.slane %v1422, %v2011
    %v2013 = vsel %vm1690, %v2012, %v2008
    %v2014 = vlaneseq
    %v2015 = vshrl.u32 %v2014, 7
    %v2016 = vsub.s32 %v1692, %v2015
    %v2017 = vrot.slane %v1423, %v2016
    %v2018 = vsel %vm1697, %v2017, %v2013
    %v2019 = vlaneseq
    %v2020 = vshrl.u32 %v2019, 7
    %v2021 = vsub.s32 %v1699, %v2020
    %v2022 = vrot.slane %v1424, %v2021
    %v2023 = vsel %vm1704, %v2022, %v2018
    %v2024 = vlaneseq
    %v2025 = vshrl.u32 %v2024, 7
    %v2026 = vsub.s32 %v1706, %v2025
    %v2027 = vrot.slane %v1425, %v2026
    %v2028 = vsel %vm1711, %v2027, %v2023
    %v2029 = vlaneseq
    %v2030 = vshrl.u32 %v2029, 7
    %v2031 = vsub.s32 %v743, %v2030
    %v2032 = vrot.slane %v1426, %v2031
    %v2033 = vlaneseq
    %v2034 = vshrl.u32 %v2033, 7
    %v2035 = vsub.s32 %v1608, %v2034
    %v2036 = vrot.slane %v1427, %v2035
    %v2037 = vsel %vm1613, %v2036, %v2032
    %v2038 = vlaneseq
    %v2039 = vshrl.u32 %v2038, 7
    %v2040 = vsub.s32 %v1615, %v2039
    %v2041 = vrot.slane %v1428, %v2040
    %v2042 = vsel %vm1620, %v2041, %v2037
    %v2043 = vlaneseq
    %v2044 = vshrl.u32 %v2043, 7
    %v2045 = vsub.s32 %v1622, %v2044
    %v2046 = vrot.slane %v1429, %v2045
    %v2047 = vsel %vm1627, %v2046, %v2042
    %v2048 = vlaneseq
    %v2049 = vshrl.u32 %v2048, 7
    %v2050 = vsub.s32 %v1629, %v2049
    %v2051 = vrot.slane %v1430, %v2050
    %v2052 = vsel %vm1634, %v2051, %v2047
    %v2053 = vlaneseq
    %v2054 = vshrl.u32 %v2053, 7
    %v2055 = vsub.s32 %v1636, %v2054
    %v2056 = vrot.slane %v1431, %v2055
    %v2057 = vsel %vm1641, %v2056, %v2052
    %v2058 = vlaneseq
    %v2059 = vshrl.u32 %v2058, 7
    %v2060 = vsub.s32 %v1643, %v2059
    %v2061 = vrot.slane %v1432, %v2060
    %v2062 = vsel %vm1648, %v2061, %v2057
    %v2063 = vlaneseq
    %v2064 = vshrl.u32 %v2063, 7
    %v2065 = vsub.s32 %v1650, %v2064
    %v2066 = vrot.slane %v1433, %v2065
    %v2067 = vsel %vm1655, %v2066, %v2062
    %v2068 = vlaneseq
    %v2069 = vshrl.u32 %v2068, 7
    %v2070 = vsub.s32 %v1657, %v2069
    %v2071 = vrot.slane %v1434, %v2070
    %v2072 = vsel %vm1662, %v2071, %v2067
    %v2073 = vlaneseq
    %v2074 = vshrl.u32 %v2073, 7
    %v2075 = vsub.s32 %v1664, %v2074
    %v2076 = vrot.slane %v1435, %v2075
    %v2077 = vsel %vm1669, %v2076, %v2072
    %v2078 = vlaneseq
    %v2079 = vshrl.u32 %v2078, 7
    %v2080 = vsub.s32 %v1671, %v2079
    %v2081 = vrot.slane %v1436, %v2080
    %v2082 = vsel %vm1676, %v2081, %v2077
    %v2083 = vlaneseq
    %v2084 = vshrl.u32 %v2083, 7
    %v2085 = vsub.s32 %v1678, %v2084
    %v2086 = vrot.slane %v1437, %v2085
    %v2087 = vsel %vm1683, %v2086, %v2082
    %v2088 = vlaneseq
    %v2089 = vshrl.u32 %v2088, 7
    %v2090 = vsub.s32 %v1685, %v2089
    %v2091 = vrot.slane %v1438, %v2090
    %v2092 = vsel %vm1690, %v2091, %v2087
    %v2093 = vlaneseq
    %v2094 = vshrl.u32 %v2093, 7
    %v2095 = vsub.s32 %v1692, %v2094
    %v2096 = vrot.slane %v1439, %v2095
    %v2097 = vsel %vm1697, %v2096, %v2092
    %v2098 = vlaneseq
    %v2099 = vshrl.u32 %v2098, 7
    %v2100 = vsub.s32 %v1699, %v2099
    %v2101 = vrot.slane %v1440, %v2100
    %v2102 = vsel %vm1704, %v2101, %v2097
    %v2103 = vlaneseq
    %v2104 = vshrl.u32 %v2103, 7
    %v2105 = vsub.s32 %v1706, %v2104
    %v2106 = vrot.slane %v1441, %v2105
    %v2107 = vsel %vm1711, %v2106, %v2102
    %v2108 = vlaneseq
    %v2109 = vshrl.u32 %v2108, 7
    %v2110 = vsub.s32 %v743, %v2109
    %v2111 = vrot.slane %v1442, %v2110
    %v2112 = vlaneseq
    %v2113 = vshrl.u32 %v2112, 7
    %v2114 = vsub.s32 %v1608, %v2113
    %v2115 = vrot.slane %v1443, %v2114
    %v2116 = vsel %vm1613, %v2115, %v2111
    %v2117 = vlaneseq
    %v2118 = vshrl.u32 %v2117, 7
    %v2119 = vsub.s32 %v1615, %v2118
    %v2120 = vrot.slane %v1444, %v2119
    %v2121 = vsel %vm1620, %v2120, %v2116
    %v2122 = vlaneseq
    %v2123 = vshrl.u32 %v2122, 7
    %v2124 = vsub.s32 %v1622, %v2123
    %v2125 = vrot.slane %v1445, %v2124
    %v2126 = vsel %vm1627, %v2125, %v2121
    %v2127 = vlaneseq
    %v2128 = vshrl.u32 %v2127, 7
    %v2129 = vsub.s32 %v1629, %v2128
    %v2130 = vrot.slane %v1446, %v2129
    %v2131 = vsel %vm1634, %v2130, %v2126
    %v2132 = vlaneseq
    %v2133 = vshrl.u32 %v2132, 7
    %v2134 = vsub.s32 %v1636, %v2133
    %v2135 = vrot.slane %v1447, %v2134
    %v2136 = vsel %vm1641, %v2135, %v2131
    %v2137 = vlaneseq
    %v2138 = vshrl.u32 %v2137, 7
    %v2139 = vsub.s32 %v1643, %v2138
    %v2140 = vrot.slane %v1448, %v2139
    %v2141 = vsel %vm1648, %v2140, %v2136
    %v2142 = vlaneseq
    %v2143 = vshrl.u32 %v2142, 7
    %v2144 = vsub.s32 %v1650, %v2143
    %v2145 = vrot.slane %v1449, %v2144
    %v2146 = vsel %vm1655, %v2145, %v2141
    %v2147 = vlaneseq
    %v2148 = vshrl.u32 %v2147, 7
    %v2149 = vsub.s32 %v1657, %v2148
    %v2150 = vrot.slane %v1450, %v2149
    %v2151 = vsel %vm1662, %v2150, %v2146
    %v2152 = vlaneseq
    %v2153 = vshrl.u32 %v2152, 7
    %v2154 = vsub.s32 %v1664, %v2153
    %v2155 = vrot.slane %v1451, %v2154
    %v2156 = vsel %vm1669, %v2155, %v2151
    %v2157 = vlaneseq
    %v2158 = vshrl.u32 %v2157, 7
    %v2159 = vsub.s32 %v1671, %v2158
    %v2160 = vrot.slane %v1452, %v2159
    %v2161 = vsel %vm1676, %v2160, %v2156
    %v2162 = vlaneseq
    %v2163 = vshrl.u32 %v2162, 7
    %v2164 = vsub.s32 %v1678, %v2163
    %v2165 = vrot.slane %v1453, %v2164
    %v2166 = vsel %vm1683, %v2165, %v2161
    %v2167 = vlaneseq
    %v2168 = vshrl.u32 %v2167, 7
    %v2169 = vsub.s32 %v1685, %v2168
    %v2170 = vrot.slane %v1454, %v2169
    %v2171 = vsel %vm1690, %v2170, %v2166
    %v2172 = vlaneseq
    %v2173 = vshrl.u32 %v2172, 7
    %v2174 = vsub.s32 %v1692, %v2173
    %v2175 = vrot.slane %v1455, %v2174
    %v2176 = vsel %vm1697, %v2175, %v2171
    %v2177 = vlaneseq
    %v2178 = vshrl.u32 %v2177, 7
    %v2179 = vsub.s32 %v1699, %v2178
    %v2180 = vrot.slane %v1456, %v2179
    %v2181 = vsel %vm1704, %v2180, %v2176
    %v2182 = vlaneseq
    %v2183 = vshrl.u32 %v2182, 7
    %v2184 = vsub.s32 %v1706, %v2183
    %v2185 = vrot.slane %v1457, %v2184
    %v2186 = vsel %vm1711, %v2185, %v2181
    %v2187 = vlaneseq
    %v2188 = vshrl.u32 %v2187, 7
    %v2189 = vsub.s32 %v743, %v2188
    %v2190 = vrot.slane %v1458, %v2189
    %v2191 = vlaneseq
    %v2192 = vshrl.u32 %v2191, 7
    %v2193 = vsub.s32 %v1608, %v2192
    %v2194 = vrot.slane %v1459, %v2193
    %v2195 = vsel %vm1613, %v2194, %v2190
    %v2196 = vlaneseq
    %v2197 = vshrl.u32 %v2196, 7
    %v2198 = vsub.s32 %v1615, %v2197
    %v2199 = vrot.slane %v1460, %v2198
    %v2200 = vsel %vm1620, %v2199, %v2195
    %v2201 = vlaneseq
    %v2202 = vshrl.u32 %v2201, 7
    %v2203 = vsub.s32 %v1622, %v2202
    %v2204 = vrot.slane %v1461, %v2203
    %v2205 = vsel %vm1627, %v2204, %v2200
    %v2206 = vlaneseq
    %v2207 = vshrl.u32 %v2206, 7
    %v2208 = vsub.s32 %v1629, %v2207
    %v2209 = vrot.slane %v1462, %v2208
    %v2210 = vsel %vm1634, %v2209, %v2205
    %v2211 = vlaneseq
    %v2212 = vshrl.u32 %v2211, 7
    %v2213 = vsub.s32 %v1636, %v2212
    %v2214 = vrot.slane %v1463, %v2213
    %v2215 = vsel %vm1641, %v2214, %v2210
    %v2216 = vlaneseq
    %v2217 = vshrl.u32 %v2216, 7
    %v2218 = vsub.s32 %v1643, %v2217
    %v2219 = vrot.slane %v1464, %v2218
    %v2220 = vsel %vm1648, %v2219, %v2215
    %v2221 = vlaneseq
    %v2222 = vshrl.u32 %v2221, 7
    %v2223 = vsub.s32 %v1650, %v2222
    %v2224 = vrot.slane %v1465, %v2223
    %v2225 = vsel %vm1655, %v2224, %v2220
    %v2226 = vlaneseq
    %v2227 = vshrl.u32 %v2226, 7
    %v2228 = vsub.s32 %v1657, %v2227
    %v2229 = vrot.slane %v1466, %v2228
    %v2230 = vsel %vm1662, %v2229, %v2225
    %v2231 = vlaneseq
    %v2232 = vshrl.u32 %v2231, 7
    %v2233 = vsub.s32 %v1664, %v2232
    %v2234 = vrot.slane %v1467, %v2233
    %v2235 = vsel %vm1669, %v2234, %v2230
    %v2236 = vlaneseq
    %v2237 = vshrl.u32 %v2236, 7
    %v2238 = vsub.s32 %v1671, %v2237
    %v2239 = vrot.slane %v1468, %v2238
    %v2240 = vsel %vm1676, %v2239, %v2235
    %v2241 = vlaneseq
    %v2242 = vshrl.u32 %v2241, 7
    %v2243 = vsub.s32 %v1678, %v2242
    %v2244 = vrot.slane %v1469, %v2243
    %v2245 = vsel %vm1683, %v2244, %v2240
    %v2246 = vlaneseq
    %v2247 = vshrl.u32 %v2246, 7
    %v2248 = vsub.s32 %v1685, %v2247
    %v2249 = vrot.slane %v1470, %v2248
    %v2250 = vsel %vm1690, %v2249, %v2245
    %v2251 = vlaneseq
    %v2252 = vshrl.u32 %v2251, 7
    %v2253 = vsub.s32 %v1692, %v2252
    %v2254 = vrot.slane %v1471, %v2253
    %v2255 = vsel %vm1697, %v2254, %v2250
    %v2256 = vlaneseq
    %v2257 = vshrl.u32 %v2256, 7
    %v2258 = vsub.s32 %v1699, %v2257
    %v2259 = vrot.slane %v1472, %v2258
    %v2260 = vsel %vm1704, %v2259, %v2255
    %v2261 = vlaneseq
    %v2262 = vshrl.u32 %v2261, 7
    %v2263 = vsub.s32 %v1706, %v2262
    %v2264 = vrot.slane %v1473, %v2263
    %v2265 = vsel %vm1711, %v2264, %v2260
    %vm2266 = vcmask 1041409
    %v2267 = vsel %vm2266, %v1791, %v1712
    %vm2268 = vcmask 1042434
    %v2269 = vsel %vm2268, %v1870, %v2267
    %vm2270 = vcmask 1043459
    %v2271 = vsel %vm2270, %v1949, %v2269
    %vm2272 = vcmask 1044484
    %v2273 = vsel %vm2272, %v2028, %v2271
    %vm2274 = vcmask 1045509
    %v2275 = vsel %vm2274, %v2107, %v2273
    %vm2276 = vcmask 1046534
    %v2277 = vsel %vm2276, %v2186, %v2275
    %vm2278 = vcmask 1047559
    %v2279 = vsel %vm2278, %v2265, %v2277
    %v2281 = vsel %vm1475, -1e+30, %v2279
    %2282 = vmax.xlane.f32.xlu0 %v2281
    %v2283 = vpop.xlane.xlu0 %2282
    %v2284 = vsub.f32 %v2281, %v2283
    %v2285 = vmul.f32 %v2284, 1.442695
    %v2286 = vpow.pop %v2285
    %2287 = vadd.xlane.f32.xlu0 %v2286
    %v2288 = vpop.xlane.xlu0 %2287
    %v2289 = vrcp.pop %v2288
    %v2290 = vmul.f32 %v2286, %v2289
    %2291 = vst [vmem:[#allocation10] sm:$0xff] %v2290
    // Predicated region
    $region42: #{tpu_custom_call.1} parent=1 // pred_check
      _
    $region43: #{tpu_custom_call.1} parent=1 // pred_check_branch
      %2293 = sbr.rel (0) target = $region45
    $region44: #{tpu_custom_call.1} parent=1 // pred_region
      %s2295 = ssub.s32 128, 128
      %2296 = vsyncadd [#allocation4], %s2295
      %s2298 = sshll.u32 [#allocation10], 4
      %s2299 = int_to_ptr.vmem [resolvable:$true] %s2298
      %2301 = dma.vmem_to_hbm [thread:$0]  %s2299, 128, %s6, [#allocation4]
    $region45: #{tpu_custom_call.1} parent=1 // pred_fallthru
      _
    // Predicated region
    $region46: #{tpu_custom_call.1} parent=1 // pred_check
      _
    $region47: #{tpu_custom_call.1} parent=1 // pred_check_branch
      %2303 = sbr.rel (0) target = $region49
    $region48: #{tpu_custom_call.1} parent=1 // pred_region
      %2304 = dma.done [#allocation4], 128
    $region49: #{tpu_custom_call.1} parent=1 // pred_fallthru
      _
    %2305 = vsyncpa [#allocation3], 1
    %2306 = vsyncpa [#allocation6], 1
    %2307 = vsyncpa [#allocation9], 1
    %2308 = vsyncpa [#allocation4], 1

// kernel: tpu_custom_call.1
$region0: #{tpu_custom_call.1}
  #allocation0 [shape = 'u32[]', space=smem, size = 0x4, offset = 0x4, fixed_abs, tag = 'smem constant byte address 0x4 - core index']
  #allocation1 [shape = 'u32[144,128]{1,0:T(1,128)}', space=vmem, size = 0x12000, scoped, tag = 'internal scratch']
  %s0 = inlined_call_operand.hbm [shape: bf16[8,32], index: 0, kind: input, shape index: {}]
  %s1 = inlined_call_operand.hbm [shape: bf16[32,32], index: 1, kind: input, shape index: {}]
  %s2 = inlined_call_operand.vmem [shape: f32[1,32], index: 2, kind: input, shape index: {}]
  %s3 = inlined_call_operand.hbm [shape: bf16[32,128], index: 3, kind: input, shape index: {}]
  %s4 = inlined_call_operand.hbm [shape: s32[8,128], index: 4, kind: input, shape index: {}]
  %s5 = inlined_call_operand.vmem [shape: s32[8,128], index: 5, kind: input, shape index: {}]
  %s6 = inlined_call_operand.hbm [shape: f32[8,128], index: 6, kind: output, shape index: {}]
  %s7 = sld [smem:[#allocation0]]
  $region50: #{tpu_custom_call.1} parent=0
    _
  %s9 = ssub.s32 1, %s7
  %s10 = scalar_select 0, %s9, %s7
  $region1: #{tpu_custom_call.1} parent=0
    #allocation2 [shape = 'u8[2048]{0}', space=vmem, size = 0x800, scoped, tag = 'input window, operand 0, single buffered']
    #allocation3 [shape = 's32[1]{0}', space=sflag, size = 0x4, scoped, tag = 'scoped memory for tpu_custom_call.1']
    #allocation4 [shape = 's32[1]{0}', space=sflag, size = 0x4, scoped, tag = 'scoped memory for tpu_custom_call.1']
    #allocation5 [shape = 'u8[8192]{0}', space=vmem, size = 0x2000, scoped, tag = 'input window, operand 1, single buffered']
    #allocation6 [shape = 's32[1]{0}', space=sflag, size = 0x4, scoped, tag = 'scoped memory for tpu_custom_call.1']
    #allocation7 [shape = 'u8[8192]{0}', space=vmem, size = 0x2000, scoped, tag = 'input window, operand 3, single buffered']
    #allocation8 [shape = 'u8[4096]{0}', space=vmem, size = 0x1000, scoped, tag = 'input window, operand 4, single buffered']
    #allocation9 [shape = 's32[1]{0}', space=sflag, size = 0x4, scoped, tag = 'scoped memory for tpu_custom_call.1']
    #allocation10 [shape = 'u8[4096]{0}', space=vmem, size = 0x1000, scoped, tag = 'output window, operand 0, single buffered']
    %11 = vsyncpa [#allocation3], 0
    %12 = vsyncpa [#allocation6], 0
    %13 = vsyncpa [#allocation9], 0
    %14 = vsyncpa [#allocation4], 0
    // Predicated region
    $region2: #{tpu_custom_call.1} parent=1 // pred_check
      _
    $region3: #{tpu_custom_call.1} parent=1 // pred_check_branch
      %16 = sbr.rel (0) target = $region5
    $region4: #{tpu_custom_call.1} parent=1 // pred_region
      %s18 = ssub.s32 64, 64
      %19 = vsyncadd [#allocation3], %s18
      %s21 = sshll.u32 [#allocation2], 4
      %s22 = int_to_ptr.vmem [resolvable:$true] %s21
      %24 = dma.hbm_to_vmem [thread:$0]  %s0, 64, %s22, [#allocation3]
    $region5: #{tpu_custom_call.1} parent=1 // pred_fallthru
      _
    // Predicated region
    $region6: #{tpu_custom_call.1} parent=1 // pred_check
      _
    $region7: #{tpu_custom_call.1} parent=1 // pred_check_branch
      %26 = sbr.rel (0) target = $region9
    $region8: #{tpu_custom_call.1} parent=1 // pred_region
      %s28 = ssub.s32 256, 256
      %29 = vsyncadd [#allocation6], %s28
      %s30 = sshll.u32 [#allocation5], 4
      %s31 = int_to_ptr.vmem [resolvable:$true] %s30
      %36 = dma.hbm_to_vmem [thread:$0]  %s1, 256, %s31, [#allocation6], 64, 64, 4
    $region9: #{tpu_custom_call.1} parent=1 // pred_fallthru
      _
    // Predicated region
    $region10: #{tpu_custom_call.1} parent=1 // pred_check
      _
    $region11: #{tpu_custom_call.1} parent=1 // pred_check_branch
      %38 = sbr.rel (0) target = $region13
    $region12: #{tpu_custom_call.1} parent=1 // pred_region
      _
    $region13: #{tpu_custom_call.1} parent=1 // pred_fallthru
      _
    // Predicated region
    $region14: #{tpu_custom_call.1} parent=1 // pred_check
      _
    $region15: #{tpu_custom_call.1} parent=1 // pred_check_branch
      %40 = sbr.rel (0) target = $region17
    $region16: #{tpu_custom_call.1} parent=1 // pred_region
      %s42 = ssub.s32 256, 256
      %43 = vsyncadd [#allocation6], %s42
      %s44 = sshll.u32 [#allocation7], 4
      %s45 = int_to_ptr.vmem [resolvable:$true] %s44
      %50 = dma.hbm_to_vmem [thread:$0]  %s3, 256, %s45, [#allocation6], 64, 64, 4
    $region17: #{tpu_custom_call.1} parent=1 // pred_fallthru
      _
    // Predicated region
    $region18: #{tpu_custom_call.1} parent=1 // pred_check
      _
    $region19: #{tpu_custom_call.1} parent=1 // pred_check_branch
      %52 = sbr.rel (0) target = $region21
    $region20: #{tpu_custom_call.1} parent=1 // pred_region
      %s54 = ssub.s32 128, 128
      %55 = vsyncadd [#allocation9], %s54
      %s57 = sshll.u32 [#allocation8], 4
      %s58 = int_to_ptr.vmem [resolvable:$true] %s57
      %60 = dma.hbm_to_vmem [thread:$0]  %s4, 128, %s58, [#allocation9]
    $region21: #{tpu_custom_call.1} parent=1 // pred_fallthru
      _
    // Predicated region
    $region22: #{tpu_custom_call.1} parent=1 // pred_check
      _
    $region23: #{tpu_custom_call.1} parent=1 // pred_check_branch
      %62 = sbr.rel (0) target = $region25
    $region24: #{tpu_custom_call.1} parent=1 // pred_region
      _
    $region25: #{tpu_custom_call.1} parent=1 // pred_fallthru
      _
    // Predicated region
    $region26: #{tpu_custom_call.1} parent=1 // pred_check
      _
    $region27: #{tpu_custom_call.1} parent=1 // pred_check_branch
      %64 = sbr.rel (0) target = $region29
    $region28: #{tpu_custom_call.1} parent=1 // pred_region
      %65 = dma.done [#allocation3], 64
    $region29: #{tpu_custom_call.1} parent=1 // pred_fallthru
      _
    // Predicated region
    $region30: #{tpu_custom_call.1} parent=1 // pred_check
      _
    $region31: #{tpu_custom_call.1} parent=1 // pred_check_branch
      %67 = sbr.rel (0) target = $region33
    $region32: #{tpu_custom_call.1} parent=1 // pred_region
      %68 = dma.done [#allocation6], 256
    $region33: #{tpu_custom_call.1} parent=1 // pred_fallthru
      _
    // Predicated region
    $region34: #{tpu_custom_call.1} parent=1 // pred_check
      _
    $region35: #{tpu_custom_call.1} parent=1 // pred_check_branch
      %70 = sbr.rel (0) target = $region37
    $region36: #{tpu_custom_call.1} parent=1 // pred_region
      %71 = dma.done [#allocation6], 256
    $region37: #{tpu_custom_call.1} parent=1 // pred_fallthru
      _
    // Predicated region
    $region38: #{tpu_custom_call.1} parent=1 // pred_check
      _
    $region39: #{tpu_custom_call.1} parent=1 // pred_check_branch
      %73 = sbr.rel (0) target = $region41
    $region40: #{tpu_custom_call.1} parent=1 // pred_region
      %74 = dma.done [#allocation9], 128
    $region41: #{tpu_custom_call.1} parent=1 // pred_fallthru
      _
    %v76 = vld [vmem:[#allocation2] sm:$0xf]
    %v77 = vld [vmem:[#allocation5] sm:$0xf]
    %v78 = vld [vmem:[#allocation5 + $0x4] sm:$0xf]
    %v79 = vld [vmem:[#allocation5 + $0x8] sm:$0xf]
    %v80 = vld [vmem:[#allocation5 + $0xc] sm:$0xf]
    %v81 = vld [vmem:[%s2] sm:$0x1]
    %v83 = vlaneseq
    %v84 = vshrl.u32 %v83, 7
    %v85 = vsub.s32 0, %v84
    %v86 = vrot.slane %v81, %v85
    %v92 = vunpack.c.l.b16 %v77
    %v93 = vunpack.c.l.b16 %v78
    %v94 = vunpack.c.l.b16 %v79
    %v95 = vunpack.c.l.b16 %v80
    %v96 = vpack.c.b16 %v93, %v92
    %v97 = vpack.c.b16 %v95, %v94
    %vm100 = vcmask 261120
    %v102 = vsel %vm100, %v76, 0
    %104 = vmatprep.subr.bf16.mxu0 0
    %105 = vmatpush1.bf16.msra.mxu0 0
    %106 = vmatprep.subr.bf16.mxu0 0
    %107 = vmatpush1.bf16.msra.mxu0 0
    %108 = vmatprep.subr.bf16.mxu0 0
    %109 = vmatpush1.bf16.msra.mxu0 0
    %110 = vmatprep.subr.bf16.mxu0 0
    %111 = vmatpush1.bf16.msra.mxu0 0
    %112 = vmatprep.subr.bf16.mxu0 0
    %113 = vmatpush1.bf16.msra.mxu0 0
    %114 = vmatprep.subr.bf16.mxu0 0
    %115 = vmatpush1.bf16.msra.mxu0 0
    %116 = vmatprep.subr.bf16.mxu0 0
    %117 = vmatpush1.bf16.msra.mxu0 %v97
    %118 = vmatprep.subr.bf16.mxu0 0
    %119 = vmatpush1.bf16.msra.mxu0 %v96
    %120 = vmatprep.subr.bf16.mxu0 0
    %121 = vmatpush2.bf16.msra.mxu0 0
    %122 = vmatprep.subr.bf16.mxu0 0
    %123 = vmatpush2.bf16.msra.mxu0 0
    %124 = vmatprep.subr.bf16.mxu0 0
    %125 = vmatpush2.bf16.msra.mxu0 0
    %126 = vmatprep.subr.bf16.mxu0 0
    %127 = vmatpush2.bf16.msra.mxu0 0
    %128 = vmatprep.subr.bf16.mxu0 0
    %129 = vmatpush2.bf16.msra.mxu0 0
    %130 = vmatprep.subr.bf16.mxu0 0
    %131 = vmatpush2.bf16.msra.mxu0 0
    %132 = vmatprep.subr.bf16.mxu0 0
    %133 = vmatpush2.bf16.msra.mxu0 0
    %134 = vmatprep.subr.bf16.mxu0 0
    %135 = vmatpush2.bf16.msra.mxu0 0
    %136 = vmatprep.mubr.bf16.mxu0 0
    %137 = vmatmul.mubr.bf16.gmra.mxu0 %v102
    %v138 = vpop.f32.mrf.mxu0
    %v139 = vadd.f32 %v86, %v138
    %v140 = vpop.f32.mrf.mxu0
    %v141 = vpop.f32.mrf.mxu0
    %v142 = vpop.f32.mrf.mxu0
    %143 = vdwg.mxu0
    %v144 = vmax.f32 %v139, 0.0
    %v145 = vpack.c.bf16 %v144, %v144
    %v146 = vld [vmem:[#allocation7] sm:$0xf]
    %v147 = vld [vmem:[#allocation7 + $0x4] sm:$0xf]
    %v148 = vld [vmem:[#allocation7 + $0x8] sm:$0xf]
    %v149 = vld [vmem:[#allocation7 + $0xc] sm:$0xf]
    %v154 = vunpack.c.l.b16 %v146
    %v155 = vunpack.c.l.b16 %v147
    %v156 = vunpack.c.l.b16 %v148
    %v157 = vunpack.c.l.b16 %v149
    %v158 = vpack.c.b16 %v155, %v154
    %v159 = vpack.c.b16 %v157, %v156
    %v163 = vsel %vm100, %v145, 0
    %165 = vmatprep.subr.bf16.mxu0 0
    %166 = vmatpush1.bf16.msra.mxu0 0
    %167 = vmatprep.subr.bf16.mxu0 0
    %168 = vmatpush1.bf16.msra.mxu0 0
    %169 = vmatprep.subr.bf16.mxu0 0
    %170 = vmatpush1.bf16.msra.mxu0 0
    %171 = vmatprep.subr.bf16.mxu0 0
    %172 = vmatpush1.bf16.msra.mxu0 0
    %173 = vmatprep.subr.bf16.mxu0 0
    %174 = vmatpush1.bf16.msra.mxu0 0
    %175 = vmatprep.subr.bf16.mxu0 0
    %176 = vmatpush1.bf16.msra.mxu0 0
    %177 = vmatprep.subr.bf16.mxu0 0
    %178 = vmatpush1.bf16.msra.mxu0 %v159
    %179 = vmatprep.subr.bf16.mxu0 0
    %180 = vmatpush1.bf16.msra.mxu0 %v158
    %181 = vmatprep.subr.bf16.mxu0 0
    %182 = vmatpush2.bf16.msra.mxu0 0
    %183 = vmatprep.subr.bf16.mxu0 0
    %184 = vmatpush2.bf16.msra.mxu0 0
    %185 = vmatprep.subr.bf16.mxu0 0
    %186 = vmatpush2.bf16.msra.mxu0 0
    %187 = vmatprep.subr.bf16.mxu0 0
    %188 = vmatpush2.bf16.msra.mxu0 0
    %189 = vmatprep.subr.bf16.mxu0 0
    %190 = vmatpush2.bf16.msra.mxu0 0
    %191 = vmatprep.subr.bf16.mxu0 0
    %192 = vmatpush2.bf16.msra.mxu0 0
    %193 = vmatprep.subr.bf16.mxu0 0
    %194 = vmatpush2.bf16.msra.mxu0 0
    %195 = vmatprep.subr.bf16.mxu0 0
    %196 = vmatpush2.bf16.msra.mxu0 0
    %197 = vmatprep.mubr.bf16.mxu0 0
    %198 = vmatmul.mubr.bf16.gmra.mxu0 %v163
    %v199 = vpop.f32.mrf.mxu0
    %v200 = vadd.f32 0.0, %v199
    %v201 = vpop.f32.mrf.mxu0
    %v202 = vpop.f32.mrf.mxu0
    %v203 = vpop.f32.mrf.mxu0
    %204 = vdwg.mxu0
    %v205 = vld [vmem:[#allocation8] sm:$0xff]
    %v206 = vlaneseq
    %v207 = vshrl.u32 %v206, 7
    %v208 = vsub.s32 0, %v207
    %v209 = vrot.slane %v205, %v208
    %211 = vbcast.lane.b32.xlu0 %v209, 256
    %v212 = vpop.permute.xlu0 %211
    %s214 = sor.u32 256, 8
    %215 = vbcast.lane.b32.xlu0 %v209, %s214
    %v216 = vpop.permute.xlu0 %215
    %s218 = sor.u32 256, 16
    %219 = vbcast.lane.b32.xlu0 %v209, %s218
    %v220 = vpop.permute.xlu0 %219
    %s222 = sor.u32 256, 24
    %223 = vbcast.lane.b32.xlu0 %v209, %s222
    %v224 = vpop.permute.xlu0 %223
    %s226 = sor.u32 256, 32
    %227 = vbcast.lane.b32.xlu0 %v209, %s226
    %v228 = vpop.permute.xlu0 %227
    %s230 = sor.u32 256, 40
    %231 = vbcast.lane.b32.xlu0 %v209, %s230
    %v232 = vpop.permute.xlu0 %231
    %s234 = sor.u32 256, 48
    %235 = vbcast.lane.b32.xlu0 %v209, %s234
    %v236 = vpop.permute.xlu0 %235
    %s238 = sor.u32 256, 56
    %239 = vbcast.lane.b32.xlu0 %v209, %s238
    %v240 = vpop.permute.xlu0 %239
    %s242 = sor.u32 256, 64
    %243 = vbcast.lane.b32.xlu0 %v209, %s242
    %v244 = vpop.permute.xlu0 %243
    %s246 = sor.u32 256, 72
    %247 = vbcast.lane.b32.xlu0 %v209, %s246
    %v248 = vpop.permute.xlu0 %247
    %s250 = sor.u32 256, 80
    %251 = vbcast.lane.b32.xlu0 %v209, %s250
    %v252 = vpop.permute.xlu0 %251
    %s254 = sor.u32 256, 88
    %255 = vbcast.lane.b32.xlu0 %v209, %s254
    %v256 = vpop.permute.xlu0 %255
    %s258 = sor.u32 256, 96
    %259 = vbcast.lane.b32.xlu0 %v209, %s258
    %v260 = vpop.permute.xlu0 %259
    %s262 = sor.u32 256, 104
    %263 = vbcast.lane.b32.xlu0 %v209, %s262
    %v264 = vpop.permute.xlu0 %263
    %s266 = sor.u32 256, 112
    %267 = vbcast.lane.b32.xlu0 %v209, %s266
    %v268 = vpop.permute.xlu0 %267
    %s270 = sor.u32 256, 120
    %271 = vbcast.lane.b32.xlu0 %v209, %s270
    %v272 = vpop.permute.xlu0 %271
    %v273 = vlaneseq
    %v274 = vshrl.u32 %v273, 7
    %v275 = vsub.s32 1, %v274
    %v276 = vrot.slane %v205, %v275
    %278 = vbcast.lane.b32.xlu0 %v276, 256
    %v279 = vpop.permute.xlu0 %278
    %s281 = sor.u32 256, 8
    %282 = vbcast.lane.b32.xlu0 %v276, %s281
    %v283 = vpop.permute.xlu0 %282
    %s285 = sor.u32 256, 16
    %286 = vbcast.lane.b32.xlu0 %v276, %s285
    %v287 = vpop.permute.xlu0 %286
    %s289 = sor.u32 256, 24
    %290 = vbcast.lane.b32.xlu0 %v276, %s289
    %v291 = vpop.permute.xlu0 %290
    %s293 = sor.u32 256, 32
    %294 = vbcast.lane.b32.xlu0 %v276, %s293
    %v295 = vpop.permute.xlu0 %294
    %s297 = sor.u32 256, 40
    %298 = vbcast.lane.b32.xlu0 %v276, %s297
    %v299 = vpop.permute.xlu0 %298
    %s301 = sor.u32 256, 48
    %302 = vbcast.lane.b32.xlu0 %v276, %s301
    %v303 = vpop.permute.xlu0 %302
    %s305 = sor.u32 256, 56
    %306 = vbcast.lane.b32.xlu0 %v276, %s305
    %v307 = vpop.permute.xlu0 %306
    %s309 = sor.u32 256, 64
    %310 = vbcast.lane.b32.xlu0 %v276, %s309
    %v311 = vpop.permute.xlu0 %310
    %s313 = sor.u32 256, 72
    %314 = vbcast.lane.b32.xlu0 %v276, %s313
    %v315 = vpop.permute.xlu0 %314
    %s317 = sor.u32 256, 80
    %318 = vbcast.lane.b32.xlu0 %v276, %s317
    %v319 = vpop.permute.xlu0 %318
    %s321 = sor.u32 256, 88
    %322 = vbcast.lane.b32.xlu0 %v276, %s321
    %v323 = vpop.permute.xlu0 %322
    %s325 = sor.u32 256, 96
    %326 = vbcast.lane.b32.xlu0 %v276, %s325
    %v327 = vpop.permute.xlu0 %326
    %s329 = sor.u32 256, 104
    %330 = vbcast.lane.b32.xlu0 %v276, %s329
    %v331 = vpop.permute.xlu0 %330
    %s333 = sor.u32 256, 112
    %334 = vbcast.lane.b32.xlu0 %v276, %s333
    %v335 = vpop.permute.xlu0 %334
    %s337 = sor.u32 256, 120
    %338 = vbcast.lane.b32.xlu0 %v276, %s337
    %v339 = vpop.permute.xlu0 %338
    %v340 = vlaneseq
    %v341 = vshrl.u32 %v340, 7
    %v342 = vsub.s32 2, %v341
    %v343 = vrot.slane %v205, %v342
    %345 = vbcast.lane.b32.xlu0 %v343, 256
    %v346 = vpop.permute.xlu0 %345
    %s348 = sor.u32 256, 8
    %349 = vbcast.lane.b32.xlu0 %v343, %s348
    %v350 = vpop.permute.xlu0 %349
    %s352 = sor.u32 256, 16
    %353 = vbcast.lane.b32.xlu0 %v343, %s352
    %v354 = vpop.permute.xlu0 %353
    %s356 = sor.u32 256, 24
    %357 = vbcast.lane.b32.xlu0 %v343, %s356
    %v358 = vpop.permute.xlu0 %357
    %s360 = sor.u32 256, 32
    %361 = vbcast.lane.b32.xlu0 %v343, %s360
    %v362 = vpop.permute.xlu0 %361
    %s364 = sor.u32 256, 40
    %365 = vbcast.lane.b32.xlu0 %v343, %s364
    %v366 = vpop.permute.xlu0 %365
    %s368 = sor.u32 256, 48
    %369 = vbcast.lane.b32.xlu0 %v343, %s368
    %v370 = vpop.permute.xlu0 %369
    %s372 = sor.u32 256, 56
    %373 = vbcast.lane.b32.xlu0 %v343, %s372
    %v374 = vpop.permute.xlu0 %373
    %s376 = sor.u32 256, 64
    %377 = vbcast.lane.b32.xlu0 %v343, %s376
    %v378 = vpop.permute.xlu0 %377
    %s380 = sor.u32 256, 72
    %381 = vbcast.lane.b32.xlu0 %v343, %s380
    %v382 = vpop.permute.xlu0 %381
    %s384 = sor.u32 256, 80
    %385 = vbcast.lane.b32.xlu0 %v343, %s384
    %v386 = vpop.permute.xlu0 %385
    %s388 = sor.u32 256, 88
    %389 = vbcast.lane.b32.xlu0 %v343, %s388
    %v390 = vpop.permute.xlu0 %389
    %s392 = sor.u32 256, 96
    %393 = vbcast.lane.b32.xlu0 %v343, %s392
    %v394 = vpop.permute.xlu0 %393
    %s396 = sor.u32 256, 104
    %397 = vbcast.lane.b32.xlu0 %v343, %s396
    %v398 = vpop.permute.xlu0 %397
    %s400 = sor.u32 256, 112
    %401 = vbcast.lane.b32.xlu0 %v343, %s400
    %v402 = vpop.permute.xlu0 %401
    %s404 = sor.u32 256, 120
    %405 = vbcast.lane.b32.xlu0 %v343, %s404
    %v406 = vpop.permute.xlu0 %405
    %v407 = vlaneseq
    %v408 = vshrl.u32 %v407, 7
    %v409 = vsub.s32 3, %v408
    %v410 = vrot.slane %v205, %v409
    %412 = vbcast.lane.b32.xlu0 %v410, 256
    %v413 = vpop.permute.xlu0 %412
    %s415 = sor.u32 256, 8
    %416 = vbcast.lane.b32.xlu0 %v410, %s415
    %v417 = vpop.permute.xlu0 %416
    %s419 = sor.u32 256, 16
    %420 = vbcast.lane.b32.xlu0 %v410, %s419
    %v421 = vpop.permute.xlu0 %420
    %s423 = sor.u32 256, 24
    %424 = vbcast.lane.b32.xlu0 %v410, %s423
    %v425 = vpop.permute.xlu0 %424
    %s427 = sor.u32 256, 32
    %428 = vbcast.lane.b32.xlu0 %v410, %s427
    %v429 = vpop.permute.xlu0 %428
    %s431 = sor.u32 256, 40
    %432 = vbcast.lane.b32.xlu0 %v410, %s431
    %v433 = vpop.permute.xlu0 %432
    %s435 = sor.u32 256, 48
    %436 = vbcast.lane.b32.xlu0 %v410, %s435
    %v437 = vpop.permute.xlu0 %436
    %s439 = sor.u32 256, 56
    %440 = vbcast.lane.b32.xlu0 %v410, %s439
    %v441 = vpop.permute.xlu0 %440
    %s443 = sor.u32 256, 64
    %444 = vbcast.lane.b32.xlu0 %v410, %s443
    %v445 = vpop.permute.xlu0 %444
    %s447 = sor.u32 256, 72
    %448 = vbcast.lane.b32.xlu0 %v410, %s447
    %v449 = vpop.permute.xlu0 %448
    %s451 = sor.u32 256, 80
    %452 = vbcast.lane.b32.xlu0 %v410, %s451
    %v453 = vpop.permute.xlu0 %452
    %s455 = sor.u32 256, 88
    %456 = vbcast.lane.b32.xlu0 %v410, %s455
    %v457 = vpop.permute.xlu0 %456
    %s459 = sor.u32 256, 96
    %460 = vbcast.lane.b32.xlu0 %v410, %s459
    %v461 = vpop.permute.xlu0 %460
    %s463 = sor.u32 256, 104
    %464 = vbcast.lane.b32.xlu0 %v410, %s463
    %v465 = vpop.permute.xlu0 %464
    %s467 = sor.u32 256, 112
    %468 = vbcast.lane.b32.xlu0 %v410, %s467
    %v469 = vpop.permute.xlu0 %468
    %s471 = sor.u32 256, 120
    %472 = vbcast.lane.b32.xlu0 %v410, %s471
    %v473 = vpop.permute.xlu0 %472
    %v474 = vlaneseq
    %v475 = vshrl.u32 %v474, 7
    %v476 = vsub.s32 4, %v475
    %v477 = vrot.slane %v205, %v476
    %479 = vbcast.lane.b32.xlu0 %v477, 256
    %v480 = vpop.permute.xlu0 %479
    %s482 = sor.u32 256, 8
    %483 = vbcast.lane.b32.xlu0 %v477, %s482
    %v484 = vpop.permute.xlu0 %483
    %s486 = sor.u32 256, 16
    %487 = vbcast.lane.b32.xlu0 %v477, %s486
    %v488 = vpop.permute.xlu0 %487
    %s490 = sor.u32 256, 24
    %491 = vbcast.lane.b32.xlu0 %v477, %s490
    %v492 = vpop.permute.xlu0 %491
    %s494 = sor.u32 256, 32
    %495 = vbcast.lane.b32.xlu0 %v477, %s494
    %v496 = vpop.permute.xlu0 %495
    %s498 = sor.u32 256, 40
    %499 = vbcast.lane.b32.xlu0 %v477, %s498
    %v500 = vpop.permute.xlu0 %499
    %s502 = sor.u32 256, 48
    %503 = vbcast.lane.b32.xlu0 %v477, %s502
    %v504 = vpop.permute.xlu0 %503
    %s506 = sor.u32 256, 56
    %507 = vbcast.lane.b32.xlu0 %v477, %s506
    %v508 = vpop.permute.xlu0 %507
    %s510 = sor.u32 256, 64
    %511 = vbcast.lane.b32.xlu0 %v477, %s510
    %v512 = vpop.permute.xlu0 %511
    %s514 = sor.u32 256, 72
    %515 = vbcast.lane.b32.xlu0 %v477, %s514
    %v516 = vpop.permute.xlu0 %515
    %s518 = sor.u32 256, 80
    %519 = vbcast.lane.b32.xlu0 %v477, %s518
    %v520 = vpop.permute.xlu0 %519
    %s522 = sor.u32 256, 88
    %523 = vbcast.lane.b32.xlu0 %v477, %s522
    %v524 = vpop.permute.xlu0 %523
    %s526 = sor.u32 256, 96
    %527 = vbcast.lane.b32.xlu0 %v477, %s526
    %v528 = vpop.permute.xlu0 %527
    %s530 = sor.u32 256, 104
    %531 = vbcast.lane.b32.xlu0 %v477, %s530
    %v532 = vpop.permute.xlu0 %531
    %s534 = sor.u32 256, 112
    %535 = vbcast.lane.b32.xlu0 %v477, %s534
    %v536 = vpop.permute.xlu0 %535
    %s538 = sor.u32 256, 120
    %539 = vbcast.lane.b32.xlu0 %v477, %s538
    %v540 = vpop.permute.xlu0 %539
    %v541 = vlaneseq
    %v542 = vshrl.u32 %v541, 7
    %v543 = vsub.s32 5, %v542
    %v544 = vrot.slane %v205, %v543
    %546 = vbcast.lane.b32.xlu0 %v544, 256
    %v547 = vpop.permute.xlu0 %546
    %s549 = sor.u32 256, 8
    %550 = vbcast.lane.b32.xlu0 %v544, %s549
    %v551 = vpop.permute.xlu0 %550
    %s553 = sor.u32 256, 16
    %554 = vbcast.lane.b32.xlu0 %v544, %s553
    %v555 = vpop.permute.xlu0 %554
    %s557 = sor.u32 256, 24
    %558 = vbcast.lane.b32.xlu0 %v544, %s557
    %v559 = vpop.permute.xlu0 %558
    %s561 = sor.u32 256, 32
    %562 = vbcast.lane.b32.xlu0 %v544, %s561
    %v563 = vpop.permute.xlu0 %562
    %s565 = sor.u32 256, 40
    %566 = vbcast.lane.b32.xlu0 %v544, %s565
    %v567 = vpop.permute.xlu0 %566
    %s569 = sor.u32 256, 48
    %570 = vbcast.lane.b32.xlu0 %v544, %s569
    %v571 = vpop.permute.xlu0 %570
    %s573 = sor.u32 256, 56
    %574 = vbcast.lane.b32.xlu0 %v544, %s573
    %v575 = vpop.permute.xlu0 %574
    %s577 = sor.u32 256, 64
    %578 = vbcast.lane.b32.xlu0 %v544, %s577
    %v579 = vpop.permute.xlu0 %578
    %s581 = sor.u32 256, 72
    %582 = vbcast.lane.b32.xlu0 %v544, %s581
    %v583 = vpop.permute.xlu0 %582
    %s585 = sor.u32 256, 80
    %586 = vbcast.lane.b32.xlu0 %v544, %s585
    %v587 = vpop.permute.xlu0 %586
    %s589 = sor.u32 256, 88
    %590 = vbcast.lane.b32.xlu0 %v544, %s589
    %v591 = vpop.permute.xlu0 %590
    %s593 = sor.u32 256, 96
    %594 = vbcast.lane.b32.xlu0 %v544, %s593
    %v595 = vpop.permute.xlu0 %594
    %s597 = sor.u32 256, 104
    %598 = vbcast.lane.b32.xlu0 %v544, %s597
    %v599 = vpop.permute.xlu0 %598
    %s601 = sor.u32 256, 112
    %602 = vbcast.lane.b32.xlu0 %v544, %s601
    %v603 = vpop.permute.xlu0 %602
    %s605 = sor.u32 256, 120
    %606 = vbcast.lane.b32.xlu0 %v544, %s605
    %v607 = vpop.permute.xlu0 %606
    %v608 = vlaneseq
    %v609 = vshrl.u32 %v608, 7
    %v610 = vsub.s32 6, %v609
    %v611 = vrot.slane %v205, %v610
    %613 = vbcast.lane.b32.xlu0 %v611, 256
    %v614 = vpop.permute.xlu0 %613
    %s616 = sor.u32 256, 8
    %617 = vbcast.lane.b32.xlu0 %v611, %s616
    %v618 = vpop.permute.xlu0 %617
    %s620 = sor.u32 256, 16
    %621 = vbcast.lane.b32.xlu0 %v611, %s620
    %v622 = vpop.permute.xlu0 %621
    %s624 = sor.u32 256, 24
    %625 = vbcast.lane.b32.xlu0 %v611, %s624
    %v626 = vpop.permute.xlu0 %625
    %s628 = sor.u32 256, 32
    %629 = vbcast.lane.b32.xlu0 %v611, %s628
    %v630 = vpop.permute.xlu0 %629
    %s632 = sor.u32 256, 40
    %633 = vbcast.lane.b32.xlu0 %v611, %s632
    %v634 = vpop.permute.xlu0 %633
    %s636 = sor.u32 256, 48
    %637 = vbcast.lane.b32.xlu0 %v611, %s636
    %v638 = vpop.permute.xlu0 %637
    %s640 = sor.u32 256, 56
    %641 = vbcast.lane.b32.xlu0 %v611, %s640
    %v642 = vpop.permute.xlu0 %641
    %s644 = sor.u32 256, 64
    %645 = vbcast.lane.b32.xlu0 %v611, %s644
    %v646 = vpop.permute.xlu0 %645
    %s648 = sor.u32 256, 72
    %649 = vbcast.lane.b32.xlu0 %v611, %s648
    %v650 = vpop.permute.xlu0 %649
    %s652 = sor.u32 256, 80
    %653 = vbcast.lane.b32.xlu0 %v611, %s652
    %v654 = vpop.permute.xlu0 %653
    %s656 = sor.u32 256, 88
    %657 = vbcast.lane.b32.xlu0 %v611, %s656
    %v658 = vpop.permute.xlu0 %657
    %s660 = sor.u32 256, 96
    %661 = vbcast.lane.b32.xlu0 %v611, %s660
    %v662 = vpop.permute.xlu0 %661
    %s664 = sor.u32 256, 104
    %665 = vbcast.lane.b32.xlu0 %v611, %s664
    %v666 = vpop.permute.xlu0 %665
    %s668 = sor.u32 256, 112
    %669 = vbcast.lane.b32.xlu0 %v611, %s668
    %v670 = vpop.permute.xlu0 %669
    %s672 = sor.u32 256, 120
    %673 = vbcast.lane.b32.xlu0 %v611, %s672
    %v674 = vpop.permute.xlu0 %673
    %v675 = vlaneseq
    %v676 = vshrl.u32 %v675, 7
    %v677 = vsub.s32 7, %v676
    %v678 = vrot.slane %v205, %v677
    %680 = vbcast.lane.b32.xlu0 %v678, 256
    %v681 = vpop.permute.xlu0 %680
    %s683 = sor.u32 256, 8
    %684 = vbcast.lane.b32.xlu0 %v678, %s683
    %v685 = vpop.permute.xlu0 %684
    %s687 = sor.u32 256, 16
    %688 = vbcast.lane.b32.xlu0 %v678, %s687
    %v689 = vpop.permute.xlu0 %688
    %s691 = sor.u32 256, 24
    %692 = vbcast.lane.b32.xlu0 %v678, %s691
    %v693 = vpop.permute.xlu0 %692
    %s695 = sor.u32 256, 32
    %696 = vbcast.lane.b32.xlu0 %v678, %s695
    %v697 = vpop.permute.xlu0 %696
    %s699 = sor.u32 256, 40
    %700 = vbcast.lane.b32.xlu0 %v678, %s699
    %v701 = vpop.permute.xlu0 %700
    %s703 = sor.u32 256, 48
    %704 = vbcast.lane.b32.xlu0 %v678, %s703
    %v705 = vpop.permute.xlu0 %704
    %s707 = sor.u32 256, 56
    %708 = vbcast.lane.b32.xlu0 %v678, %s707
    %v709 = vpop.permute.xlu0 %708
    %s711 = sor.u32 256, 64
    %712 = vbcast.lane.b32.xlu0 %v678, %s711
    %v713 = vpop.permute.xlu0 %712
    %s715 = sor.u32 256, 72
    %716 = vbcast.lane.b32.xlu0 %v678, %s715
    %v717 = vpop.permute.xlu0 %716
    %s719 = sor.u32 256, 80
    %720 = vbcast.lane.b32.xlu0 %v678, %s719
    %v721 = vpop.permute.xlu0 %720
    %s723 = sor.u32 256, 88
    %724 = vbcast.lane.b32.xlu0 %v678, %s723
    %v725 = vpop.permute.xlu0 %724
    %s727 = sor.u32 256, 96
    %728 = vbcast.lane.b32.xlu0 %v678, %s727
    %v729 = vpop.permute.xlu0 %728
    %s731 = sor.u32 256, 104
    %732 = vbcast.lane.b32.xlu0 %v678, %s731
    %v733 = vpop.permute.xlu0 %732
    %s735 = sor.u32 256, 112
    %736 = vbcast.lane.b32.xlu0 %v678, %s735
    %v737 = vpop.permute.xlu0 %736
    %s739 = sor.u32 256, 120
    %740 = vbcast.lane.b32.xlu0 %v678, %s739
    %v741 = vpop.permute.xlu0 %740
    %v742 = vlaneseq
    %v743 = vand.u32 %v742, 127
    %vm744 = vcmp.eq.s32.totalorder %v743, %v212
    %vm745 = vcmp.eq.s32.totalorder %v743, %v216
    %vm746 = vcmp.eq.s32.totalorder %v743, %v220
    %vm747 = vcmp.eq.s32.totalorder %v743, %v224
    %vm748 = vcmp.eq.s32.totalorder %v743, %v228
    %vm749 = vcmp.eq.s32.totalorder %v743, %v232
    %vm750 = vcmp.eq.s32.totalorder %v743, %v236
    %vm751 = vcmp.eq.s32.totalorder %v743, %v240
    %vm752 = vcmp.eq.s32.totalorder %v743, %v244
    %vm753 = vcmp.eq.s32.totalorder %v743, %v248
    %vm754 = vcmp.eq.s32.totalorder %v743, %v252
    %vm755 = vcmp.eq.s32.totalorder %v743, %v256
    %vm756 = vcmp.eq.s32.totalorder %v743, %v260
    %vm757 = vcmp.eq.s32.totalorder %v743, %v264
    %vm758 = vcmp.eq.s32.totalorder %v743, %v268
    %vm759 = vcmp.eq.s32.totalorder %v743, %v272
    %vm760 = vcmp.eq.s32.totalorder %v743, %v279
    %vm761 = vcmp.eq.s32.totalorder %v743, %v283
    %vm762 = vcmp.eq.s32.totalorder %v743, %v287
    %vm763 = vcmp.eq.s32.totalorder %v743, %v291
    %vm764 = vcmp.eq.s32.totalorder %v743, %v295
    %vm765 = vcmp.eq.s32.totalorder %v743, %v299
    %vm766 = vcmp.eq.s32.totalorder %v743, %v303
    %vm767 = vcmp.eq.s32.totalorder %v743, %v307
    %vm768 = vcmp.eq.s32.totalorder %v743, %v311
    %vm769 = vcmp.eq.s32.totalorder %v743, %v315
    %vm770 = vcmp.eq.s32.totalorder %v743, %v319
    %vm771 = vcmp.eq.s32.totalorder %v743, %v323
    %vm772 = vcmp.eq.s32.totalorder %v743, %v327
    %vm773 = vcmp.eq.s32.totalorder %v743, %v331
    %vm774 = vcmp.eq.s32.totalorder %v743, %v335
    %vm775 = vcmp.eq.s32.totalorder %v743, %v339
    %vm776 = vcmp.eq.s32.totalorder %v743, %v346
    %vm777 = vcmp.eq.s32.totalorder %v743, %v350
    %vm778 = vcmp.eq.s32.totalorder %v743, %v354
    %vm779 = vcmp.eq.s32.totalorder %v743, %v358
    %vm780 = vcmp.eq.s32.totalorder %v743, %v362
    %vm781 = vcmp.eq.s32.totalorder %v743, %v366
    %vm782 = vcmp.eq.s32.totalorder %v743, %v370
    %vm783 = vcmp.eq.s32.totalorder %v743, %v374
    %vm784 = vcmp.eq.s32.totalorder %v743, %v378
    %vm785 = vcmp.eq.s32.totalorder %v743, %v382
    %vm786 = vcmp.eq.s32.totalorder %v743, %v386
    %vm787 = vcmp.eq.s32.totalorder %v743, %v390
    %vm788 = vcmp.eq.s32.totalorder %v743, %v394
    %vm789 = vcmp.eq.s32.totalorder %v743, %v398
    %vm790 = vcmp.eq.s32.totalorder %v743, %v402
    %vm791 = vcmp.eq.s32.totalorder %v743, %v406
    %vm792 = vcmp.eq.s32.totalorder %v743, %v413
    %vm793 = vcmp.eq.s32.totalorder %v743, %v417
    %vm794 = vcmp.eq.s32.totalorder %v743, %v421
    %vm795 = vcmp.eq.s32.totalorder %v743, %v425
    %vm796 = vcmp.eq.s32.totalorder %v743, %v429
    %vm797 = vcmp.eq.s32.totalorder %v743, %v433
    %vm798 = vcmp.eq.s32.totalorder %v743, %v437
    %vm799 = vcmp.eq.s32.totalorder %v743, %v441
    %vm800 = vcmp.eq.s32.totalorder %v743, %v445
    %vm801 = vcmp.eq.s32.totalorder %v743, %v449
    %vm802 = vcmp.eq.s32.totalorder %v743, %v453
    %vm803 = vcmp.eq.s32.totalorder %v743, %v457
    %vm804 = vcmp.eq.s32.totalorder %v743, %v461
    %vm805 = vcmp.eq.s32.totalorder %v743, %v465
    %vm806 = vcmp.eq.s32.totalorder %v743, %v469
    %vm807 = vcmp.eq.s32.totalorder %v743, %v473
    %vm808 = vcmp.eq.s32.totalorder %v743, %v480
    %vm809 = vcmp.eq.s32.totalorder %v743, %v484
    %vm810 = vcmp.eq.s32.totalorder %v743, %v488
    %vm811 = vcmp.eq.s32.totalorder %v743, %v492
    %vm812 = vcmp.eq.s32.totalorder %v743, %v496
    %vm813 = vcmp.eq.s32.totalorder %v743, %v500
    %vm814 = vcmp.eq.s32.totalorder %v743, %v504
    %vm815 = vcmp.eq.s32.totalorder %v743, %v508
    %vm816 = vcmp.eq.s32.totalorder %v743, %v512
    %vm817 = vcmp.eq.s32.totalorder %v743, %v516
    %vm818 = vcmp.eq.s32.totalorder %v743, %v520
    %vm819 = vcmp.eq.s32.totalorder %v743, %v524
    %vm820 = vcmp.eq.s32.totalorder %v743, %v528
    %vm821 = vcmp.eq.s32.totalorder %v743, %v532
    %vm822 = vcmp.eq.s32.totalorder %v743, %v536
    %vm823 = vcmp.eq.s32.totalorder %v743, %v540
    %vm824 = vcmp.eq.s32.totalorder %v743, %v547
    %vm825 = vcmp.eq.s32.totalorder %v743, %v551
    %vm826 = vcmp.eq.s32.totalorder %v743, %v555
    %vm827 = vcmp.eq.s32.totalorder %v743, %v559
    %vm828 = vcmp.eq.s32.totalorder %v743, %v563
    %vm829 = vcmp.eq.s32.totalorder %v743, %v567
    %vm830 = vcmp.eq.s32.totalorder %v743, %v571
    %vm831 = vcmp.eq.s32.totalorder %v743, %v575
    %vm832 = vcmp.eq.s32.totalorder %v743, %v579
    %vm833 = vcmp.eq.s32.totalorder %v743, %v583
    %vm834 = vcmp.eq.s32.totalorder %v743, %v587
    %vm835 = vcmp.eq.s32.totalorder %v743, %v591
    %vm836 = vcmp.eq.s32.totalorder %v743, %v595
    %vm837 = vcmp.eq.s32.totalorder %v743, %v599
    %vm838 = vcmp.eq.s32.totalorder %v743, %v603
    %vm839 = vcmp.eq.s32.totalorder %v743, %v607
    %vm840 = vcmp.eq.s32.totalorder %v743, %v614
    %vm841 = vcmp.eq.s32.totalorder %v743, %v618
    %vm842 = vcmp.eq.s32.totalorder %v743, %v622
    %vm843 = vcmp.eq.s32.totalorder %v743, %v626
    %vm844 = vcmp.eq.s32.totalorder %v743, %v630
    %vm845 = vcmp.eq.s32.totalorder %v743, %v634
    %vm846 = vcmp.eq.s32.totalorder %v743, %v638
    %vm847 = vcmp.eq.s32.totalorder %v743, %v642
    %vm848 = vcmp.eq.s32.totalorder %v743, %v646
    %vm849 = vcmp.eq.s32.totalorder %v743, %v650
    %vm850 = vcmp.eq.s32.totalorder %v743, %v654
    %vm851 = vcmp.eq.s32.totalorder %v743, %v658
    %vm852 = vcmp.eq.s32.totalorder %v743, %v662
    %vm853 = vcmp.eq.s32.totalorder %v743, %v666
    %vm854 = vcmp.eq.s32.totalorder %v743, %v670
    %vm855 = vcmp.eq.s32.totalorder %v743, %v674
    %vm856 = vcmp.eq.s32.totalorder %v743, %v681
    %vm857 = vcmp.eq.s32.totalorder %v743, %v685
    %vm858 = vcmp.eq.s32.totalorder %v743, %v689
    %vm859 = vcmp.eq.s32.totalorder %v743, %v693
    %vm860 = vcmp.eq.s32.totalorder %v743, %v697
    %vm861 = vcmp.eq.s32.totalorder %v743, %v701
    %vm862 = vcmp.eq.s32.totalorder %v743, %v705
    %vm863 = vcmp.eq.s32.totalorder %v743, %v709
    %vm864 = vcmp.eq.s32.totalorder %v743, %v713
    %vm865 = vcmp.eq.s32.totalorder %v743, %v717
    %vm866 = vcmp.eq.s32.totalorder %v743, %v721
    %vm867 = vcmp.eq.s32.totalorder %v743, %v725
    %vm868 = vcmp.eq.s32.totalorder %v743, %v729
    %vm869 = vcmp.eq.s32.totalorder %v743, %v733
    %vm870 = vcmp.eq.s32.totalorder %v743, %v737
    %vm871 = vcmp.eq.s32.totalorder %v743, %v741
    %v873 = vcombine.high %v200, %v200
    %v875 = vunpack.c.l.s4 1966171168
    %v876 = vunpack.c.0.s8 %v875
    %v877 = vlaneseq
    %v878 = vshrl.u32 %v877, 7
    %v879 = vsub.s32 %v876, %v878
    %v880 = vrot.slane %v200, %v879
    %v882 = vunpack.c.l.s4 1966171168
    %v883 = vunpack.c.0.s8 %v882
    %v884 = vlaneseq
    %v885 = vshrl.u32 %v884, 7
    %v886 = vsub.s32 %v883, %v885
    %v887 = vrot.slane %v873, %v886
    %v888 = vcombine.high %v880, %v880
    %v889 = vcombine.high %v887, %v887
    %v891 = vunpack.c.l.s4 1966171168
    %v892 = vunpack.c.0.s8 %v891
    %v893 = vlaneseq
    %v894 = vshrl.u32 %v893, 7
    %v895 = vsub.s32 %v892, %v894
    %v896 = vrot.slane %v880, %v895
    %v898 = vunpack.c.l.s4 1966171168
    %v899 = vunpack.c.0.s8 %v898
    %v900 = vlaneseq
    %v901 = vshrl.u32 %v900, 7
    %v902 = vsub.s32 %v899, %v901
    %v903 = vrot.slane %v887, %v902
    %v905 = vunpack.c.l.s4 1966171168
    %v906 = vunpack.c.0.s8 %v905
    %v907 = vlaneseq
    %v908 = vshrl.u32 %v907, 7
    %v909 = vsub.s32 %v906, %v908
    %v910 = vrot.slane %v888, %v909
    %v912 = vunpack.c.l.s4 1966171168
    %v913 = vunpack.c.0.s8 %v912
    %v914 = vlaneseq
    %v915 = vshrl.u32 %v914, 7
    %v916 = vsub.s32 %v913, %v915
    %v917 = vrot.slane %v889, %v916
    %v918 = vcombine.high %v896, %v896
    %v919 = vcombine.high %v903, %v903
    %v920 = vcombine.high %v910, %v910
    %v921 = vcombine.high %v917, %v917
    %v922 = vlaneseq
    %v923 = vshrl.u32 %v922, 7
    %v924 = vsub.s32 0, %v923
    %v925 = vrot.slane %v896, %v924
    %v926 = vlaneseq
    %v927 = vshrl.u32 %v926, 7
    %v928 = vsub.s32 0, %v927
    %v929 = vrot.slane %v910, %v928
    %v930 = vlaneseq
    %v931 = vshrl.u32 %v930, 7
    %v932 = vsub.s32 0, %v931
    %v933 = vrot.slane %v918, %v932
    %v934 = vlaneseq
    %v935 = vshrl.u32 %v934, 7
    %v936 = vsub.s32 0, %v935
    %v937 = vrot.slane %v920, %v936
    %v938 = vlaneseq
    %v939 = vshrl.u32 %v938, 7
    %v940 = vsub.s32 0, %v939
    %v941 = vrot.slane %v903, %v940
    %v942 = vlaneseq
    %v943 = vshrl.u32 %v942, 7
    %v944 = vsub.s32 0, %v943
    %v945 = vrot.slane %v917, %v944
    %v946 = vlaneseq
    %v947 = vshrl.u32 %v946, 7
    %v948 = vsub.s32 0, %v947
    %v949 = vrot.slane %v919, %v948
    %v950 = vlaneseq
    %v951 = vshrl.u32 %v950, 7
    %v952 = vsub.s32 0, %v951
    %v953 = vrot.slane %v921, %v952
    %v962 = vsel %vm744, %v925, 0.0
    %v963 = vsel %vm745, %v925, 0.0
    %v964 = vsel %vm746, %v925, 0.0
    %v965 = vsel %vm747, %v925, 0.0
    %v966 = vsel %vm748, %v925, 0.0
    %v967 = vsel %vm749, %v925, 0.0
    %v968 = vsel %vm750, %v925, 0.0
    %v969 = vsel %vm751, %v925, 0.0
    %v970 = vsel %vm752, %v925, 0.0
    %v971 = vsel %vm753, %v925, 0.0
    %v972 = vsel %vm754, %v925, 0.0
    %v973 = vsel %vm755, %v925, 0.0
    %v974 = vsel %vm756, %v925, 0.0
    %v975 = vsel %vm757, %v925, 0.0
    %v976 = vsel %vm758, %v925, 0.0
    %v977 = vsel %vm759, %v925, 0.0
    %v978 = vsel %vm760, %v929, 0.0
    %v979 = vsel %vm761, %v929, 0.0
    %v980 = vsel %vm762, %v929, 0.0
    %v981 = vsel %vm763, %v929, 0.0
    %v982 = vsel %vm764, %v929, 0.0
    %v983 = vsel %vm765, %v929, 0.0
    %v984 = vsel %vm766, %v929, 0.0
    %v985 = vsel %vm767, %v929, 0.0
    %v986 = vsel %vm768, %v929, 0.0
    %v987 = vsel %vm769, %v929, 0.0
    %v988 = vsel %vm770, %v929, 0.0
    %v989 = vsel %vm771, %v929, 0.0
    %v990 = vsel %vm772, %v929, 0.0
    %v991 = vsel %vm773, %v929, 0.0
    %v992 = vsel %vm774, %v929, 0.0
    %v993 = vsel %vm775, %v929, 0.0
    %v994 = vsel %vm776, %v933, 0.0
    %v995 = vsel %vm777, %v933, 0.0
    %v996 = vsel %vm778, %v933, 0.0
    %v997 = vsel %vm779, %v933, 0.0
    %v998 = vsel %vm780, %v933, 0.0
    %v999 = vsel %vm781, %v933, 0.0
    %v1000 = vsel %vm782, %v933, 0.0
    %v1001 = vsel %vm783, %v933, 0.0
    %v1002 = vsel %vm784, %v933, 0.0
    %v1003 = vsel %vm785, %v933, 0.0
    %v1004 = vsel %vm786, %v933, 0.0
    %v1005 = vsel %vm787, %v933, 0.0
    %v1006 = vsel %vm788, %v933, 0.0
    %v1007 = vsel %vm789, %v933, 0.0
    %v1008 = vsel %vm790, %v933, 0.0
    %v1009 = vsel %vm791, %v933, 0.0
    %v1010 = vsel %vm792, %v937, 0.0
    %v1011 = vsel %vm793, %v937, 0.0
    %v1012 = vsel %vm794, %v937, 0.0
    %v1013 = vsel %vm795, %v937, 0.0
    %v1014 = vsel %vm796, %v937, 0.0
    %v1015 = vsel %vm797, %v937, 0.0
    %v1016 = vsel %vm798, %v937, 0.0
    %v1017 = vsel %vm799, %v937, 0.0
    %v1018 = vsel %vm800, %v937, 0.0
    %v1019 = vsel %vm801, %v937, 0.0
    %v1020 = vsel %vm802, %v937, 0.0
    %v1021 = vsel %vm803, %v937, 0.0
    %v1022 = vsel %vm804, %v937, 0.0
    %v1023 = vsel %vm805, %v937, 0.0
    %v1024 = vsel %vm806, %v937, 0.0
    %v1025 = vsel %vm807, %v937, 0.0
    %v1026 = vsel %vm808, %v941, 0.0
    %v1027 = vsel %vm809, %v941, 0.0
    %v1028 = vsel %vm810, %v941, 0.0
    %v1029 = vsel %vm811, %v941, 0.0
    %v1030 = vsel %vm812, %v941, 0.0
    %v1031 = vsel %vm813, %v941, 0.0
    %v1032 = vsel %vm814, %v941, 0.0
    %v1033 = vsel %vm815, %v941, 0.0
    %v1034 = vsel %vm816, %v941, 0.0
    %v1035 = vsel %vm817, %v941, 0.0
    %v1036 = vsel %vm818, %v941, 0.0
    %v1037 = vsel %vm819, %v941, 0.0
    %v1038 = vsel %vm820, %v941, 0.0
    %v1039 = vsel %vm821, %v941, 0.0
    %v1040 = vsel %vm822, %v941, 0.0
    %v1041 = vsel %vm823, %v941, 0.0
    %v1042 = vsel %vm824, %v945, 0.0
    %v1043 = vsel %vm825, %v945, 0.0
    %v1044 = vsel %vm826, %v945, 0.0
    %v1045 = vsel %vm827, %v945, 0.0
    %v1046 = vsel %vm828, %v945, 0.0
    %v1047 = vsel %vm829, %v945, 0.0
    %v1048 = vsel %vm830, %v945, 0.0
    %v1049 = vsel %vm831, %v945, 0.0
    %v1050 = vsel %vm832, %v945, 0.0
    %v1051 = vsel %vm833, %v945, 0.0
    %v1052 = vsel %vm834, %v945, 0.0
    %v1053 = vsel %vm835, %v945, 0.0
    %v1054 = vsel %vm836, %v945, 0.0
    %v1055 = vsel %vm837, %v945, 0.0
    %v1056 = vsel %vm838, %v945, 0.0
    %v1057 = vsel %vm839, %v945, 0.0
    %v1058 = vsel %vm840, %v949, 0.0
    %v1059 = vsel %vm841, %v949, 0.0
    %v1060 = vsel %vm842, %v949, 0.0
    %v1061 = vsel %vm843, %v949, 0.0
    %v1062 = vsel %vm844, %v949, 0.0
    %v1063 = vsel %vm845, %v949, 0.0
    %v1064 = vsel %vm846, %v949, 0.0
    %v1065 = vsel %vm847, %v949, 0.0
    %v1066 = vsel %vm848, %v949, 0.0
    %v1067 = vsel %vm849, %v949, 0.0
    %v1068 = vsel %vm850, %v949, 0.0
    %v1069 = vsel %vm851, %v949, 0.0
    %v1070 = vsel %vm852, %v949, 0.0
    %v1071 = vsel %vm853, %v949, 0.0
    %v1072 = vsel %vm854, %v949, 0.0
    %v1073 = vsel %vm855, %v949, 0.0
    %v1074 = vsel %vm856, %v953, 0.0
    %v1075 = vsel %vm857, %v953, 0.0
    %v1076 = vsel %vm858, %v953, 0.0
    %v1077 = vsel %vm859, %v953, 0.0
    %v1078 = vsel %vm860, %v953, 0.0
    %v1079 = vsel %vm861, %v953, 0.0
    %v1080 = vsel %vm862, %v953, 0.0
    %v1081 = vsel %vm863, %v953, 0.0
    %v1082 = vsel %vm864, %v953, 0.0
    %v1083 = vsel %vm865, %v953, 0.0
    %v1084 = vsel %vm866, %v953, 0.0
    %v1085 = vsel %vm867, %v953, 0.0
    %v1086 = vsel %vm868, %v953, 0.0
    %v1087 = vsel %vm869, %v953, 0.0
    %v1088 = vsel %vm870, %v953, 0.0
    %v1089 = vsel %vm871, %v953, 0.0
    %1090 = vadd.xlane.f32.xlu0 %v962
    %v1091 = vpop.xlane.xlu0 %1090
    %1092 = vadd.xlane.f32.xlu0 %v963
    %v1093 = vpop.xlane.xlu0 %1092
    %1094 = vadd.xlane.f32.xlu0 %v964
    %v1095 = vpop.xlane.xlu0 %1094
    %1096 = vadd.xlane.f32.xlu0 %v965
    %v1097 = vpop.xlane.xlu0 %1096
    %1098 = vadd.xlane.f32.xlu0 %v966
    %v1099 = vpop.xlane.xlu0 %1098
    %1100 = vadd.xlane.f32.xlu0 %v967
    %v1101 = vpop.xlane.xlu0 %1100
    %1102 = vadd.xlane.f32.xlu0 %v968
    %v1103 = vpop.xlane.xlu0 %1102
    %1104 = vadd.xlane.f32.xlu0 %v969
    %v1105 = vpop.xlane.xlu0 %1104
    %1106 = vadd.xlane.f32.xlu0 %v970
    %v1107 = vpop.xlane.xlu0 %1106
    %1108 = vadd.xlane.f32.xlu0 %v971
    %v1109 = vpop.xlane.xlu0 %1108
    %1110 = vadd.xlane.f32.xlu0 %v972
    %v1111 = vpop.xlane.xlu0 %1110
    %1112 = vadd.xlane.f32.xlu0 %v973
    %v1113 = vpop.xlane.xlu0 %1112
    %1114 = vadd.xlane.f32.xlu0 %v974
    %v1115 = vpop.xlane.xlu0 %1114
    %1116 = vadd.xlane.f32.xlu0 %v975
    %v1117 = vpop.xlane.xlu0 %1116
    %1118 = vadd.xlane.f32.xlu0 %v976
    %v1119 = vpop.xlane.xlu0 %1118
    %1120 = vadd.xlane.f32.xlu0 %v977
    %v1121 = vpop.xlane.xlu0 %1120
    %1122 = vadd.xlane.f32.xlu0 %v978
    %v1123 = vpop.xlane.xlu0 %1122
    %1124 = vadd.xlane.f32.xlu0 %v979
    %v1125 = vpop.xlane.xlu0 %1124
    %1126 = vadd.xlane.f32.xlu0 %v980
    %v1127 = vpop.xlane.xlu0 %1126
    %1128 = vadd.xlane.f32.xlu0 %v981
    %v1129 = vpop.xlane.xlu0 %1128
    %1130 = vadd.xlane.f32.xlu0 %v982
    %v1131 = vpop.xlane.xlu0 %1130
    %1132 = vadd.xlane.f32.xlu0 %v983
    %v1133 = vpop.xlane.xlu0 %1132
    %1134 = vadd.xlane.f32.xlu0 %v984
    %v1135 = vpop.xlane.xlu0 %1134
    %1136 = vadd.xlane.f32.xlu0 %v985
    %v1137 = vpop.xlane.xlu0 %1136
    %1138 = vadd.xlane.f32.xlu0 %v986
    %v1139 = vpop.xlane.xlu0 %1138
    %1140 = vadd.xlane.f32.xlu0 %v987
    %v1141 = vpop.xlane.xlu0 %1140
    %1142 = vadd.xlane.f32.xlu0 %v988
    %v1143 = vpop.xlane.xlu0 %1142
    %1144 = vadd.xlane.f32.xlu0 %v989
    %v1145 = vpop.xlane.xlu0 %1144
    %1146 = vadd.xlane.f32.xlu0 %v990
    %v1147 = vpop.xlane.xlu0 %1146
    %1148 = vadd.xlane.f32.xlu0 %v991
    %v1149 = vpop.xlane.xlu0 %1148
    %1150 = vadd.xlane.f32.xlu0 %v992
    %v1151 = vpop.xlane.xlu0 %1150
    %1152 = vadd.xlane.f32.xlu0 %v993
    %v1153 = vpop.xlane.xlu0 %1152
    %1154 = vadd.xlane.f32.xlu0 %v994
    %v1155 = vpop.xlane.xlu0 %1154
    %1156 = vadd.xlane.f32.xlu0 %v995
    %v1157 = vpop.xlane.xlu0 %1156
    %1158 = vadd.xlane.f32.xlu0 %v996
    %v1159 = vpop.xlane.xlu0 %1158
    %1160 = vadd.xlane.f32.xlu0 %v997
    %v1161 = vpop.xlane.xlu0 %1160
    %1162 = vadd.xlane.f32.xlu0 %v998
    %v1163 = vpop.xlane.xlu0 %1162
    %1164 = vadd.xlane.f32.xlu0 %v999
    %v1165 = vpop.xlane.xlu0 %1164
    %1166 = vadd.xlane.f32.xlu0 %v1000
    %v1167 = vpop.xlane.xlu0 %1166
    %1168 = vadd.xlane.f32.xlu0 %v1001
    %v1169 = vpop.xlane.xlu0 %1168
    %1170 = vadd.xlane.f32.xlu0 %v1002
    %v1171 = vpop.xlane.xlu0 %1170
    %1172 = vadd.xlane.f32.xlu0 %v1003
    %v1173 = vpop.xlane.xlu0 %1172
    %1174 = vadd.xlane.f32.xlu0 %v1004
    %v1175 = vpop.xlane.xlu0 %1174
    %1176 = vadd.xlane.f32.xlu0 %v1005
    %v1177 = vpop.xlane.xlu0 %1176
    %1178 = vadd.xlane.f32.xlu0 %v1006
    %v1179 = vpop.xlane.xlu0 %1178
    %1180 = vadd.xlane.f32.xlu0 %v1007
    %v1181 = vpop.xlane.xlu0 %1180
    %1182 = vadd.xlane.f32.xlu0 %v1008
    %v1183 = vpop.xlane.xlu0 %1182
    %1184 = vadd.xlane.f32.xlu0 %v1009
    %v1185 = vpop.xlane.xlu0 %1184
    %1186 = vadd.xlane.f32.xlu0 %v1010
    %v1187 = vpop.xlane.xlu0 %1186
    %1188 = vadd.xlane.f32.xlu0 %v1011
    %v1189 = vpop.xlane.xlu0 %1188
    %1190 = vadd.xlane.f32.xlu0 %v1012
    %v1191 = vpop.xlane.xlu0 %1190
    %1192 = vadd.xlane.f32.xlu0 %v1013
    %v1193 = vpop.xlane.xlu0 %1192
    %1194 = vadd.xlane.f32.xlu0 %v1014
    %v1195 = vpop.xlane.xlu0 %1194
    %1196 = vadd.xlane.f32.xlu0 %v1015
    %v1197 = vpop.xlane.xlu0 %1196
    %1198 = vadd.xlane.f32.xlu0 %v1016
    %v1199 = vpop.xlane.xlu0 %1198
    %1200 = vadd.xlane.f32.xlu0 %v1017
    %v1201 = vpop.xlane.xlu0 %1200
    %1202 = vadd.xlane.f32.xlu0 %v1018
    %v1203 = vpop.xlane.xlu0 %1202
    %1204 = vadd.xlane.f32.xlu0 %v1019
    %v1205 = vpop.xlane.xlu0 %1204
    %1206 = vadd.xlane.f32.xlu0 %v1020
    %v1207 = vpop.xlane.xlu0 %1206
    %1208 = vadd.xlane.f32.xlu0 %v1021
    %v1209 = vpop.xlane.xlu0 %1208
    %1210 = vadd.xlane.f32.xlu0 %v1022
    %v1211 = vpop.xlane.xlu0 %1210
    %1212 = vadd.xlane.f32.xlu0 %v1023
    %v1213 = vpop.xlane.xlu0 %1212
    %1214 = vadd.xlane.f32.xlu0 %v1024
    %v1215 = vpop.xlane.xlu0 %1214
    %1216 = vadd.xlane.f32.xlu0 %v1025
    %v1217 = vpop.xlane.xlu0 %1216
    %1218 = vadd.xlane.f32.xlu0 %v1026
    %v1219 = vpop.xlane.xlu0 %1218
    %1220 = vadd.xlane.f32.xlu0 %v1027
    %v1221 = vpop.xlane.xlu0 %1220
    %1222 = vadd.xlane.f32.xlu0 %v1028
    %v1223 = vpop.xlane.xlu0 %1222
    %1224 = vadd.xlane.f32.xlu0 %v1029
    %v1225 = vpop.xlane.xlu0 %1224
    %1226 = vadd.xlane.f32.xlu0 %v1030
    %v1227 = vpop.xlane.xlu0 %1226
    %1228 = vadd.xlane.f32.xlu0 %v1031
    %v1229 = vpop.xlane.xlu0 %1228
    %1230 = vadd.xlane.f32.xlu0 %v1032
    %v1231 = vpop.xlane.xlu0 %1230
    %1232 = vadd.xlane.f32.xlu0 %v1033
    %v1233 = vpop.xlane.xlu0 %1232
    %1234 = vadd.xlane.f32.xlu0 %v1034
    %v1235 = vpop.xlane.xlu0 %1234
    %1236 = vadd.xlane.f32.xlu0 %v1035
    %v1237 = vpop.xlane.xlu0 %1236
    %1238 = vadd.xlane.f32.xlu0 %v1036
    %v1239 = vpop.xlane.xlu0 %1238
    %1240 = vadd.xlane.f32.xlu0 %v1037
    %v1241 = vpop.xlane.xlu0 %1240
    %1242 = vadd.xlane.f32.xlu0 %v1038
    %v1243 = vpop.xlane.xlu0 %1242
    %1244 = vadd.xlane.f32.xlu0 %v1039
    %v1245 = vpop.xlane.xlu0 %1244
    %1246 = vadd.xlane.f32.xlu0 %v1040
    %v1247 = vpop.xlane.xlu0 %1246
    %1248 = vadd.xlane.f32.xlu0 %v1041
    %v1249 = vpop.xlane.xlu0 %1248
    %1250 = vadd.xlane.f32.xlu0 %v1042
    %v1251 = vpop.xlane.xlu0 %1250
    %1252 = vadd.xlane.f32.xlu0 %v1043
    %v1253 = vpop.xlane.xlu0 %1252
    %1254 = vadd.xlane.f32.xlu0 %v1044
    %v1255 = vpop.xlane.xlu0 %1254
    %1256 = vadd.xlane.f32.xlu0 %v1045
    %v1257 = vpop.xlane.xlu0 %1256
    %1258 = vadd.xlane.f32.xlu0 %v1046
    %v1259 = vpop.xlane.xlu0 %1258
    %1260 = vadd.xlane.f32.xlu0 %v1047
    %v1261 = vpop.xlane.xlu0 %1260
    %1262 = vadd.xlane.f32.xlu0 %v1048
    %v1263 = vpop.xlane.xlu0 %1262
    %1264 = vadd.xlane.f32.xlu0 %v1049
    %v1265 = vpop.xlane.xlu0 %1264
    %1266 = vadd.xlane.f32.xlu0 %v1050
    %v1267 = vpop.xlane.xlu0 %1266
    %1268 = vadd.xlane.f32.xlu0 %v1051
    %v1269 = vpop.xlane.xlu0 %1268
    %1270 = vadd.xlane.f32.xlu0 %v1052
    %v1271 = vpop.xlane.xlu0 %1270
    %1272 = vadd.xlane.f32.xlu0 %v1053
    %v1273 = vpop.xlane.xlu0 %1272
    %1274 = vadd.xlane.f32.xlu0 %v1054
    %v1275 = vpop.xlane.xlu0 %1274
    %1276 = vadd.xlane.f32.xlu0 %v1055
    %v1277 = vpop.xlane.xlu0 %1276
    %1278 = vadd.xlane.f32.xlu0 %v1056
    %v1279 = vpop.xlane.xlu0 %1278
    %1280 = vadd.xlane.f32.xlu0 %v1057
    %v1281 = vpop.xlane.xlu0 %1280
    %1282 = vadd.xlane.f32.xlu0 %v1058
    %v1283 = vpop.xlane.xlu0 %1282
    %1284 = vadd.xlane.f32.xlu0 %v1059
    %v1285 = vpop.xlane.xlu0 %1284
    %1286 = vadd.xlane.f32.xlu0 %v1060
    %v1287 = vpop.xlane.xlu0 %1286
    %1288 = vadd.xlane.f32.xlu0 %v1061
    %v1289 = vpop.xlane.xlu0 %1288
    %1290 = vadd.xlane.f32.xlu0 %v1062
    %v1291 = vpop.xlane.xlu0 %1290
    %1292 = vadd.xlane.f32.xlu0 %v1063
    %v1293 = vpop.xlane.xlu0 %1292
    %1294 = vadd.xlane.f32.xlu0 %v1064
    %v1295 = vpop.xlane.xlu0 %1294
    %1296 = vadd.xlane.f32.xlu0 %v1065
    %v1297 = vpop.xlane.xlu0 %1296
    %1298 = vadd.xlane.f32.xlu0 %v1066
    %v1299 = vpop.xlane.xlu0 %1298
    %1300 = vadd.xlane.f32.xlu0 %v1067
    %v1301 = vpop.xlane.xlu0 %1300
    %1302 = vadd.xlane.f32.xlu0 %v1068
    %v1303 = vpop.xlane.xlu0 %1302
    %1304 = vadd.xlane.f32.xlu0 %v1069
    %v1305 = vpop.xlane.xlu0 %1304
    %1306 = vadd.xlane.f32.xlu0 %v1070
    %v1307 = vpop.xlane.xlu0 %1306
    %1308 = vadd.xlane.f32.xlu0 %v1071
    %v1309 = vpop.xlane.xlu0 %1308
    %1310 = vadd.xlane.f32.xlu0 %v1072
    %v1311 = vpop.xlane.xlu0 %1310
    %1312 = vadd.xlane.f32.xlu0 %v1073
    %v1313 = vpop.xlane.xlu0 %1312
    %1314 = vadd.xlane.f32.xlu0 %v1074
    %v1315 = vpop.xlane.xlu0 %1314
    %1316 = vadd.xlane.f32.xlu0 %v1075
    %v1317 = vpop.xlane.xlu0 %1316
    %1318 = vadd.xlane.f32.xlu0 %v1076
    %v1319 = vpop.xlane.xlu0 %1318
    %1320 = vadd.xlane.f32.xlu0 %v1077
    %v1321 = vpop.xlane.xlu0 %1320
    %1322 = vadd.xlane.f32.xlu0 %v1078
    %v1323 = vpop.xlane.xlu0 %1322
    %1324 = vadd.xlane.f32.xlu0 %v1079
    %v1325 = vpop.xlane.xlu0 %1324
    %1326 = vadd.xlane.f32.xlu0 %v1080
    %v1327 = vpop.xlane.xlu0 %1326
    %1328 = vadd.xlane.f32.xlu0 %v1081
    %v1329 = vpop.xlane.xlu0 %1328
    %1330 = vadd.xlane.f32.xlu0 %v1082
    %v1331 = vpop.xlane.xlu0 %1330
    %1332 = vadd.xlane.f32.xlu0 %v1083
    %v1333 = vpop.xlane.xlu0 %1332
    %1334 = vadd.xlane.f32.xlu0 %v1084
    %v1335 = vpop.xlane.xlu0 %1334
    %1336 = vadd.xlane.f32.xlu0 %v1085
    %v1337 = vpop.xlane.xlu0 %1336
    %1338 = vadd.xlane.f32.xlu0 %v1086
    %v1339 = vpop.xlane.xlu0 %1338
    %1340 = vadd.xlane.f32.xlu0 %v1087
    %v1341 = vpop.xlane.xlu0 %1340
    %1342 = vadd.xlane.f32.xlu0 %v1088
    %v1343 = vpop.xlane.xlu0 %1342
    %1344 = vadd.xlane.f32.xlu0 %v1089
    %v1345 = vpop.xlane.xlu0 %1344
    %v1346 = vadd.f32 %v1091, 0.0
    %v1347 = vadd.f32 %v1093, 0.0
    %v1348 = vadd.f32 %v1095, 0.0
    %v1349 = vadd.f32 %v1097, 0.0
    %v1350 = vadd.f32 %v1099, 0.0
    %v1351 = vadd.f32 %v1101, 0.0
    %v1352 = vadd.f32 %v1103, 0.0
    %v1353 = vadd.f32 %v1105, 0.0
    %v1354 = vadd.f32 %v1107, 0.0
    %v1355 = vadd.f32 %v1109, 0.0
    %v1356 = vadd.f32 %v1111, 0.0
    %v1357 = vadd.f32 %v1113, 0.0
    %v1358 = vadd.f32 %v1115, 0.0
    %v1359 = vadd.f32 %v1117, 0.0
    %v1360 = vadd.f32 %v1119, 0.0
    %v1361 = vadd.f32 %v1121, 0.0
    %v1362 = vadd.f32 %v1123, 0.0
    %v1363 = vadd.f32 %v1125, 0.0
    %v1364 = vadd.f32 %v1127, 0.0
    %v1365 = vadd.f32 %v1129, 0.0
    %v1366 = vadd.f32 %v1131, 0.0
    %v1367 = vadd.f32 %v1133, 0.0
    %v1368 = vadd.f32 %v1135, 0.0
    %v1369 = vadd.f32 %v1137, 0.0
    %v1370 = vadd.f32 %v1139, 0.0
    %v1371 = vadd.f32 %v1141, 0.0
    %v1372 = vadd.f32 %v1143, 0.0
    %v1373 = vadd.f32 %v1145, 0.0
    %v1374 = vadd.f32 %v1147, 0.0
    %v1375 = vadd.f32 %v1149, 0.0
    %v1376 = vadd.f32 %v1151, 0.0
    %v1377 = vadd.f32 %v1153, 0.0
    %v1378 = vadd.f32 %v1155, 0.0
    %v1379 = vadd.f32 %v1157, 0.0
    %v1380 = vadd.f32 %v1159, 0.0
    %v1381 = vadd.f32 %v1161, 0.0
    %v1382 = vadd.f32 %v1163, 0.0
    %v1383 = vadd.f32 %v1165, 0.0
    %v1384 = vadd.f32 %v1167, 0.0
    %v1385 = vadd.f32 %v1169, 0.0
    %v1386 = vadd.f32 %v1171, 0.0
    %v1387 = vadd.f32 %v1173, 0.0
    %v1388 = vadd.f32 %v1175, 0.0
    %v1389 = vadd.f32 %v1177, 0.0
    %v1390 = vadd.f32 %v1179, 0.0
    %v1391 = vadd.f32 %v1181, 0.0
    %v1392 = vadd.f32 %v1183, 0.0
    %v1393 = vadd.f32 %v1185, 0.0
    %v1394 = vadd.f32 %v1187, 0.0
    %v1395 = vadd.f32 %v1189, 0.0
    %v1396 = vadd.f32 %v1191, 0.0
    %v1397 = vadd.f32 %v1193, 0.0
    %v1398 = vadd.f32 %v1195, 0.0
    %v1399 = vadd.f32 %v1197, 0.0
    %v1400 = vadd.f32 %v1199, 0.0
    %v1401 = vadd.f32 %v1201, 0.0
    %v1402 = vadd.f32 %v1203, 0.0
    %v1403 = vadd.f32 %v1205, 0.0
    %v1404 = vadd.f32 %v1207, 0.0
    %v1405 = vadd.f32 %v1209, 0.0
    %v1406 = vadd.f32 %v1211, 0.0
    %v1407 = vadd.f32 %v1213, 0.0
    %v1408 = vadd.f32 %v1215, 0.0
    %v1409 = vadd.f32 %v1217, 0.0
    %v1410 = vadd.f32 %v1219, 0.0
    %v1411 = vadd.f32 %v1221, 0.0
    %v1412 = vadd.f32 %v1223, 0.0
    %v1413 = vadd.f32 %v1225, 0.0
    %v1414 = vadd.f32 %v1227, 0.0
    %v1415 = vadd.f32 %v1229, 0.0
    %v1416 = vadd.f32 %v1231, 0.0
    %v1417 = vadd.f32 %v1233, 0.0
    %v1418 = vadd.f32 %v1235, 0.0
    %v1419 = vadd.f32 %v1237, 0.0
    %v1420 = vadd.f32 %v1239, 0.0
    %v1421 = vadd.f32 %v1241, 0.0
    %v1422 = vadd.f32 %v1243, 0.0
    %v1423 = vadd.f32 %v1245, 0.0
    %v1424 = vadd.f32 %v1247, 0.0
    %v1425 = vadd.f32 %v1249, 0.0
    %v1426 = vadd.f32 %v1251, 0.0
    %v1427 = vadd.f32 %v1253, 0.0
    %v1428 = vadd.f32 %v1255, 0.0
    %v1429 = vadd.f32 %v1257, 0.0
    %v1430 = vadd.f32 %v1259, 0.0
    %v1431 = vadd.f32 %v1261, 0.0
    %v1432 = vadd.f32 %v1263, 0.0
    %v1433 = vadd.f32 %v1265, 0.0
    %v1434 = vadd.f32 %v1267, 0.0
    %v1435 = vadd.f32 %v1269, 0.0
    %v1436 = vadd.f32 %v1271, 0.0
    %v1437 = vadd.f32 %v1273, 0.0
    %v1438 = vadd.f32 %v1275, 0.0
    %v1439 = vadd.f32 %v1277, 0.0
    %v1440 = vadd.f32 %v1279, 0.0
    %v1441 = vadd.f32 %v1281, 0.0
    %v1442 = vadd.f32 %v1283, 0.0
    %v1443 = vadd.f32 %v1285, 0.0
    %v1444 = vadd.f32 %v1287, 0.0
    %v1445 = vadd.f32 %v1289, 0.0
    %v1446 = vadd.f32 %v1291, 0.0
    %v1447 = vadd.f32 %v1293, 0.0
    %v1448 = vadd.f32 %v1295, 0.0
    %v1449 = vadd.f32 %v1297, 0.0
    %v1450 = vadd.f32 %v1299, 0.0
    %v1451 = vadd.f32 %v1301, 0.0
    %v1452 = vadd.f32 %v1303, 0.0
    %v1453 = vadd.f32 %v1305, 0.0
    %v1454 = vadd.f32 %v1307, 0.0
    %v1455 = vadd.f32 %v1309, 0.0
    %v1456 = vadd.f32 %v1311, 0.0
    %v1457 = vadd.f32 %v1313, 0.0
    %v1458 = vadd.f32 %v1315, 0.0
    %v1459 = vadd.f32 %v1317, 0.0
    %v1460 = vadd.f32 %v1319, 0.0
    %v1461 = vadd.f32 %v1321, 0.0
    %v1462 = vadd.f32 %v1323, 0.0
    %v1463 = vadd.f32 %v1325, 0.0
    %v1464 = vadd.f32 %v1327, 0.0
    %v1465 = vadd.f32 %v1329, 0.0
    %v1466 = vadd.f32 %v1331, 0.0
    %v1467 = vadd.f32 %v1333, 0.0
    %v1468 = vadd.f32 %v1335, 0.0
    %v1469 = vadd.f32 %v1337, 0.0
    %v1470 = vadd.f32 %v1339, 0.0
    %v1471 = vadd.f32 %v1341, 0.0
    %v1472 = vadd.f32 %v1343, 0.0
    %v1473 = vadd.f32 %v1345, 0.0
    %v1474 = vld [vmem:[%s5] sm:$0xff]
    %vm1475 = vcmp.eq.s32.totalorder %v1474, 0
    %v1604 = vlaneseq
    %v1605 = vshrl.u32 %v1604, 7
    %v1606 = vsub.s32 %v743, %v1605
    %v1607 = vrot.slane %v1346, %v1606
    %v1608 = vadd.s32 %v743, 4294967288
    %v1609 = vlaneseq
    %v1610 = vshrl.u32 %v1609, 7
    %v1611 = vsub.s32 %v1608, %v1610
    %v1612 = vrot.slane %v1347, %v1611
    %vm1613 = vcmask 130112
    %v1614 = vsel %vm1613, %v1612, %v1607
    %v1615 = vadd.s32 %v743, 4294967280
    %v1616 = vlaneseq
    %v1617 = vshrl.u32 %v1616, 7
    %v1618 = vsub.s32 %v1615, %v1617
    %v1619 = vrot.slane %v1348, %v1618
    %vm1620 = vcmask 195712
    %v1621 = vsel %vm1620, %v1619, %v1614
    %v1622 = vadd.s32 %v743, 4294967272
    %v1623 = vlaneseq
    %v1624 = vshrl.u32 %v1623, 7
    %v1625 = vsub.s32 %v1622, %v1624
    %v1626 = vrot.slane %v1349, %v1625
    %vm1627 = vcmask 261312
    %v1628 = vsel %vm1627, %v1626, %v1621
    %v1629 = vadd.s32 %v743, 4294967264
    %v1630 = vlaneseq
    %v1631 = vshrl.u32 %v1630, 7
    %v1632 = vsub.s32 %v1629, %v1631
    %v1633 = vrot.slane %v1350, %v1632
    %vm1634 = vcmask 326912
    %v1635 = vsel %vm1634, %v1633, %v1628
    %v1636 = vadd.s32 %v743, 4294967256
    %v1637 = vlaneseq
    %v1638 = vshrl.u32 %v1637, 7
    %v1639 = vsub.s32 %v1636, %v1638
    %v1640 = vrot.slane %v1351, %v1639
    %vm1641 = vcmask 392512
    %v1642 = vsel %vm1641, %v1640, %v1635
    %v1643 = vadd.s32 %v743, 4294967248
    %v1644 = vlaneseq
    %v1645 = vshrl.u32 %v1644, 7
    %v1646 = vsub.s32 %v1643, %v1645
    %v1647 = vrot.slane %v1352, %v1646
    %vm1648 = vcmask 458112
    %v1649 = vsel %vm1648, %v1647, %v1642
    %v1650 = vadd.s32 %v743, 4294967240
    %v1651 = vlaneseq
    %v1652 = vshrl.u32 %v1651, 7
    %v1653 = vsub.s32 %v1650, %v1652
    %v1654 = vrot.slane %v1353, %v1653
    %vm1655 = vcmask 523712
    %v1656 = vsel %vm1655, %v1654, %v1649
    %v1657 = vadd.s32 %v743, 4294967232
    %v1658 = vlaneseq
    %v1659 = vshrl.u32 %v1658, 7
    %v1660 = vsub.s32 %v1657, %v1659
    %v1661 = vrot.slane %v1354, %v1660
    %vm1662 = vcmask 589312
    %v1663 = vsel %vm1662, %v1661, %v1656
    %v1664 = vadd.s32 %v743, 4294967224
    %v1665 = vlaneseq
    %v1666 = vshrl.u32 %v1665, 7
    %v1667 = vsub.s32 %v1664, %v1666
    %v1668 = vrot.slane %v1355, %v1667
    %vm1669 = vcmask 654912
    %v1670 = vsel %vm1669, %v1668, %v1663
    %v1671 = vadd.s32 %v743, 4294967216
    %v1672 = vlaneseq
    %v1673 = vshrl.u32 %v1672, 7
    %v1674 = vsub.s32 %v1671, %v1673
    %v1675 = vrot.slane %v1356, %v1674
    %vm1676 = vcmask 720512
    %v1677 = vsel %vm1676, %v1675, %v1670
    %v1678 = vadd.s32 %v743, 4294967208
    %v1679 = vlaneseq
    %v1680 = vshrl.u32 %v1679, 7
    %v1681 = vsub.s32 %v1678, %v1680
    %v1682 = vrot.slane %v1357, %v1681
    %vm1683 = vcmask 786112
    %v1684 = vsel %vm1683, %v1682, %v1677
    %v1685 = vadd.s32 %v743, 4294967200
    %v1686 = vlaneseq
    %v1687 = vshrl.u32 %v1686, 7
    %v1688 = vsub.s32 %v1685, %v1687
    %v1689 = vrot.slane %v1358, %v1688
    %vm1690 = vcmask 851712
    %v1691 = vsel %vm1690, %v1689, %v1684
    %v1692 = vadd.s32 %v743, 4294967192
    %v1693 = vlaneseq
    %v1694 = vshrl.u32 %v1693, 7
    %v1695 = vsub.s32 %v1692, %v1694
    %v1696 = vrot.slane %v1359, %v1695
    %vm1697 = vcmask 917312
    %v1698 = vsel %vm1697, %v1696, %v1691
    %v1699 = vadd.s32 %v743, 4294967184
    %v1700 = vlaneseq
    %v1701 = vshrl.u32 %v1700, 7
    %v1702 = vsub.s32 %v1699, %v1701
    %v1703 = vrot.slane %v1360, %v1702
    %vm1704 = vcmask 982912
    %v1705 = vsel %vm1704, %v1703, %v1698
    %v1706 = vadd.s32 %v743, 4294967176
    %v1707 = vlaneseq
    %v1708 = vshrl.u32 %v1707, 7
    %v1709 = vsub.s32 %v1706, %v1708
    %v1710 = vrot.slane %v1361, %v1709
    %vm1711 = vcmask 1048512
    %v1712 = vsel %vm1711, %v1710, %v1705
    %v1713 = vlaneseq
    %v1714 = vshrl.u32 %v1713, 7
    %v1715 = vsub.s32 %v743, %v1714
    %v1716 = vrot.slane %v1362, %v1715
    %v1717 = vlaneseq
    %v1718 = vshrl.u32 %v1717, 7
    %v1719 = vsub.s32 %v1608, %v1718
    %v1720 = vrot.slane %v1363, %v1719
    %v1721 = vsel %vm1613, %v1720, %v1716
    %v1722 = vlaneseq
    %v1723 = vshrl.u32 %v1722, 7
    %v1724 = vsub.s32 %v1615, %v1723
    %v1725 = vrot.slane %v1364, %v1724
    %v1726 = vsel %vm1620, %v1725, %v1721
    %v1727 = vlaneseq
    %v1728 = vshrl.u32 %v1727, 7
    %v1729 = vsub.s32 %v1622, %v1728
    %v1730 = vrot.slane %v1365, %v1729
    %v1731 = vsel %vm1627, %v1730, %v1726
    %v1732 = vlaneseq
    %v1733 = vshrl.u32 %v1732, 7
    %v1734 = vsub.s32 %v1629, %v1733
    %v1735 = vrot.slane %v1366, %v1734
    %v1736 = vsel %vm1634, %v1735, %v1731
    %v1737 = vlaneseq
    %v1738 = vshrl.u32 %v1737, 7
    %v1739 = vsub.s32 %v1636, %v1738
    %v1740 = vrot.slane %v1367, %v1739
    %v1741 = vsel %vm1641, %v1740, %v1736
    %v1742 = vlaneseq
    %v1743 = vshrl.u32 %v1742, 7
    %v1744 = vsub.s32 %v1643, %v1743
    %v1745 = vrot.slane %v1368, %v1744
    %v1746 = vsel %vm1648, %v1745, %v1741
    %v1747 = vlaneseq
    %v1748 = vshrl.u32 %v1747, 7
    %v1749 = vsub.s32 %v1650, %v1748
    %v1750 = vrot.slane %v1369, %v1749
    %v1751 = vsel %vm1655, %v1750, %v1746
    %v1752 = vlaneseq
    %v1753 = vshrl.u32 %v1752, 7
    %v1754 = vsub.s32 %v1657, %v1753
    %v1755 = vrot.slane %v1370, %v1754
    %v1756 = vsel %vm1662, %v1755, %v1751
    %v1757 = vlaneseq
    %v1758 = vshrl.u32 %v1757, 7
    %v1759 = vsub.s32 %v1664, %v1758
    %v1760 = vrot.slane %v1371, %v1759
    %v1761 = vsel %vm1669, %v1760, %v1756
    %v1762 = vlaneseq
    %v1763 = vshrl.u32 %v1762, 7
    %v1764 = vsub.s32 %v1671, %v1763
    %v1765 = vrot.slane %v1372, %v1764
    %v1766 = vsel %vm1676, %v1765, %v1761
    %v1767 = vlaneseq
    %v1768 = vshrl.u32 %v1767, 7
    %v1769 = vsub.s32 %v1678, %v1768
    %v1770 = vrot.slane %v1373, %v1769
    %v1771 = vsel %vm1683, %v1770, %v1766
    %v1772 = vlaneseq
    %v1773 = vshrl.u32 %v1772, 7
    %v1774 = vsub.s32 %v1685, %v1773
    %v1775 = vrot.slane %v1374, %v1774
    %v1776 = vsel %vm1690, %v1775, %v1771
    %v1777 = vlaneseq
    %v1778 = vshrl.u32 %v1777, 7
    %v1779 = vsub.s32 %v1692, %v1778
    %v1780 = vrot.slane %v1375, %v1779
    %v1781 = vsel %vm1697, %v1780, %v1776
    %v1782 = vlaneseq
    %v1783 = vshrl.u32 %v1782, 7
    %v1784 = vsub.s32 %v1699, %v1783
    %v1785 = vrot.slane %v1376, %v1784
    %v1786 = vsel %vm1704, %v1785, %v1781
    %v1787 = vlaneseq
    %v1788 = vshrl.u32 %v1787, 7
    %v1789 = vsub.s32 %v1706, %v1788
    %v1790 = vrot.slane %v1377, %v1789
    %v1791 = vsel %vm1711, %v1790, %v1786
    %v1792 = vlaneseq
    %v1793 = vshrl.u32 %v1792, 7
    %v1794 = vsub.s32 %v743, %v1793
    %v1795 = vrot.slane %v1378, %v1794
    %v1796 = vlaneseq
    %v1797 = vshrl.u32 %v1796, 7
    %v1798 = vsub.s32 %v1608, %v1797
    %v1799 = vrot.slane %v1379, %v1798
    %v1800 = vsel %vm1613, %v1799, %v1795
    %v1801 = vlaneseq
    %v1802 = vshrl.u32 %v1801, 7
    %v1803 = vsub.s32 %v1615, %v1802
    %v1804 = vrot.slane %v1380, %v1803
    %v1805 = vsel %vm1620, %v1804, %v1800
    %v1806 = vlaneseq
    %v1807 = vshrl.u32 %v1806, 7
    %v1808 = vsub.s32 %v1622, %v1807
    %v1809 = vrot.slane %v1381, %v1808
    %v1810 = vsel %vm1627, %v1809, %v1805
    %v1811 = vlaneseq
    %v1812 = vshrl.u32 %v1811, 7
    %v1813 = vsub.s32 %v1629, %v1812
    %v1814 = vrot.slane %v1382, %v1813
    %v1815 = vsel %vm1634, %v1814, %v1810
    %v1816 = vlaneseq
    %v1817 = vshrl.u32 %v1816, 7
    %v1818 = vsub.s32 %v1636, %v1817
    %v1819 = vrot.slane %v1383, %v1818
    %v1820 = vsel %vm1641, %v1819, %v1815
    %v1821 = vlaneseq
    %v1822 = vshrl.u32 %v1821, 7
    %v1823 = vsub.s32 %v1643, %v1822
    %v1824 = vrot.slane %v1384, %v1823
    %v1825 = vsel %vm1648, %v1824, %v1820
    %v1826 = vlaneseq
    %v1827 = vshrl.u32 %v1826, 7
    %v1828 = vsub.s32 %v1650, %v1827
    %v1829 = vrot.slane %v1385, %v1828
    %v1830 = vsel %vm1655, %v1829, %v1825
    %v1831 = vlaneseq
    %v1832 = vshrl.u32 %v1831, 7
    %v1833 = vsub.s32 %v1657, %v1832
    %v1834 = vrot.slane %v1386, %v1833
    %v1835 = vsel %vm1662, %v1834, %v1830
    %v1836 = vlaneseq
    %v1837 = vshrl.u32 %v1836, 7
    %v1838 = vsub.s32 %v1664, %v1837
    %v1839 = vrot.slane %v1387, %v1838
    %v1840 = vsel %vm1669, %v1839, %v1835
    %v1841 = vlaneseq
    %v1842 = vshrl.u32 %v1841, 7
    %v1843 = vsub.s32 %v1671, %v1842
    %v1844 = vrot.slane %v1388, %v1843
    %v1845 = vsel %vm1676, %v1844, %v1840
    %v1846 = vlaneseq
    %v1847 = vshrl.u32 %v1846, 7
    %v1848 = vsub.s32 %v1678, %v1847
    %v1849 = vrot.slane %v1389, %v1848
    %v1850 = vsel %vm1683, %v1849, %v1845
    %v1851 = vlaneseq
    %v1852 = vshrl.u32 %v1851, 7
    %v1853 = vsub.s32 %v1685, %v1852
    %v1854 = vrot.slane %v1390, %v1853
    %v1855 = vsel %vm1690, %v1854, %v1850
    %v1856 = vlaneseq
    %v1857 = vshrl.u32 %v1856, 7
    %v1858 = vsub.s32 %v1692, %v1857
    %v1859 = vrot.slane %v1391, %v1858
    %v1860 = vsel %vm1697, %v1859, %v1855
    %v1861 = vlaneseq
    %v1862 = vshrl.u32 %v1861, 7
    %v1863 = vsub.s32 %v1699, %v1862
    %v1864 = vrot.slane %v1392, %v1863
    %v1865 = vsel %vm1704, %v1864, %v1860
    %v1866 = vlaneseq
    %v1867 = vshrl.u32 %v1866, 7
    %v1868 = vsub.s32 %v1706, %v1867
    %v1869 = vrot.slane %v1393, %v1868
    %v1870 = vsel %vm1711, %v1869, %v1865
    %v1871 = vlaneseq
    %v1872 = vshrl.u32 %v1871, 7
    %v1873 = vsub.s32 %v743, %v1872
    %v1874 = vrot.slane %v1394, %v1873
    %v1875 = vlaneseq
    %v1876 = vshrl.u32 %v1875, 7
    %v1877 = vsub.s32 %v1608, %v1876
    %v1878 = vrot.slane %v1395, %v1877
    %v1879 = vsel %vm1613, %v1878, %v1874
    %v1880 = vlaneseq
    %v1881 = vshrl.u32 %v1880, 7
    %v1882 = vsub.s32 %v1615, %v1881
    %v1883 = vrot.slane %v1396, %v1882
    %v1884 = vsel %vm1620, %v1883, %v1879
    %v1885 = vlaneseq
    %v1886 = vshrl.u32 %v1885, 7
    %v1887 = vsub.s32 %v1622, %v1886
    %v1888 = vrot.slane %v1397, %v1887
    %v1889 = vsel %vm1627, %v1888, %v1884
    %v1890 = vlaneseq
    %v1891 = vshrl.u32 %v1890, 7
    %v1892 = vsub.s32 %v1629, %v1891
    %v1893 = vrot.slane %v1398, %v1892
    %v1894 = vsel %vm1634, %v1893, %v1889
    %v1895 = vlaneseq
    %v1896 = vshrl.u32 %v1895, 7
    %v1897 = vsub.s32 %v1636, %v1896
    %v1898 = vrot.slane %v1399, %v1897
    %v1899 = vsel %vm1641, %v1898, %v1894
    %v1900 = vlaneseq
    %v1901 = vshrl.u32 %v1900, 7
    %v1902 = vsub.s32 %v1643, %v1901
    %v1903 = vrot.slane %v1400, %v1902
    %v1904 = vsel %vm1648, %v1903, %v1899
    %v1905 = vlaneseq
    %v1906 = vshrl.u32 %v1905, 7
    %v1907 = vsub.s32 %v1650, %v1906
    %v1908 = vrot.slane %v1401, %v1907
    %v1909 = vsel %vm1655, %v1908, %v1904
    %v1910 = vlaneseq
    %v1911 = vshrl.u32 %v1910, 7
    %v1912 = vsub.s32 %v1657, %v1911
    %v1913 = vrot.slane %v1402, %v1912
    %v1914 = vsel %vm1662, %v1913, %v1909
    %v1915 = vlaneseq
    %v1916 = vshrl.u32 %v1915, 7
    %v1917 = vsub.s32 %v1664, %v1916
    %v1918 = vrot.slane %v1403, %v1917
    %v1919 = vsel %vm1669, %v1918, %v1914
    %v1920 = vlaneseq
    %v1921 = vshrl.u32 %v1920, 7
    %v1922 = vsub.s32 %v1671, %v1921
    %v1923 = vrot.slane %v1404, %v1922
    %v1924 = vsel %vm1676, %v1923, %v1919
    %v1925 = vlaneseq
    %v1926 = vshrl.u32 %v1925, 7
    %v1927 = vsub.s32 %v1678, %v1926
    %v1928 = vrot.slane %v1405, %v1927
    %v1929 = vsel %vm1683, %v1928, %v1924
    %v1930 = vlaneseq
    %v1931 = vshrl.u32 %v1930, 7
    %v1932 = vsub.s32 %v1685, %v1931
    %v1933 = vrot.slane %v1406, %v1932
    %v1934 = vsel %vm1690, %v1933, %v1929
    %v1935 = vlaneseq
    %v1936 = vshrl.u32 %v1935, 7
    %v1937 = vsub.s32 %v1692, %v1936
    %v1938 = vrot.slane %v1407, %v1937
    %v1939 = vsel %vm1697, %v1938, %v1934
    %v1940 = vlaneseq
    %v1941 = vshrl.u32 %v1940, 7
    %v1942 = vsub.s32 %v1699, %v1941
    %v1943 = vrot.slane %v1408, %v1942
    %v1944 = vsel %vm1704, %v1943, %v1939
    %v1945 = vlaneseq
    %v1946 = vshrl.u32 %v1945, 7
    %v1947 = vsub.s32 %v1706, %v1946
    %v1948 = vrot.slane %v1409, %v1947
    %v1949 = vsel %vm1711, %v1948, %v1944
    %v1950 = vlaneseq
    %v1951 = vshrl.u32 %v1950, 7
    %v1952 = vsub.s32 %v743, %v1951
    %v1953 = vrot.slane %v1410, %v1952
    %v1954 = vlaneseq
    %v1955 = vshrl.u32 %v1954, 7
    %v1956 = vsub.s32 %v1608, %v1955
    %v1957 = vrot.slane %v1411, %v1956
    %v1958 = vsel %vm1613, %v1957, %v1953
    %v1959 = vlaneseq
    %v1960 = vshrl.u32 %v1959, 7
    %v1961 = vsub.s32 %v1615, %v1960
    %v1962 = vrot.slane %v1412, %v1961
    %v1963 = vsel %vm1620, %v1962, %v1958
    %v1964 = vlaneseq
    %v1965 = vshrl.u32 %v1964, 7
    %v1966 = vsub.s32 %v1622, %v1965
    %v1967 = vrot.slane %v1413, %v1966
    %v1968 = vsel %vm1627, %v1967, %v1963
    %v1969 = vlaneseq
    %v1970 = vshrl.u32 %v1969, 7
    %v1971 = vsub.s32 %v1629, %v1970
    %v1972 = vrot.slane %v1414, %v1971
    %v1973 = vsel %vm1634, %v1972, %v1968
    %v1974 = vlaneseq
    %v1975 = vshrl.u32 %v1974, 7
    %v1976 = vsub.s32 %v1636, %v1975
    %v1977 = vrot.slane %v1415, %v1976
    %v1978 = vsel %vm1641, %v1977, %v1973
    %v1979 = vlaneseq
    %v1980 = vshrl.u32 %v1979, 7
    %v1981 = vsub.s32 %v1643, %v1980
    %v1982 = vrot.slane %v1416, %v1981
    %v1983 = vsel %vm1648, %v1982, %v1978
    %v1984 = vlaneseq
    %v1985 = vshrl.u32 %v1984, 7
    %v1986 = vsub.s32 %v1650, %v1985
    %v1987 = vrot.slane %v1417, %v1986
    %v1988 = vsel %vm1655, %v1987, %v1983
    %v1989 = vlaneseq
    %v1990 = vshrl.u32 %v1989, 7
    %v1991 = vsub.s32 %v1657, %v1990
    %v1992 = vrot.slane %v1418, %v1991
    %v1993 = vsel %vm1662, %v1992, %v1988
    %v1994 = vlaneseq
    %v1995 = vshrl.u32 %v1994, 7
    %v1996 = vsub.s32 %v1664, %v1995
    %v1997 = vrot.slane %v1419, %v1996
    %v1998 = vsel %vm1669, %v1997, %v1993
    %v1999 = vlaneseq
    %v2000 = vshrl.u32 %v1999, 7
    %v2001 = vsub.s32 %v1671, %v2000
    %v2002 = vrot.slane %v1420, %v2001
    %v2003 = vsel %vm1676, %v2002, %v1998
    %v2004 = vlaneseq
    %v2005 = vshrl.u32 %v2004, 7
    %v2006 = vsub.s32 %v1678, %v2005
    %v2007 = vrot.slane %v1421, %v2006
    %v2008 = vsel %vm1683, %v2007, %v2003
    %v2009 = vlaneseq
    %v2010 = vshrl.u32 %v2009, 7
    %v2011 = vsub.s32 %v1685, %v2010
    %v2012 = vrot.slane %v1422, %v2011
    %v2013 = vsel %vm1690, %v2012, %v2008
    %v2014 = vlaneseq
    %v2015 = vshrl.u32 %v2014, 7
    %v2016 = vsub.s32 %v1692, %v2015
    %v2017 = vrot.slane %v1423, %v2016
    %v2018 = vsel %vm1697, %v2017, %v2013
    %v2019 = vlaneseq
    %v2020 = vshrl.u32 %v2019, 7
    %v2021 = vsub.s32 %v1699, %v2020
    %v2022 = vrot.slane %v1424, %v2021
    %v2023 = vsel %vm1704, %v2022, %v2018
    %v2024 = vlaneseq
    %v2025 = vshrl.u32 %v2024, 7
    %v2026 = vsub.s32 %v1706, %v2025
    %v2027 = vrot.slane %v1425, %v2026
    %v2028 = vsel %vm1711, %v2027, %v2023
    %v2029 = vlaneseq
    %v2030 = vshrl.u32 %v2029, 7
    %v2031 = vsub.s32 %v743, %v2030
    %v2032 = vrot.slane %v1426, %v2031
    %v2033 = vlaneseq
    %v2034 = vshrl.u32 %v2033, 7
    %v2035 = vsub.s32 %v1608, %v2034
    %v2036 = vrot.slane %v1427, %v2035
    %v2037 = vsel %vm1613, %v2036, %v2032
    %v2038 = vlaneseq
    %v2039 = vshrl.u32 %v2038, 7
    %v2040 = vsub.s32 %v1615, %v2039
    %v2041 = vrot.slane %v1428, %v2040
    %v2042 = vsel %vm1620, %v2041, %v2037
    %v2043 = vlaneseq
    %v2044 = vshrl.u32 %v2043, 7
    %v2045 = vsub.s32 %v1622, %v2044
    %v2046 = vrot.slane %v1429, %v2045
    %v2047 = vsel %vm1627, %v2046, %v2042
    %v2048 = vlaneseq
    %v2049 = vshrl.u32 %v2048, 7
    %v2050 = vsub.s32 %v1629, %v2049
    %v2051 = vrot.slane %v1430, %v2050
    %v2052 = vsel %vm1634, %v2051, %v2047
    %v2053 = vlaneseq
    %v2054 = vshrl.u32 %v2053, 7
    %v2055 = vsub.s32 %v1636, %v2054
    %v2056 = vrot.slane %v1431, %v2055
    %v2057 = vsel %vm1641, %v2056, %v2052
    %v2058 = vlaneseq
    %v2059 = vshrl.u32 %v2058, 7
    %v2060 = vsub.s32 %v1643, %v2059
    %v2061 = vrot.slane %v1432, %v2060
    %v2062 = vsel %vm1648, %v2061, %v2057
    %v2063 = vlaneseq
    %v2064 = vshrl.u32 %v2063, 7
    %v2065 = vsub.s32 %v1650, %v2064
    %v2066 = vrot.slane %v1433, %v2065
    %v2067 = vsel %vm1655, %v2066, %v2062
    %v2068 = vlaneseq
    %v2069 = vshrl.u32 %v2068, 7
    %v2070 = vsub.s32 %v1657, %v2069
    %v2071 = vrot.slane %v1434, %v2070
    %v2072 = vsel %vm1662, %v2071, %v2067
    %v2073 = vlaneseq
    %v2074 = vshrl.u32 %v2073, 7
    %v2075 = vsub.s32 %v1664, %v2074
    %v2076 = vrot.slane %v1435, %v2075
    %v2077 = vsel %vm1669, %v2076, %v2072
    %v2078 = vlaneseq
    %v2079 = vshrl.u32 %v2078, 7
    %v2080 = vsub.s32 %v1671, %v2079
    %v2081 = vrot.slane %v1436, %v2080
    %v2082 = vsel %vm1676, %v2081, %v2077
    %v2083 = vlaneseq
    %v2084 = vshrl.u32 %v2083, 7
    %v2085 = vsub.s32 %v1678, %v2084
    %v2086 = vrot.slane %v1437, %v2085
    %v2087 = vsel %vm1683, %v2086, %v2082
    %v2088 = vlaneseq
    %v2089 = vshrl.u32 %v2088, 7
    %v2090 = vsub.s32 %v1685, %v2089
    %v2091 = vrot.slane %v1438, %v2090
    %v2092 = vsel %vm1690, %v2091, %v2087
    %v2093 = vlaneseq
    %v2094 = vshrl.u32 %v2093, 7
    %v2095 = vsub.s32 %v1692, %v2094
    %v2096 = vrot.slane %v1439, %v2095
    %v2097 = vsel %vm1697, %v2096, %v2092
    %v2098 = vlaneseq
    %v2099 = vshrl.u32 %v2098, 7
    %v2100 = vsub.s32 %v1699, %v2099
    %v2101 = vrot.slane %v1440, %v2100
    %v2102 = vsel %vm1704, %v2101, %v2097
    %v2103 = vlaneseq
    %v2104 = vshrl.u32 %v2103, 7
    %v2105 = vsub.s32 %v1706, %v2104
    %v2106 = vrot.slane %v1441, %v2105
    %v2107 = vsel %vm1711, %v2106, %v2102
    %v2108 = vlaneseq
    %v2109 = vshrl.u32 %v2108, 7
    %v2110 = vsub.s32 %v743, %v2109
    %v2111 = vrot.slane %v1442, %v2110
    %v2112 = vlaneseq
    %v2113 = vshrl.u32 %v2112, 7
    %v2114 = vsub.s32 %v1608, %v2113
    %v2115 = vrot.slane %v1443, %v2114
    %v2116 = vsel %vm1613, %v2115, %v2111
    %v2117 = vlaneseq
    %v2118 = vshrl.u32 %v2117, 7
    %v2119 = vsub.s32 %v1615, %v2118
    %v2120 = vrot.slane %v1444, %v2119
    %v2121 = vsel %vm1620, %v2120, %v2116
    %v2122 = vlaneseq
    %v2123 = vshrl.u32 %v2122, 7
    %v2124 = vsub.s32 %v1622, %v2123
    %v2125 = vrot.slane %v1445, %v2124
    %v2126 = vsel %vm1627, %v2125, %v2121
    %v2127 = vlaneseq
    %v2128 = vshrl.u32 %v2127, 7
    %v2129 = vsub.s32 %v1629, %v2128
    %v2130 = vrot.slane %v1446, %v2129
    %v2131 = vsel %vm1634, %v2130, %v2126
    %v2132 = vlaneseq
    %v2133 = vshrl.u32 %v2132, 7
    %v2134 = vsub.s32 %v1636, %v2133
    %v2135 = vrot.slane %v1447, %v2134
    %v2136 = vsel %vm1641, %v2135, %v2131
    %v2137 = vlaneseq
    %v2138 = vshrl.u32 %v2137, 7
    %v2139 = vsub.s32 %v1643, %v2138
    %v2140 = vrot.slane %v1448, %v2139
    %v2141 = vsel %vm1648, %v2140, %v2136
    %v2142 = vlaneseq
    %v2143 = vshrl.u32 %v2142, 7
    %v2144 = vsub.s32 %v1650, %v2143
    %v2145 = vrot.slane %v1449, %v2144
    %v2146 = vsel %vm1655, %v2145, %v2141
    %v2147 = vlaneseq
    %v2148 = vshrl.u32 %v2147, 7
    %v2149 = vsub.s32 %v1657, %v2148
    %v2150 = vrot.slane %v1450, %v2149
    %v2151 = vsel %vm1662, %v2150, %v2146
    %v2152 = vlaneseq
    %v2153 = vshrl.u32 %v2152, 7
    %v2154 = vsub.s32 %v1664, %v2153
    %v2155 = vrot.slane %v1451, %v2154
    %v2156 = vsel %vm1669, %v2155, %v2151
    %v2157 = vlaneseq
    %v2158 = vshrl.u32 %v2157, 7
    %v2159 = vsub.s32 %v1671, %v2158
    %v2160 = vrot.slane %v1452, %v2159
    %v2161 = vsel %vm1676, %v2160, %v2156
    %v2162 = vlaneseq
    %v2163 = vshrl.u32 %v2162, 7
    %v2164 = vsub.s32 %v1678, %v2163
    %v2165 = vrot.slane %v1453, %v2164
    %v2166 = vsel %vm1683, %v2165, %v2161
    %v2167 = vlaneseq
    %v2168 = vshrl.u32 %v2167, 7
    %v2169 = vsub.s32 %v1685, %v2168
    %v2170 = vrot.slane %v1454, %v2169
    %v2171 = vsel %vm1690, %v2170, %v2166
    %v2172 = vlaneseq
    %v2173 = vshrl.u32 %v2172, 7
    %v2174 = vsub.s32 %v1692, %v2173
    %v2175 = vrot.slane %v1455, %v2174
    %v2176 = vsel %vm1697, %v2175, %v2171
    %v2177 = vlaneseq
    %v2178 = vshrl.u32 %v2177, 7
    %v2179 = vsub.s32 %v1699, %v2178
    %v2180 = vrot.slane %v1456, %v2179
    %v2181 = vsel %vm1704, %v2180, %v2176
    %v2182 = vlaneseq
    %v2183 = vshrl.u32 %v2182, 7
    %v2184 = vsub.s32 %v1706, %v2183
    %v2185 = vrot.slane %v1457, %v2184
    %v2186 = vsel %vm1711, %v2185, %v2181
    %v2187 = vlaneseq
    %v2188 = vshrl.u32 %v2187, 7
    %v2189 = vsub.s32 %v743, %v2188
    %v2190 = vrot.slane %v1458, %v2189
    %v2191 = vlaneseq
    %v2192 = vshrl.u32 %v2191, 7
    %v2193 = vsub.s32 %v1608, %v2192
    %v2194 = vrot.slane %v1459, %v2193
    %v2195 = vsel %vm1613, %v2194, %v2190
    %v2196 = vlaneseq
    %v2197 = vshrl.u32 %v2196, 7
    %v2198 = vsub.s32 %v1615, %v2197
    %v2199 = vrot.slane %v1460, %v2198
    %v2200 = vsel %vm1620, %v2199, %v2195
    %v2201 = vlaneseq
    %v2202 = vshrl.u32 %v2201, 7
    %v2203 = vsub.s32 %v1622, %v2202
    %v2204 = vrot.slane %v1461, %v2203
    %v2205 = vsel %vm1627, %v2204, %v2200
    %v2206 = vlaneseq
    %v2207 = vshrl.u32 %v2206, 7
    %v2208 = vsub.s32 %v1629, %v2207
    %v2209 = vrot.slane %v1462, %v2208
    %v2210 = vsel %vm1634, %v2209, %v2205
    %v2211 = vlaneseq
    %v2212 = vshrl.u32 %v2211, 7
    %v2213 = vsub.s32 %v1636, %v2212
    %v2214 = vrot.slane %v1463, %v2213
    %v2215 = vsel %vm1641, %v2214, %v2210
    %v2216 = vlaneseq
    %v2217 = vshrl.u32 %v2216, 7
    %v2218 = vsub.s32 %v1643, %v2217
    %v2219 = vrot.slane %v1464, %v2218
    %v2220 = vsel %vm1648, %v2219, %v2215
    %v2221 = vlaneseq
    %v2222 = vshrl.u32 %v2221, 7
    %v2223 = vsub.s32 %v1650, %v2222
    %v2224 = vrot.slane %v1465, %v2223
    %v2225 = vsel %vm1655, %v2224, %v2220
    %v2226 = vlaneseq
    %v2227 = vshrl.u32 %v2226, 7
    %v2228 = vsub.s32 %v1657, %v2227
    %v2229 = vrot.slane %v1466, %v2228
    %v2230 = vsel %vm1662, %v2229, %v2225
    %v2231 = vlaneseq
    %v2232 = vshrl.u32 %v2231, 7
    %v2233 = vsub.s32 %v1664, %v2232
    %v2234 = vrot.slane %v1467, %v2233
    %v2235 = vsel %vm1669, %v2234, %v2230
    %v2236 = vlaneseq
    %v2237 = vshrl.u32 %v2236, 7
    %v2238 = vsub.s32 %v1671, %v2237
    %v2239 = vrot.slane %v1468, %v2238
    %v2240 = vsel %vm1676, %v2239, %v2235
    %v2241 = vlaneseq
    %v2242 = vshrl.u32 %v2241, 7
    %v2243 = vsub.s32 %v1678, %v2242
    %v2244 = vrot.slane %v1469, %v2243
    %v2245 = vsel %vm1683, %v2244, %v2240
    %v2246 = vlaneseq
    %v2247 = vshrl.u32 %v2246, 7
    %v2248 = vsub.s32 %v1685, %v2247
    %v2249 = vrot.slane %v1470, %v2248
    %v2250 = vsel %vm1690, %v2249, %v2245
    %v2251 = vlaneseq
    %v2252 = vshrl.u32 %v2251, 7
    %v2253 = vsub.s32 %v1692, %v2252
    %v2254 = vrot.slane %v1471, %v2253
    %v2255 = vsel %vm1697, %v2254, %v2250
    %v2256 = vlaneseq
    %v2257 = vshrl.u32 %v2256, 7
    %v2258 = vsub.s32 %v1699, %v2257
    %v2259 = vrot.slane %v1472, %v2258
    %v2260 = vsel %vm1704, %v2259, %v2255
    %v2261 = vlaneseq
    %v2262 = vshrl.u32 %v2261, 7
    %v2263 = vsub.s32 %v1706, %v2262
    %v2264 = vrot.slane %v1473, %v2263
    %v2265 = vsel %vm1711, %v2264, %v2260
    %vm2266 = vcmask 1041409
    %v2267 = vsel %vm2266, %v1791, %v1712
    %vm2268 = vcmask 1042434
    %v2269 = vsel %vm2268, %v1870, %v2267
    %vm2270 = vcmask 1043459
    %v2271 = vsel %vm2270, %v1949, %v2269
    %vm2272 = vcmask 1044484
    %v2273 = vsel %vm2272, %v2028, %v2271
    %vm2274 = vcmask 1045509
    %v2275 = vsel %vm2274, %v2107, %v2273
    %vm2276 = vcmask 1046534
    %v2277 = vsel %vm2276, %v2186, %v2275
    %vm2278 = vcmask 1047559
    %v2279 = vsel %vm2278, %v2265, %v2277
    %v2281 = vsel %vm1475, -1e+30, %v2279
    %2282 = vmax.xlane.f32.xlu0 %v2281
    %v2283 = vpop.xlane.xlu0 %2282
    %v2284 = vsub.f32 %v2281, %v2283
    %v2285 = vmul.f32 %v2284, 1.442695
    %v2286 = vpow.pop %v2285
    %2287 = vadd.xlane.f32.xlu0 %v2286
    %v2288 = vpop.xlane.xlu0 %2287
    %v2289 = vrcp.pop %v2288
    %v2290 = vmul.f32 %v2286, %v2289
    %2291 = vst [vmem:[#allocation10] sm:$0xff] %v2290
    // Predicated region
    $region42: #{tpu_custom_call.1} parent=1 // pred_check
      _
    $region43: #{tpu_custom_call.1} parent=1 // pred_check_branch
      %2293 = sbr.rel (0) target = $region45
    $region44: #{tpu_custom_call.1} parent=1 // pred_region
      %s2295 = ssub.s32 128, 128
      %2296 = vsyncadd [#allocation4], %s2295
      %s2298 = sshll.u32 [#allocation10], 4
      %s2299 = int_to_ptr.vmem [resolvable:$true] %s2298
      %2301 = dma.vmem_to_hbm [thread:$0]  %s2299, 128, %s6, [#allocation4]
    $region45: #{tpu_custom_call.1} parent=1 // pred_fallthru
      _
    // Predicated region
    $region46: #{tpu_custom_call.1} parent=1 // pred_check
      _
    $region47: #{tpu_custom_call.1} parent=1 // pred_check_branch
      %2303 = sbr.rel (0) target = $region49
    $region48: #{tpu_custom_call.1} parent=1 // pred_region
      %2304 = dma.done [#allocation4], 128
    $region49: #{tpu_custom_call.1} parent=1 // pred_fallthru
      _
    %2305 = vsyncpa [#allocation3], 1
    %2306 = vsyncpa [#allocation6], 1
    %2307 = vsyncpa [#allocation9], 1
    %2308 = vsyncpa [#allocation4], 1

</llo_original>
